<compile_context>
chip_gen: v7x
topology: tpu7x:2x2x1
jax: 0.10.0
libtpu: 0.0.40
codegen_flags: <defaults>
</compile_context>

<pallas_src>
import math

import jax
import jax.numpy as jnp
from jax.experimental import pallas as pl
from jax.experimental.pallas import tpu as pltpu


# -------------------- config (small, BERT-like) --------------------
VOCAB = 1000
MAX_POS = 64
TYPE_VOCAB = 2
HIDDEN = 128
NUM_LAYERS = 2
NUM_HEADS = 4
HEAD_DIM = HIDDEN // NUM_HEADS
INTERMEDIATE = 512
LN_EPS = 1e-12
OUT_PAD = 128          # lane-dense padded width of the final classifier

BATCH = 2
SEQ = 8


# -------------------- fused Pallas kernel --------------------
def _bert_fused_kernel(emb_ref, bias_ref,
                       emb_ln_g_ref, emb_ln_b_ref,
                       wqkv_ref, bqkv_ref, wo_ref, bo_ref, ln1g_ref, ln1b_ref,
                       wi_ref, bi_ref, wo2_ref, bo2_ref, ln2g_ref, ln2b_ref,
                       poolw_ref, poolb_ref, outw_ref, outb_ref,
                       o_ref):
    scale = 1.0 / math.sqrt(HEAD_DIM)

    def layernorm(h, g, b):
        mu = jnp.mean(h, axis=-1, keepdims=True)
        var = jnp.mean((h - mu) ** 2, axis=-1, keepdims=True)
        return (h - mu) * jax.lax.rsqrt(var + LN_EPS) * g + b

    def mm(a_f32, w_bf16):
        # bf16 MXU matmul, f32 accumulation.
        return jnp.dot(a_f32.astype(jnp.bfloat16), w_bf16,
                       preferred_element_type=jnp.float32)

    # ---- embeddings LayerNorm (no zero residual) ----
    x = emb_ref[0]                                        # (S, HIDDEN) f32
    x = layernorm(x, emb_ln_g_ref[...], emb_ln_b_ref[...])

    bias = bias_ref[0]                                    # (1, S) additive mask

    # ---- transformer encoder layers (static loop, weights stay in VMEM) ----
    for l in range(NUM_LAYERS):
        # fused QKV projection: (S, HIDDEN) @ (HIDDEN, 3*HIDDEN)
        qkv = mm(x, wqkv_ref[l]) + bqkv_ref[l]            # (S, 3*HIDDEN) f32
        q_all = qkv[:, :HIDDEN]
        k_all = qkv[:, HIDDEN:2 * HIDDEN]
        v_all = qkv[:, 2 * HIDDEN:]

        # per-head attention, no out-of-kernel transposes
        ctx_heads = []
        for hd in range(NUM_HEADS):
            lo, hi = hd * HEAD_DIM, (hd + 1) * HEAD_DIM
            q_h = q_all[:, lo:hi].astype(jnp.bfloat16)    # (S, Dh)
            k_h = k_all[:, lo:hi].astype(jnp.bfloat16)
            v_h = v_all[:, lo:hi].astype(jnp.bfloat16)
            # scores = q @ k^T (contract last dims; no materialized transpose)
            s = jax.lax.dot_general(
                q_h, k_h, (((1,), (1,)), ((), ())),
                preferred_element_type=jnp.float32)       # (S, S) f32
            s = s * scale + bias                          # additive mask
            m = jnp.max(s, axis=-1, keepdims=True)
            p = jnp.exp(s - m)
            denom = jnp.sum(p, axis=-1, keepdims=True)
            probs = p * pl.reciprocal(denom, approx=True)
            ctx_heads.append(
                jnp.dot(probs.astype(jnp.bfloat16), v_h,
                        preferred_element_type=jnp.float32))  # (S, Dh)
        ctx = jnp.concatenate(ctx_heads, axis=-1)         # (S, HIDDEN) f32

        attn_out = mm(ctx, wo_ref[l]) + bo_ref[l]
        x = layernorm(attn_out + x, ln1g_ref[l], ln1b_ref[l])

        inter = mm(x, wi_ref[l]) + bi_ref[l]              # (S, INTERMEDIATE)
        # TODO(synk): HF BERT uses erf-GELU; tanh-approx GELU used here.
        inter = jax.nn.gelu(inter, approximate=True)
        ffn_out = mm(inter, wo2_ref[l]) + bo2_ref[l]
        x = layernorm(ffn_out + x, ln2g_ref[l], ln2b_ref[l])

    # ---- pooler: tanh(Linear(h[:, 0])); bert_drop(p=0.3) is identity ----
    cls = x[0:1, :]                                       # (1, HIDDEN)
    pooled = jnp.tanh(mm(cls, poolw_ref[...]) + poolb_ref[...])

    # ---- final classifier fused in, lane-dense padded to 128 columns ----
    logits = mm(pooled, outw_ref[...]) + outb_ref[...]    # (1, OUT_PAD) f32
    o_ref[0] = logits.astype(o_ref.dtype)


def bert_encoder_pallas(emb, mask_bias, pp):
    """emb: (B, S, HIDDEN) f32; mask_bias: (B, 1, S) f32 additive.
    Returns (B, 1) logits."""
    B, S, _ = emb.shape
    L = NUM_LAYERS
    c2 = lambda b: (0, 0)
    c3 = lambda b: (0, 0, 0)

    in_specs = [
        pl.BlockSpec((1, S, HIDDEN), lambda b: (b, 0, 0)),      # emb
        pl.BlockSpec((1, 1, S), lambda b: (b, 0, 0)),           # mask bias
        pl.BlockSpec((1, HIDDEN), c2),                          # emb_ln_g
        pl.BlockSpec((1, HIDDEN), c2),                          # emb_ln_b
        pl.BlockSpec((L, HIDDEN, 3 * HIDDEN), c3),              # wqkv
        pl.BlockSpec((L, 1, 3 * HIDDEN), c3),                   # bqkv
        pl.BlockSpec((L, HIDDEN, HIDDEN), c3),                  # wo
        pl.BlockSpec((L, 1, HIDDEN), c3),                       # bo
        pl.BlockSpec((L, 1, HIDDEN), c3),                       # ln1_g
        pl.BlockSpec((L, 1, HIDDEN), c3),                       # ln1_b
        pl.BlockSpec((L, HIDDEN, INTERMEDIATE), c3),            # wi
        pl.BlockSpec((L, 1, INTERMEDIATE), c3),                 # bi
        pl.BlockSpec((L, INTERMEDIATE, HIDDEN), c3),            # wo2
        pl.BlockSpec((L, 1, HIDDEN), c3),                       # bo2
        pl.BlockSpec((L, 1, HIDDEN), c3),                       # ln2_g
        pl.BlockSpec((L, 1, HIDDEN), c3),                       # ln2_b
        pl.BlockSpec((HIDDEN, HIDDEN), c2),                     # pooler_w
        pl.BlockSpec((1, HIDDEN), c2),                          # pooler_b
        pl.BlockSpec((HIDDEN, OUT_PAD), c2),                    # out_w_pad
        pl.BlockSpec((1, OUT_PAD), c2),                         # out_b_pad
    ]

    out = pl.pallas_call(
        _bert_fused_kernel,
        out_shape=jax.ShapeDtypeStruct((B, 1, OUT_PAD), jnp.float32),
        grid=(B,),
        in_specs=in_specs,
        out_specs=pl.BlockSpec((1, 1, OUT_PAD), lambda b: (b, 0, 0)),
        compiler_params=pltpu.CompilerParams(
            dimension_semantics=("parallel",)),
    )(emb, mask_bias,
      pp["emb_ln_g"], pp["emb_ln_b"],
      pp["wqkv"], pp["bqkv"], pp["wo"], pp["bo"], pp["ln1_g"], pp["ln1_b"],
      pp["wi"], pp["bi"], pp["wo2"], pp["bo2"], pp["ln2_g"], pp["ln2_b"],
      pp["pooler_w"], pp["pooler_b"], pp["out_w_pad"], pp["out_b_pad"])

    return out.reshape(B, OUT_PAD)[:, :1]                 # (B, 1)


# -------------------- parameter init (deterministic) --------------------
def init_params(key):
    init_std = 0.02

    def normal(key, shape):
        return init_std * jax.random.normal(key, shape, dtype=jnp.float32)

    keys = iter(jax.random.split(key, 8 + NUM_LAYERS * 16))
    params = {}
    params["word_emb"] = normal(next(keys), (VOCAB, HIDDEN))
    params["pos_emb"] = normal(next(keys), (MAX_POS, HIDDEN))
    params["type_emb"] = normal(next(keys), (TYPE_VOCAB, HIDDEN))
    params["emb_ln_g"] = jnp.ones((HIDDEN,), jnp.float32)
    params["emb_ln_b"] = jnp.zeros((HIDDEN,), jnp.float32)

    layers = []
    for _ in range(NUM_LAYERS):
        layers.append({
            "wq": normal(next(keys), (HIDDEN, HIDDEN)),
            "bq": jnp.zeros((HIDDEN,), jnp.float32),
            "wk": normal(next(keys), (HIDDEN, HIDDEN)),
            "bk": jnp.zeros((HIDDEN,), jnp.float32),
            "wv": normal(next(keys), (HIDDEN, HIDDEN)),
            "bv": jnp.zeros((HIDDEN,), jnp.float32),
            "wo": normal(next(keys), (HIDDEN, HIDDEN)),
            "bo": jnp.zeros((HIDDEN,), jnp.float32),
            "attn_ln_g": jnp.ones((HIDDEN,), jnp.float32),
            "attn_ln_b": jnp.zeros((HIDDEN,), jnp.float32),
            "wi": normal(next(keys), (HIDDEN, INTERMEDIATE)),
            "bi": jnp.zeros((INTERMEDIATE,), jnp.float32),
            "wo2": normal(next(keys), (INTERMEDIATE, HIDDEN)),
            "bo2": jnp.zeros((HIDDEN,), jnp.float32),
            "ffn_ln_g": jnp.ones((HIDDEN,), jnp.float32),
            "ffn_ln_b": jnp.zeros((HIDDEN,), jnp.float32),
        })
    params["layers"] = layers

    params["pooler_w"] = normal(next(keys), (HIDDEN, HIDDEN))
    params["pooler_b"] = jnp.zeros((HIDDEN,), jnp.float32)
    params["out_w"] = normal(next(keys), (HIDDEN, 1))
    params["out_b"] = jnp.zeros((1,), jnp.float32)
    return params


def pack_params(params):
    """Fuse / stack / cast weights into the layout the fused kernel expects."""
    bf16 = jnp.bfloat16
    L = params["layers"]

    def stack(fn):
        return jnp.stack([fn(l) for l in L], axis=0)

    pp = {
        "word_emb": params["word_emb"],
        "pos_emb": params["pos_emb"],
        "type_emb": params["type_emb"],
        "emb_ln_g": params["emb_ln_g"].reshape(1, HIDDEN),
        "emb_ln_b": params["emb_ln_b"].reshape(1, HIDDEN),
        # fused QKV weight (HIDDEN, 3*HIDDEN) per layer, bf16 for the MXU
        "wqkv": stack(lambda l: jnp.concatenate(
            [l["wq"], l["wk"], l["wv"]], axis=1)).astype(bf16),
        "bqkv": stack(lambda l: jnp.concatenate(
            [l["bq"], l["bk"], l["bv"]], axis=0).reshape(1, 3 * HIDDEN)),
        "wo": stack(lambda l: l["wo"]).astype(bf16),
        "bo": stack(lambda l: l["bo"].reshape(1, HIDDEN)),
        "ln1_g": stack(lambda l: l["attn_ln_g"].reshape(1, HIDDEN)),
        "ln1_b": stack(lambda l: l["attn_ln_b"].reshape(1, HIDDEN)),
        "wi": stack(lambda l: l["wi"]).astype(bf16),
        "bi": stack(lambda l: l["bi"].reshape(1, INTERMEDIATE)),
        "wo2": stack(lambda l: l["wo2"]).astype(bf16),
        "bo2": stack(lambda l: l["bo2"].reshape(1, HIDDEN)),
        "ln2_g": stack(lambda l: l["ffn_ln_g"].reshape(1, HIDDEN)),
        "ln2_b": stack(lambda l: l["ffn_ln_b"].reshape(1, HIDDEN)),
        "pooler_w": params["pooler_w"].astype(bf16),
        "pooler_b": params["pooler_b"].reshape(1, HIDDEN),
        # lane-dense padded classifier: column 0 holds the real weight
        "out_w_pad": jnp.zeros((HIDDEN, OUT_PAD), jnp.float32)
                        .at[:, 0:1].set(params["out_w"]).astype(bf16),
        "out_b_pad": jnp.zeros((1, OUT_PAD), jnp.float32)
                        .at[0, 0].set(params["out_b"][0]),
    }
    return pp


# -------------------- model forward --------------------
def bert_base_uncased_forward(packed, ids, mask, token_type_ids):
    B, S = ids.shape

    # Embedding gathers stay in XLA (table lookups); everything else is fused.
    positions = jnp.arange(S, dtype=jnp.int32)
    emb = (jnp.take(packed["word_emb"], ids, axis=0)
           + jnp.take(packed["pos_emb"], positions, axis=0)[None, :, :]
           + jnp.take(packed["type_emb"], token_type_ids, axis=0))  # (B,S,H)

    # additive attention mask bias: (B, 1, S); added to f32 scores in-kernel
    mask_bias = (1.0 - mask.astype(jnp.float32))[:, None, :] * (-1e9)

    return bert_encoder_pallas(emb, mask_bias, packed)     # (B, 1)


# -------------------- main --------------------
if __name__ == "__main__":
    key = jax.random.PRNGKey(0)
    pkey, ikey = jax.random.split(key)
    params = init_params(pkey)
    packed = pack_params(params)          # one-time fuse/stack/bf16-cast

    ids = jax.random.randint(ikey, (BATCH, SEQ), 0, VOCAB, dtype=jnp.int32)
    mask = jnp.ones((BATCH, SEQ), dtype=jnp.int32)
    mask = mask.at[1, SEQ - 2:].set(0)    # exercise masking
    token_type_ids = jnp.zeros((BATCH, SEQ), dtype=jnp.int32)

    fwd = jax.jit(bert_base_uncased_forward)
    out = fwd(packed, ids, mask, token_type_ids)
    jax.block_until_ready(out)

    assert out.shape == (BATCH, 1), out.shape
    assert bool(jnp.all(jnp.isfinite(out)))
    print("KERNEL_OK")
</pallas_src>

<mosaic_0001>
module attributes {stable_mosaic.version = 11 : i64} {
  func.func @_bert_fused_kernel(%arg0: i32, %arg1: memref<1x8x128xf32, #tpu.memory_space<vmem>>, %arg2: memref<1x1x8xf32, #tpu.memory_space<vmem>>, %arg3: memref<1x128xf32, #tpu.memory_space<vmem>>, %arg4: memref<1x128xf32, #tpu.memory_space<vmem>>, %arg5: memref<2x128x384xbf16, #tpu.memory_space<vmem>>, %arg6: memref<2x1x384xf32, #tpu.memory_space<vmem>>, %arg7: memref<2x128x128xbf16, #tpu.memory_space<vmem>>, %arg8: memref<2x1x128xf32, #tpu.memory_space<vmem>>, %arg9: memref<2x1x128xf32, #tpu.memory_space<vmem>>, %arg10: memref<2x1x128xf32, #tpu.memory_space<vmem>>, %arg11: memref<2x128x512xbf16, #tpu.memory_space<vmem>>, %arg12: memref<2x1x512xf32, #tpu.memory_space<vmem>>, %arg13: memref<2x512x128xbf16, #tpu.memory_space<vmem>>, %arg14: memref<2x1x128xf32, #tpu.memory_space<vmem>>, %arg15: memref<2x1x128xf32, #tpu.memory_space<vmem>>, %arg16: memref<2x1x128xf32, #tpu.memory_space<vmem>>, %arg17: memref<128x128xbf16, #tpu.memory_space<vmem>>, %arg18: memref<1x128xf32, #tpu.memory_space<vmem>>, %arg19: memref<128x128xbf16, #tpu.memory_space<vmem>>, %arg20: memref<1x128xf32, #tpu.memory_space<vmem>>, %arg21: memref<1x1x128xf32, #tpu.memory_space<vmem>>) attributes {dimension_semantics = [#tpu.dimension_semantics<parallel>], iteration_bounds = array<i64: 2>, scalar_prefetch = 0 : i64, scratch_operands = 0 : i64, tpu.core_type = #tpu.core_type<tc>, window_params = [{transform_indices = @transform_0, window_bounds = array<i64: 1, 8, 128>}, {transform_indices = @transform_1, window_bounds = array<i64: 1, 1, 8>}, {pipeline_mode = #tpu.pipeline_mode<synchronous>, transform_indices = @transform_2, window_bounds = array<i64: 1, 128>}, {pipeline_mode = #tpu.pipeline_mode<synchronous>, transform_indices = @transform_3, window_bounds = array<i64: 1, 128>}, {pipeline_mode = #tpu.pipeline_mode<synchronous>, transform_indices = @transform_4, window_bounds = array<i64: 2, 128, 384>}, {pipeline_mode = #tpu.pipeline_mode<synchronous>, transform_indices = @transform_5, window_bounds = array<i64: 2, 1, 384>}, {pipeline_mode = #tpu.pipeline_mode<synchronous>, transform_indices = @transform_6, window_bounds = array<i64: 2, 128, 128>}, {pipeline_mode = #tpu.pipeline_mode<synchronous>, transform_indices = @transform_7, window_bounds = array<i64: 2, 1, 128>}, {pipeline_mode = #tpu.pipeline_mode<synchronous>, transform_indices = @transform_8, window_bounds = array<i64: 2, 1, 128>}, {pipeline_mode = #tpu.pipeline_mode<synchronous>, transform_indices = @transform_9, window_bounds = array<i64: 2, 1, 128>}, {pipeline_mode = #tpu.pipeline_mode<synchronous>, transform_indices = @transform_10, window_bounds = array<i64: 2, 128, 512>}, {pipeline_mode = #tpu.pipeline_mode<synchronous>, transform_indices = @transform_11, window_bounds = array<i64: 2, 1, 512>}, {pipeline_mode = #tpu.pipeline_mode<synchronous>, transform_indices = @transform_12, window_bounds = array<i64: 2, 512, 128>}, {pipeline_mode = #tpu.pipeline_mode<synchronous>, transform_indices = @transform_13, window_bounds = array<i64: 2, 1, 128>}, {pipeline_mode = #tpu.pipeline_mode<synchronous>, transform_indices = @transform_14, window_bounds = array<i64: 2, 1, 128>}, {pipeline_mode = #tpu.pipeline_mode<synchronous>, transform_indices = @transform_15, window_bounds = array<i64: 2, 1, 128>}, {pipeline_mode = #tpu.pipeline_mode<synchronous>, transform_indices = @transform_16, window_bounds = array<i64: 128, 128>}, {pipeline_mode = #tpu.pipeline_mode<synchronous>, transform_indices = @transform_17, window_bounds = array<i64: 1, 128>}, {pipeline_mode = #tpu.pipeline_mode<synchronous>, transform_indices = @transform_18, window_bounds = array<i64: 128, 128>}, {pipeline_mode = #tpu.pipeline_mode<synchronous>, transform_indices = @transform_19, window_bounds = array<i64: 1, 128>}, {transform_indices = @transform_20, window_bounds = array<i64: 1, 1, 128>}]} {
    %c0 = arith.constant 0 : index
    %c0_0 = arith.constant 0 : index
    %c0_1 = arith.constant 0 : index
    %0 = vector.load %arg1[%c0, %c0_0, %c0_1] : memref<1x8x128xf32, #tpu.memory_space<vmem>>, vector<1x8x128xf32>
    %1 = vector.shape_cast %0 : vector<1x8x128xf32> to vector<8x128xf32>
    %c0_2 = arith.constant 0 : index
    %c0_3 = arith.constant 0 : index
    %2 = vector.load %arg3[%c0_2, %c0_3] : memref<1x128xf32, #tpu.memory_space<vmem>>, vector<1x128xf32>
    %c0_4 = arith.constant 0 : index
    %c0_5 = arith.constant 0 : index
    %3 = vector.load %arg4[%c0_4, %c0_5] : memref<1x128xf32, #tpu.memory_space<vmem>>, vector<1x128xf32>
    %cst = arith.constant dense<0.000000e+00> : vector<8xf32>
    %4 = vector.multi_reduction <add>, %1, %cst [1] : vector<8x128xf32> to vector<8xf32>
    %5 = vector.shape_cast %4 : vector<8xf32> to vector<8x1xf32>
    %cst_6 = arith.constant 1.280000e+02 : f32
    %6 = vector.broadcast %cst_6 : f32 to vector<8x1xf32>
    %7 = arith.divf %5, %6 : vector<8x1xf32>
    %8 = vector.broadcast %7 : vector<8x1xf32> to vector<8x128xf32>
    %9 = arith.subf %1, %8 : vector<8x128xf32>
    %10 = arith.mulf %9, %9 : vector<8x128xf32>
    %cst_7 = arith.constant dense<0.000000e+00> : vector<8xf32>
    %11 = vector.multi_reduction <add>, %10, %cst_7 [1] : vector<8x128xf32> to vector<8xf32>
    %12 = vector.shape_cast %11 : vector<8xf32> to vector<8x1xf32>
    %cst_8 = arith.constant 1.280000e+02 : f32
    %13 = vector.broadcast %cst_8 : f32 to vector<8x1xf32>
    %14 = arith.divf %12, %13 : vector<8x1xf32>
    %15 = vector.broadcast %7 : vector<8x1xf32> to vector<8x128xf32>
    %16 = arith.subf %1, %15 : vector<8x128xf32>
    %cst_9 = arith.constant 9.99999996E-13 : f32
    %17 = vector.broadcast %cst_9 : f32 to vector<8x1xf32>
    %18 = arith.addf %14, %17 : vector<8x1xf32>
    %19 = math.rsqrt %18 : vector<8x1xf32>
    %20 = vector.broadcast %19 : vector<8x1xf32> to vector<8x128xf32>
    %21 = arith.mulf %16, %20 : vector<8x128xf32>
    %22 = vector.broadcast %2 : vector<1x128xf32> to vector<8x128xf32>
    %23 = arith.mulf %21, %22 : vector<8x128xf32>
    %24 = vector.broadcast %3 : vector<1x128xf32> to vector<8x128xf32>
    %25 = arith.addf %23, %24 : vector<8x128xf32>
    %c0_10 = arith.constant 0 : index
    %c0_11 = arith.constant 0 : index
    %c0_12 = arith.constant 0 : index
    %26 = vector.load %arg2[%c0_10, %c0_11, %c0_12] : memref<1x1x8xf32, #tpu.memory_space<vmem>>, vector<1x1x8xf32>
    %27 = vector.shape_cast %26 : vector<1x1x8xf32> to vector<1x8xf32>
    %c0_13 = arith.constant 0 : index
    %c0_14 = arith.constant 0 : index
    %c0_15 = arith.constant 0 : index
    %28 = vector.load %arg5[%c0_13, %c0_14, %c0_15] : memref<2x128x384xbf16, #tpu.memory_space<vmem>>, vector<1x128x384xbf16>
    %29 = vector.shape_cast %28 : vector<1x128x384xbf16> to vector<128x384xbf16>
    %30 = arith.truncf %25 : vector<8x128xf32> to vector<8x128xbf16>
    %cst_16 = arith.constant dense<0.000000e+00> : vector<8x384xf32>
    %31 = tpu.matmul %30, %29, %cst_16 {dimension_numbers = #tpu.dot_dimension_numbers<[1], [0], [0], [1], [0, 0, 1, 1], [], []>} : vector<8x128xbf16>, vector<128x384xbf16>, vector<8x384xf32> -> vector<8x384xf32>
    %c0_17 = arith.constant 0 : index
    %c0_18 = arith.constant 0 : index
    %c0_19 = arith.constant 0 : index
    %32 = vector.load %arg6[%c0_17, %c0_18, %c0_19] : memref<2x1x384xf32, #tpu.memory_space<vmem>>, vector<1x1x384xf32>
    %33 = vector.shape_cast %32 : vector<1x1x384xf32> to vector<1x384xf32>
    %34 = vector.broadcast %33 : vector<1x384xf32> to vector<8x384xf32>
    %35 = arith.addf %31, %34 : vector<8x384xf32>
    %36 = vector.extract_strided_slice %35 {offsets = [0, 0], sizes = [8, 128], strides = [1, 1]} : vector<8x384xf32> to vector<8x128xf32>
    %37 = vector.extract_strided_slice %35 {offsets = [0, 128], sizes = [8, 128], strides = [1, 1]} : vector<8x384xf32> to vector<8x128xf32>
    %38 = vector.extract_strided_slice %35 {offsets = [0, 256], sizes = [8, 128], strides = [1, 1]} : vector<8x384xf32> to vector<8x128xf32>
    %39 = vector.extract_strided_slice %36 {offsets = [0, 0], sizes = [8, 32], strides = [1, 1]} : vector<8x128xf32> to vector<8x32xf32>
    %40 = arith.truncf %39 : vector<8x32xf32> to vector<8x32xbf16>
    %41 = vector.extract_strided_slice %37 {offsets = [0, 0], sizes = [8, 32], strides = [1, 1]} : vector<8x128xf32> to vector<8x32xf32>
    %42 = arith.truncf %41 : vector<8x32xf32> to vector<8x32xbf16>
    %43 = vector.extract_strided_slice %38 {offsets = [0, 0], sizes = [8, 32], strides = [1, 1]} : vector<8x128xf32> to vector<8x32xf32>
    %44 = arith.truncf %43 : vector<8x32xf32> to vector<8x32xbf16>
    %cst_20 = arith.constant dense<0.000000e+00> : vector<8x8xf32>
    %45 = tpu.matmul %40, %42, %cst_20 {dimension_numbers = #tpu.dot_dimension_numbers<[1], [1], [0], [0], [0, 0, 1, 0], [], []>} : vector<8x32xbf16>, vector<8x32xbf16>, vector<8x8xf32> -> vector<8x8xf32>
    %cst_21 = arith.constant 0.176776692 : f32
    %46 = vector.broadcast %cst_21 : f32 to vector<8x8xf32>
    %47 = arith.mulf %45, %46 : vector<8x8xf32>
    %48 = vector.broadcast %27 : vector<1x8xf32> to vector<8x8xf32>
    %49 = arith.addf %47, %48 : vector<8x8xf32>
    %cst_22 = arith.constant dense<0xFF800000> : vector<8xf32>
    %50 = vector.multi_reduction <maximumf>, %49, %cst_22 [1] : vector<8x8xf32> to vector<8xf32>
    %51 = vector.shape_cast %50 : vector<8xf32> to vector<8x1xf32>
    %52 = vector.broadcast %51 : vector<8x1xf32> to vector<8x8xf32>
    %53 = arith.subf %49, %52 : vector<8x8xf32>
    %54 = math.exp %53 : vector<8x8xf32>
    %cst_23 = arith.constant dense<0.000000e+00> : vector<8xf32>
    %55 = vector.multi_reduction <add>, %54, %cst_23 [1] : vector<8x8xf32> to vector<8xf32>
    %56 = vector.shape_cast %55 : vector<8xf32> to vector<8x1xf32>
    %57 = tpu.reciprocal %56 {approx = true} : vector<8x1xf32> -> vector<8x1xf32>
    %58 = vector.broadcast %57 : vector<8x1xf32> to vector<8x8xf32>
    %59 = arith.mulf %54, %58 : vector<8x8xf32>
    %60 = arith.truncf %59 : vector<8x8xf32> to vector<8x8xbf16>
    %cst_24 = arith.constant dense<0.000000e+00> : vector<8x32xf32>
    %61 = tpu.matmul %60, %44, %cst_24 {dimension_numbers = #tpu.dot_dimension_numbers<[1], [0], [0], [1], [0, 0, 1, 1], [], []>} : vector<8x8xbf16>, vector<8x32xbf16>, vector<8x32xf32> -> vector<8x32xf32>
    %62 = vector.extract_strided_slice %36 {offsets = [0, 32], sizes = [8, 32], strides = [1, 1]} : vector<8x128xf32> to vector<8x32xf32>
    %63 = arith.truncf %62 : vector<8x32xf32> to vector<8x32xbf16>
    %64 = vector.extract_strided_slice %37 {offsets = [0, 32], sizes = [8, 32], strides = [1, 1]} : vector<8x128xf32> to vector<8x32xf32>
    %65 = arith.truncf %64 : vector<8x32xf32> to vector<8x32xbf16>
    %66 = vector.extract_strided_slice %38 {offsets = [0, 32], sizes = [8, 32], strides = [1, 1]} : vector<8x128xf32> to vector<8x32xf32>
    %67 = arith.truncf %66 : vector<8x32xf32> to vector<8x32xbf16>
    %cst_25 = arith.constant dense<0.000000e+00> : vector<8x8xf32>
    %68 = tpu.matmul %63, %65, %cst_25 {dimension_numbers = #tpu.dot_dimension_numbers<[1], [1], [0], [0], [0, 0, 1, 0], [], []>} : vector<8x32xbf16>, vector<8x32xbf16>, vector<8x8xf32> -> vector<8x8xf32>
    %cst_26 = arith.constant 0.176776692 : f32
    %69 = vector.broadcast %cst_26 : f32 to vector<8x8xf32>
    %70 = arith.mulf %68, %69 : vector<8x8xf32>
    %71 = vector.broadcast %27 : vector<1x8xf32> to vector<8x8xf32>
    %72 = arith.addf %70, %71 : vector<8x8xf32>
    %cst_27 = arith.constant dense<0xFF800000> : vector<8xf32>
    %73 = vector.multi_reduction <maximumf>, %72, %cst_27 [1] : vector<8x8xf32> to vector<8xf32>
    %74 = vector.shape_cast %73 : vector<8xf32> to vector<8x1xf32>
    %75 = vector.broadcast %74 : vector<8x1xf32> to vector<8x8xf32>
    %76 = arith.subf %72, %75 : vector<8x8xf32>
    %77 = math.exp %76 : vector<8x8xf32>
    %cst_28 = arith.constant dense<0.000000e+00> : vector<8xf32>
    %78 = vector.multi_reduction <add>, %77, %cst_28 [1] : vector<8x8xf32> to vector<8xf32>
    %79 = vector.shape_cast %78 : vector<8xf32> to vector<8x1xf32>
    %80 = tpu.reciprocal %79 {approx = true} : vector<8x1xf32> -> vector<8x1xf32>
    %81 = vector.broadcast %80 : vector<8x1xf32> to vector<8x8xf32>
    %82 = arith.mulf %77, %81 : vector<8x8xf32>
    %83 = arith.truncf %82 : vector<8x8xf32> to vector<8x8xbf16>
    %cst_29 = arith.constant dense<0.000000e+00> : vector<8x32xf32>
    %84 = tpu.matmul %83, %67, %cst_29 {dimension_numbers = #tpu.dot_dimension_numbers<[1], [0], [0], [1], [0, 0, 1, 1], [], []>} : vector<8x8xbf16>, vector<8x32xbf16>, vector<8x32xf32> -> vector<8x32xf32>
    %85 = vector.extract_strided_slice %36 {offsets = [0, 64], sizes = [8, 32], strides = [1, 1]} : vector<8x128xf32> to vector<8x32xf32>
    %86 = arith.truncf %85 : vector<8x32xf32> to vector<8x32xbf16>
    %87 = vector.extract_strided_slice %37 {offsets = [0, 64], sizes = [8, 32], strides = [1, 1]} : vector<8x128xf32> to vector<8x32xf32>
    %88 = arith.truncf %87 : vector<8x32xf32> to vector<8x32xbf16>
    %89 = vector.extract_strided_slice %38 {offsets = [0, 64], sizes = [8, 32], strides = [1, 1]} : vector<8x128xf32> to vector<8x32xf32>
    %90 = arith.truncf %89 : vector<8x32xf32> to vector<8x32xbf16>
    %cst_30 = arith.constant dense<0.000000e+00> : vector<8x8xf32>
    %91 = tpu.matmul %86, %88, %cst_30 {dimension_numbers = #tpu.dot_dimension_numbers<[1], [1], [0], [0], [0, 0, 1, 0], [], []>} : vector<8x32xbf16>, vector<8x32xbf16>, vector<8x8xf32> -> vector<8x8xf32>
    %cst_31 = arith.constant 0.176776692 : f32
    %92 = vector.broadcast %cst_31 : f32 to vector<8x8xf32>
    %93 = arith.mulf %91, %92 : vector<8x8xf32>
    %94 = vector.broadcast %27 : vector<1x8xf32> to vector<8x8xf32>
    %95 = arith.addf %93, %94 : vector<8x8xf32>
    %cst_32 = arith.constant dense<0xFF800000> : vector<8xf32>
    %96 = vector.multi_reduction <maximumf>, %95, %cst_32 [1] : vector<8x8xf32> to vector<8xf32>
    %97 = vector.shape_cast %96 : vector<8xf32> to vector<8x1xf32>
    %98 = vector.broadcast %97 : vector<8x1xf32> to vector<8x8xf32>
    %99 = arith.subf %95, %98 : vector<8x8xf32>
    %100 = math.exp %99 : vector<8x8xf32>
    %cst_33 = arith.constant dense<0.000000e+00> : vector<8xf32>
    %101 = vector.multi_reduction <add>, %100, %cst_33 [1] : vector<8x8xf32> to vector<8xf32>
    %102 = vector.shape_cast %101 : vector<8xf32> to vector<8x1xf32>
    %103 = tpu.reciprocal %102 {approx = true} : vector<8x1xf32> -> vector<8x1xf32>
    %104 = vector.broadcast %103 : vector<8x1xf32> to vector<8x8xf32>
    %105 = arith.mulf %100, %104 : vector<8x8xf32>
    %106 = arith.truncf %105 : vector<8x8xf32> to vector<8x8xbf16>
    %cst_34 = arith.constant dense<0.000000e+00> : vector<8x32xf32>
    %107 = tpu.matmul %106, %90, %cst_34 {dimension_numbers = #tpu.dot_dimension_numbers<[1], [0], [0], [1], [0, 0, 1, 1], [], []>} : vector<8x8xbf16>, vector<8x32xbf16>, vector<8x32xf32> -> vector<8x32xf32>
    %108 = vector.extract_strided_slice %36 {offsets = [0, 96], sizes = [8, 32], strides = [1, 1]} : vector<8x128xf32> to vector<8x32xf32>
    %109 = arith.truncf %108 : vector<8x32xf32> to vector<8x32xbf16>
    %110 = vector.extract_strided_slice %37 {offsets = [0, 96], sizes = [8, 32], strides = [1, 1]} : vector<8x128xf32> to vector<8x32xf32>
    %111 = arith.truncf %110 : vector<8x32xf32> to vector<8x32xbf16>
    %112 = vector.extract_strided_slice %38 {offsets = [0, 96], sizes = [8, 32], strides = [1, 1]} : vector<8x128xf32> to vector<8x32xf32>
    %113 = arith.truncf %112 : vector<8x32xf32> to vector<8x32xbf16>
    %cst_35 = arith.constant dense<0.000000e+00> : vector<8x8xf32>
    %114 = tpu.matmul %109, %111, %cst_35 {dimension_numbers = #tpu.dot_dimension_numbers<[1], [1], [0], [0], [0, 0, 1, 0], [], []>} : vector<8x32xbf16>, vector<8x32xbf16>, vector<8x8xf32> -> vector<8x8xf32>
    %cst_36 = arith.constant 0.176776692 : f32
    %115 = vector.broadcast %cst_36 : f32 to vector<8x8xf32>
    %116 = arith.mulf %114, %115 : vector<8x8xf32>
    %117 = vector.broadcast %27 : vector<1x8xf32> to vector<8x8xf32>
    %118 = arith.addf %116, %117 : vector<8x8xf32>
    %cst_37 = arith.constant dense<0xFF800000> : vector<8xf32>
    %119 = vector.multi_reduction <maximumf>, %118, %cst_37 [1] : vector<8x8xf32> to vector<8xf32>
    %120 = vector.shape_cast %119 : vector<8xf32> to vector<8x1xf32>
    %121 = vector.broadcast %120 : vector<8x1xf32> to vector<8x8xf32>
    %122 = arith.subf %118, %121 : vector<8x8xf32>
    %123 = math.exp %122 : vector<8x8xf32>
    %cst_38 = arith.constant dense<0.000000e+00> : vector<8xf32>
    %124 = vector.multi_reduction <add>, %123, %cst_38 [1] : vector<8x8xf32> to vector<8xf32>
    %125 = vector.shape_cast %124 : vector<8xf32> to vector<8x1xf32>
    %126 = tpu.reciprocal %125 {approx = true} : vector<8x1xf32> -> vector<8x1xf32>
    %127 = vector.broadcast %126 : vector<8x1xf32> to vector<8x8xf32>
    %128 = arith.mulf %123, %127 : vector<8x8xf32>
    %129 = arith.truncf %128 : vector<8x8xf32> to vector<8x8xbf16>
    %cst_39 = arith.constant dense<0.000000e+00> : vector<8x32xf32>
    %130 = tpu.matmul %129, %113, %cst_39 {dimension_numbers = #tpu.dot_dimension_numbers<[1], [0], [0], [1], [0, 0, 1, 1], [], []>} : vector<8x8xbf16>, vector<8x32xbf16>, vector<8x32xf32> -> vector<8x32xf32>
    %131 = tpu.concatenate %61, %84, %107, %130 in 1 : vector<8x32xf32>, vector<8x32xf32>, vector<8x32xf32>, vector<8x32xf32> -> vector<8x128xf32>
    %c0_40 = arith.constant 0 : index
    %c0_41 = arith.constant 0 : index
    %c0_42 = arith.constant 0 : index
    %132 = vector.load %arg7[%c0_40, %c0_41, %c0_42] : memref<2x128x128xbf16, #tpu.memory_space<vmem>>, vector<1x128x128xbf16>
    %133 = vector.shape_cast %132 : vector<1x128x128xbf16> to vector<128x128xbf16>
    %134 = arith.truncf %131 : vector<8x128xf32> to vector<8x128xbf16>
    %cst_43 = arith.constant dense<0.000000e+00> : vector<8x128xf32>
    %135 = tpu.matmul %134, %133, %cst_43 {dimension_numbers = #tpu.dot_dimension_numbers<[1], [0], [0], [1], [0, 0, 1, 1], [], []>} : vector<8x128xbf16>, vector<128x128xbf16>, vector<8x128xf32> -> vector<8x128xf32>
    %c0_44 = arith.constant 0 : index
    %c0_45 = arith.constant 0 : index
    %c0_46 = arith.constant 0 : index
    %136 = vector.load %arg8[%c0_44, %c0_45, %c0_46] : memref<2x1x128xf32, #tpu.memory_space<vmem>>, vector<1x1x128xf32>
    %137 = vector.shape_cast %136 : vector<1x1x128xf32> to vector<1x128xf32>
    %138 = vector.broadcast %137 : vector<1x128xf32> to vector<8x128xf32>
    %139 = arith.addf %135, %138 : vector<8x128xf32>
    %140 = arith.addf %139, %25 : vector<8x128xf32>
    %c0_47 = arith.constant 0 : index
    %c0_48 = arith.constant 0 : index
    %c0_49 = arith.constant 0 : index
    %141 = vector.load %arg9[%c0_47, %c0_48, %c0_49] : memref<2x1x128xf32, #tpu.memory_space<vmem>>, vector<1x1x128xf32>
    %142 = vector.shape_cast %141 : vector<1x1x128xf32> to vector<1x128xf32>
    %c0_50 = arith.constant 0 : index
    %c0_51 = arith.constant 0 : index
    %c0_52 = arith.constant 0 : index
    %143 = vector.load %arg10[%c0_50, %c0_51, %c0_52] : memref<2x1x128xf32, #tpu.memory_space<vmem>>, vector<1x1x128xf32>
    %144 = vector.shape_cast %143 : vector<1x1x128xf32> to vector<1x128xf32>
    %cst_53 = arith.constant dense<0.000000e+00> : vector<8xf32>
    %145 = vector.multi_reduction <add>, %140, %cst_53 [1] : vector<8x128xf32> to vector<8xf32>
    %146 = vector.shape_cast %145 : vector<8xf32> to vector<8x1xf32>
    %cst_54 = arith.constant 1.280000e+02 : f32
    %147 = vector.broadcast %cst_54 : f32 to vector<8x1xf32>
    %148 = arith.divf %146, %147 : vector<8x1xf32>
    %149 = vector.broadcast %148 : vector<8x1xf32> to vector<8x128xf32>
    %150 = arith.subf %140, %149 : vector<8x128xf32>
    %151 = arith.mulf %150, %150 : vector<8x128xf32>
    %cst_55 = arith.constant dense<0.000000e+00> : vector<8xf32>
    %152 = vector.multi_reduction <add>, %151, %cst_55 [1] : vector<8x128xf32> to vector<8xf32>
    %153 = vector.shape_cast %152 : vector<8xf32> to vector<8x1xf32>
    %cst_56 = arith.constant 1.280000e+02 : f32
    %154 = vector.broadcast %cst_56 : f32 to vector<8x1xf32>
    %155 = arith.divf %153, %154 : vector<8x1xf32>
    %156 = vector.broadcast %148 : vector<8x1xf32> to vector<8x128xf32>
    %157 = arith.subf %140, %156 : vector<8x128xf32>
    %cst_57 = arith.constant 9.99999996E-13 : f32
    %158 = vector.broadcast %cst_57 : f32 to vector<8x1xf32>
    %159 = arith.addf %155, %158 : vector<8x1xf32>
    %160 = math.rsqrt %159 : vector<8x1xf32>
    %161 = vector.broadcast %160 : vector<8x1xf32> to vector<8x128xf32>
    %162 = arith.mulf %157, %161 : vector<8x128xf32>
    %163 = vector.broadcast %142 : vector<1x128xf32> to vector<8x128xf32>
    %164 = arith.mulf %162, %163 : vector<8x128xf32>
    %165 = vector.broadcast %144 : vector<1x128xf32> to vector<8x128xf32>
    %166 = arith.addf %164, %165 : vector<8x128xf32>
    %c0_58 = arith.constant 0 : index
    %c0_59 = arith.constant 0 : index
    %c0_60 = arith.constant 0 : index
    %167 = vector.load %arg11[%c0_58, %c0_59, %c0_60] : memref<2x128x512xbf16, #tpu.memory_space<vmem>>, vector<1x128x512xbf16>
    %168 = vector.shape_cast %167 : vector<1x128x512xbf16> to vector<128x512xbf16>
    %169 = arith.truncf %166 : vector<8x128xf32> to vector<8x128xbf16>
    %cst_61 = arith.constant dense<0.000000e+00> : vector<8x512xf32>
    %170 = tpu.matmul %169, %168, %cst_61 {dimension_numbers = #tpu.dot_dimension_numbers<[1], [0], [0], [1], [0, 0, 1, 1], [], []>} : vector<8x128xbf16>, vector<128x512xbf16>, vector<8x512xf32> -> vector<8x512xf32>
    %c0_62 = arith.constant 0 : index
    %c0_63 = arith.constant 0 : index
    %c0_64 = arith.constant 0 : index
    %171 = vector.load %arg12[%c0_62, %c0_63, %c0_64] : memref<2x1x512xf32, #tpu.memory_space<vmem>>, vector<1x1x512xf32>
    %172 = vector.shape_cast %171 : vector<1x1x512xf32> to vector<1x512xf32>
    %173 = vector.broadcast %172 : vector<1x512xf32> to vector<8x512xf32>
    %174 = arith.addf %170, %173 : vector<8x512xf32>
    %175 = arith.mulf %174, %174 : vector<8x512xf32>
    %176 = arith.mulf %174, %175 : vector<8x512xf32>
    %cst_65 = arith.constant 4.471500e-02 : f32
    %177 = vector.broadcast %cst_65 : f32 to vector<8x512xf32>
    %178 = arith.mulf %177, %176 : vector<8x512xf32>
    %179 = arith.addf %174, %178 : vector<8x512xf32>
    %cst_66 = arith.constant 0.797884583 : f32
    %180 = vector.broadcast %cst_66 : f32 to vector<8x512xf32>
    %181 = arith.mulf %180, %179 : vector<8x512xf32>
    %182 = math.tanh %181 : vector<8x512xf32>
    %cst_67 = arith.constant 1.000000e+00 : f32
    %183 = vector.broadcast %cst_67 : f32 to vector<8x512xf32>
    %184 = arith.addf %183, %182 : vector<8x512xf32>
    %cst_68 = arith.constant 5.000000e-01 : f32
    %185 = vector.broadcast %cst_68 : f32 to vector<8x512xf32>
    %186 = arith.mulf %185, %184 : vector<8x512xf32>
    %187 = arith.mulf %174, %186 : vector<8x512xf32>
    %c0_69 = arith.constant 0 : index
    %c0_70 = arith.constant 0 : index
    %c0_71 = arith.constant 0 : index
    %188 = vector.load %arg13[%c0_69, %c0_70, %c0_71] : memref<2x512x128xbf16, #tpu.memory_space<vmem>>, vector<1x512x128xbf16>
    %189 = vector.shape_cast %188 : vector<1x512x128xbf16> to vector<512x128xbf16>
    %190 = arith.truncf %187 : vector<8x512xf32> to vector<8x512xbf16>
    %cst_72 = arith.constant dense<0.000000e+00> : vector<8x128xf32>
    %191 = tpu.matmul %190, %189, %cst_72 {dimension_numbers = #tpu.dot_dimension_numbers<[1], [0], [0], [1], [0, 0, 1, 1], [], []>} : vector<8x512xbf16>, vector<512x128xbf16>, vector<8x128xf32> -> vector<8x128xf32>
    %c0_73 = arith.constant 0 : index
    %c0_74 = arith.constant 0 : index
    %c0_75 = arith.constant 0 : index
    %192 = vector.load %arg14[%c0_73, %c0_74, %c0_75] : memref<2x1x128xf32, #tpu.memory_space<vmem>>, vector<1x1x128xf32>
    %193 = vector.shape_cast %192 : vector<1x1x128xf32> to vector<1x128xf32>
    %194 = vector.broadcast %193 : vector<1x128xf32> to vector<8x128xf32>
    %195 = arith.addf %191, %194 : vector<8x128xf32>
    %196 = arith.addf %195, %166 : vector<8x128xf32>
    %c0_76 = arith.constant 0 : index
    %c0_77 = arith.constant 0 : index
    %c0_78 = arith.constant 0 : index
    %197 = vector.load %arg15[%c0_76, %c0_77, %c0_78] : memref<2x1x128xf32, #tpu.memory_space<vmem>>, vector<1x1x128xf32>
    %198 = vector.shape_cast %197 : vector<1x1x128xf32> to vector<1x128xf32>
    %c0_79 = arith.constant 0 : index
    %c0_80 = arith.constant 0 : index
    %c0_81 = arith.constant 0 : index
    %199 = vector.load %arg16[%c0_79, %c0_80, %c0_81] : memref<2x1x128xf32, #tpu.memory_space<vmem>>, vector<1x1x128xf32>
    %200 = vector.shape_cast %199 : vector<1x1x128xf32> to vector<1x128xf32>
    %cst_82 = arith.constant dense<0.000000e+00> : vector<8xf32>
    %201 = vector.multi_reduction <add>, %196, %cst_82 [1] : vector<8x128xf32> to vector<8xf32>
    %202 = vector.shape_cast %201 : vector<8xf32> to vector<8x1xf32>
    %cst_83 = arith.constant 1.280000e+02 : f32
    %203 = vector.broadcast %cst_83 : f32 to vector<8x1xf32>
    %204 = arith.divf %202, %203 : vector<8x1xf32>
    %205 = vector.broadcast %204 : vector<8x1xf32> to vector<8x128xf32>
    %206 = arith.subf %196, %205 : vector<8x128xf32>
    %207 = arith.mulf %206, %206 : vector<8x128xf32>
    %cst_84 = arith.constant dense<0.000000e+00> : vector<8xf32>
    %208 = vector.multi_reduction <add>, %207, %cst_84 [1] : vector<8x128xf32> to vector<8xf32>
    %209 = vector.shape_cast %208 : vector<8xf32> to vector<8x1xf32>
    %cst_85 = arith.constant 1.280000e+02 : f32
    %210 = vector.broadcast %cst_85 : f32 to vector<8x1xf32>
    %211 = arith.divf %209, %210 : vector<8x1xf32>
    %212 = vector.broadcast %204 : vector<8x1xf32> to vector<8x128xf32>
    %213 = arith.subf %196, %212 : vector<8x128xf32>
    %cst_86 = arith.constant 9.99999996E-13 : f32
    %214 = vector.broadcast %cst_86 : f32 to vector<8x1xf32>
    %215 = arith.addf %211, %214 : vector<8x1xf32>
    %216 = math.rsqrt %215 : vector<8x1xf32>
    %217 = vector.broadcast %216 : vector<8x1xf32> to vector<8x128xf32>
    %218 = arith.mulf %213, %217 : vector<8x128xf32>
    %219 = vector.broadcast %198 : vector<1x128xf32> to vector<8x128xf32>
    %220 = arith.mulf %218, %219 : vector<8x128xf32>
    %221 = vector.broadcast %200 : vector<1x128xf32> to vector<8x128xf32>
    %222 = arith.addf %220, %221 : vector<8x128xf32>
    %c1 = arith.constant 1 : index
    %c0_87 = arith.constant 0 : index
    %c0_88 = arith.constant 0 : index
    %223 = vector.load %arg5[%c1, %c0_87, %c0_88] : memref<2x128x384xbf16, #tpu.memory_space<vmem>>, vector<1x128x384xbf16>
    %224 = vector.shape_cast %223 : vector<1x128x384xbf16> to vector<128x384xbf16>
    %225 = arith.truncf %222 : vector<8x128xf32> to vector<8x128xbf16>
    %cst_89 = arith.constant dense<0.000000e+00> : vector<8x384xf32>
    %226 = tpu.matmul %225, %224, %cst_89 {dimension_numbers = #tpu.dot_dimension_numbers<[1], [0], [0], [1], [0, 0, 1, 1], [], []>} : vector<8x128xbf16>, vector<128x384xbf16>, vector<8x384xf32> -> vector<8x384xf32>
    %c1_90 = arith.constant 1 : index
    %c0_91 = arith.constant 0 : index
    %c0_92 = arith.constant 0 : index
    %227 = vector.load %arg6[%c1_90, %c0_91, %c0_92] : memref<2x1x384xf32, #tpu.memory_space<vmem>>, vector<1x1x384xf32>
    %228 = vector.shape_cast %227 : vector<1x1x384xf32> to vector<1x384xf32>
    %229 = vector.broadcast %228 : vector<1x384xf32> to vector<8x384xf32>
    %230 = arith.addf %226, %229 : vector<8x384xf32>
    %231 = vector.extract_strided_slice %230 {offsets = [0, 0], sizes = [8, 128], strides = [1, 1]} : vector<8x384xf32> to vector<8x128xf32>
    %232 = vector.extract_strided_slice %230 {offsets = [0, 128], sizes = [8, 128], strides = [1, 1]} : vector<8x384xf32> to vector<8x128xf32>
    %233 = vector.extract_strided_slice %230 {offsets = [0, 256], sizes = [8, 128], strides = [1, 1]} : vector<8x384xf32> to vector<8x128xf32>
    %234 = vector.extract_strided_slice %231 {offsets = [0, 0], sizes = [8, 32], strides = [1, 1]} : vector<8x128xf32> to vector<8x32xf32>
    %235 = arith.truncf %234 : vector<8x32xf32> to vector<8x32xbf16>
    %236 = vector.extract_strided_slice %232 {offsets = [0, 0], sizes = [8, 32], strides = [1, 1]} : vector<8x128xf32> to vector<8x32xf32>
    %237 = arith.truncf %236 : vector<8x32xf32> to vector<8x32xbf16>
    %238 = vector.extract_strided_slice %233 {offsets = [0, 0], sizes = [8, 32], strides = [1, 1]} : vector<8x128xf32> to vector<8x32xf32>
    %239 = arith.truncf %238 : vector<8x32xf32> to vector<8x32xbf16>
    %cst_93 = arith.constant dense<0.000000e+00> : vector<8x8xf32>
    %240 = tpu.matmul %235, %237, %cst_93 {dimension_numbers = #tpu.dot_dimension_numbers<[1], [1], [0], [0], [0, 0, 1, 0], [], []>} : vector<8x32xbf16>, vector<8x32xbf16>, vector<8x8xf32> -> vector<8x8xf32>
    %cst_94 = arith.constant 0.176776692 : f32
    %241 = vector.broadcast %cst_94 : f32 to vector<8x8xf32>
    %242 = arith.mulf %240, %241 : vector<8x8xf32>
    %243 = vector.broadcast %27 : vector<1x8xf32> to vector<8x8xf32>
    %244 = arith.addf %242, %243 : vector<8x8xf32>
    %cst_95 = arith.constant dense<0xFF800000> : vector<8xf32>
    %245 = vector.multi_reduction <maximumf>, %244, %cst_95 [1] : vector<8x8xf32> to vector<8xf32>
    %246 = vector.shape_cast %245 : vector<8xf32> to vector<8x1xf32>
    %247 = vector.broadcast %246 : vector<8x1xf32> to vector<8x8xf32>
    %248 = arith.subf %244, %247 : vector<8x8xf32>
    %249 = math.exp %248 : vector<8x8xf32>
    %cst_96 = arith.constant dense<0.000000e+00> : vector<8xf32>
    %250 = vector.multi_reduction <add>, %249, %cst_96 [1] : vector<8x8xf32> to vector<8xf32>
    %251 = vector.shape_cast %250 : vector<8xf32> to vector<8x1xf32>
    %252 = tpu.reciprocal %251 {approx = true} : vector<8x1xf32> -> vector<8x1xf32>
    %253 = vector.broadcast %252 : vector<8x1xf32> to vector<8x8xf32>
    %254 = arith.mulf %249, %253 : vector<8x8xf32>
    %255 = arith.truncf %254 : vector<8x8xf32> to vector<8x8xbf16>
    %cst_97 = arith.constant dense<0.000000e+00> : vector<8x32xf32>
    %256 = tpu.matmul %255, %239, %cst_97 {dimension_numbers = #tpu.dot_dimension_numbers<[1], [0], [0], [1], [0, 0, 1, 1], [], []>} : vector<8x8xbf16>, vector<8x32xbf16>, vector<8x32xf32> -> vector<8x32xf32>
    %257 = vector.extract_strided_slice %231 {offsets = [0, 32], sizes = [8, 32], strides = [1, 1]} : vector<8x128xf32> to vector<8x32xf32>
    %258 = arith.truncf %257 : vector<8x32xf32> to vector<8x32xbf16>
    %259 = vector.extract_strided_slice %232 {offsets = [0, 32], sizes = [8, 32], strides = [1, 1]} : vector<8x128xf32> to vector<8x32xf32>
    %260 = arith.truncf %259 : vector<8x32xf32> to vector<8x32xbf16>
    %261 = vector.extract_strided_slice %233 {offsets = [0, 32], sizes = [8, 32], strides = [1, 1]} : vector<8x128xf32> to vector<8x32xf32>
    %262 = arith.truncf %261 : vector<8x32xf32> to vector<8x32xbf16>
    %cst_98 = arith.constant dense<0.000000e+00> : vector<8x8xf32>
    %263 = tpu.matmul %258, %260, %cst_98 {dimension_numbers = #tpu.dot_dimension_numbers<[1], [1], [0], [0], [0, 0, 1, 0], [], []>} : vector<8x32xbf16>, vector<8x32xbf16>, vector<8x8xf32> -> vector<8x8xf32>
    %cst_99 = arith.constant 0.176776692 : f32
    %264 = vector.broadcast %cst_99 : f32 to vector<8x8xf32>
    %265 = arith.mulf %263, %264 : vector<8x8xf32>
    %266 = vector.broadcast %27 : vector<1x8xf32> to vector<8x8xf32>
    %267 = arith.addf %265, %266 : vector<8x8xf32>
    %cst_100 = arith.constant dense<0xFF800000> : vector<8xf32>
    %268 = vector.multi_reduction <maximumf>, %267, %cst_100 [1] : vector<8x8xf32> to vector<8xf32>
    %269 = vector.shape_cast %268 : vector<8xf32> to vector<8x1xf32>
    %270 = vector.broadcast %269 : vector<8x1xf32> to vector<8x8xf32>
    %271 = arith.subf %267, %270 : vector<8x8xf32>
    %272 = math.exp %271 : vector<8x8xf32>
    %cst_101 = arith.constant dense<0.000000e+00> : vector<8xf32>
    %273 = vector.multi_reduction <add>, %272, %cst_101 [1] : vector<8x8xf32> to vector<8xf32>
    %274 = vector.shape_cast %273 : vector<8xf32> to vector<8x1xf32>
    %275 = tpu.reciprocal %274 {approx = true} : vector<8x1xf32> -> vector<8x1xf32>
    %276 = vector.broadcast %275 : vector<8x1xf32> to vector<8x8xf32>
    %277 = arith.mulf %272, %276 : vector<8x8xf32>
    %278 = arith.truncf %277 : vector<8x8xf32> to vector<8x8xbf16>
    %cst_102 = arith.constant dense<0.000000e+00> : vector<8x32xf32>
    %279 = tpu.matmul %278, %262, %cst_102 {dimension_numbers = #tpu.dot_dimension_numbers<[1], [0], [0], [1], [0, 0, 1, 1], [], []>} : vector<8x8xbf16>, vector<8x32xbf16>, vector<8x32xf32> -> vector<8x32xf32>
    %280 = vector.extract_strided_slice %231 {offsets = [0, 64], sizes = [8, 32], strides = [1, 1]} : vector<8x128xf32> to vector<8x32xf32>
    %281 = arith.truncf %280 : vector<8x32xf32> to vector<8x32xbf16>
    %282 = vector.extract_strided_slice %232 {offsets = [0, 64], sizes = [8, 32], strides = [1, 1]} : vector<8x128xf32> to vector<8x32xf32>
    %283 = arith.truncf %282 : vector<8x32xf32> to vector<8x32xbf16>
    %284 = vector.extract_strided_slice %233 {offsets = [0, 64], sizes = [8, 32], strides = [1, 1]} : vector<8x128xf32> to vector<8x32xf32>
    %285 = arith.truncf %284 : vector<8x32xf32> to vector<8x32xbf16>
    %cst_103 = arith.constant dense<0.000000e+00> : vector<8x8xf32>
    %286 = tpu.matmul %281, %283, %cst_103 {dimension_numbers = #tpu.dot_dimension_numbers<[1], [1], [0], [0], [0, 0, 1, 0], [], []>} : vector<8x32xbf16>, vector<8x32xbf16>, vector<8x8xf32> -> vector<8x8xf32>
    %cst_104 = arith.constant 0.176776692 : f32
    %287 = vector.broadcast %cst_104 : f32 to vector<8x8xf32>
    %288 = arith.mulf %286, %287 : vector<8x8xf32>
    %289 = vector.broadcast %27 : vector<1x8xf32> to vector<8x8xf32>
    %290 = arith.addf %288, %289 : vector<8x8xf32>
    %cst_105 = arith.constant dense<0xFF800000> : vector<8xf32>
    %291 = vector.multi_reduction <maximumf>, %290, %cst_105 [1] : vector<8x8xf32> to vector<8xf32>
    %292 = vector.shape_cast %291 : vector<8xf32> to vector<8x1xf32>
    %293 = vector.broadcast %292 : vector<8x1xf32> to vector<8x8xf32>
    %294 = arith.subf %290, %293 : vector<8x8xf32>
    %295 = math.exp %294 : vector<8x8xf32>
    %cst_106 = arith.constant dense<0.000000e+00> : vector<8xf32>
    %296 = vector.multi_reduction <add>, %295, %cst_106 [1] : vector<8x8xf32> to vector<8xf32>
    %297 = vector.shape_cast %296 : vector<8xf32> to vector<8x1xf32>
    %298 = tpu.reciprocal %297 {approx = true} : vector<8x1xf32> -> vector<8x1xf32>
    %299 = vector.broadcast %298 : vector<8x1xf32> to vector<8x8xf32>
    %300 = arith.mulf %295, %299 : vector<8x8xf32>
    %301 = arith.truncf %300 : vector<8x8xf32> to vector<8x8xbf16>
    %cst_107 = arith.constant dense<0.000000e+00> : vector<8x32xf32>
    %302 = tpu.matmul %301, %285, %cst_107 {dimension_numbers = #tpu.dot_dimension_numbers<[1], [0], [0], [1], [0, 0, 1, 1], [], []>} : vector<8x8xbf16>, vector<8x32xbf16>, vector<8x32xf32> -> vector<8x32xf32>
    %303 = vector.extract_strided_slice %231 {offsets = [0, 96], sizes = [8, 32], strides = [1, 1]} : vector<8x128xf32> to vector<8x32xf32>
    %304 = arith.truncf %303 : vector<8x32xf32> to vector<8x32xbf16>
    %305 = vector.extract_strided_slice %232 {offsets = [0, 96], sizes = [8, 32], strides = [1, 1]} : vector<8x128xf32> to vector<8x32xf32>
    %306 = arith.truncf %305 : vector<8x32xf32> to vector<8x32xbf16>
    %307 = vector.extract_strided_slice %233 {offsets = [0, 96], sizes = [8, 32], strides = [1, 1]} : vector<8x128xf32> to vector<8x32xf32>
    %308 = arith.truncf %307 : vector<8x32xf32> to vector<8x32xbf16>
    %cst_108 = arith.constant dense<0.000000e+00> : vector<8x8xf32>
    %309 = tpu.matmul %304, %306, %cst_108 {dimension_numbers = #tpu.dot_dimension_numbers<[1], [1], [0], [0], [0, 0, 1, 0], [], []>} : vector<8x32xbf16>, vector<8x32xbf16>, vector<8x8xf32> -> vector<8x8xf32>
    %cst_109 = arith.constant 0.176776692 : f32
    %310 = vector.broadcast %cst_109 : f32 to vector<8x8xf32>
    %311 = arith.mulf %309, %310 : vector<8x8xf32>
    %312 = vector.broadcast %27 : vector<1x8xf32> to vector<8x8xf32>
    %313 = arith.addf %311, %312 : vector<8x8xf32>
    %cst_110 = arith.constant dense<0xFF800000> : vector<8xf32>
    %314 = vector.multi_reduction <maximumf>, %313, %cst_110 [1] : vector<8x8xf32> to vector<8xf32>
    %315 = vector.shape_cast %314 : vector<8xf32> to vector<8x1xf32>
    %316 = vector.broadcast %315 : vector<8x1xf32> to vector<8x8xf32>
    %317 = arith.subf %313, %316 : vector<8x8xf32>
    %318 = math.exp %317 : vector<8x8xf32>
    %cst_111 = arith.constant dense<0.000000e+00> : vector<8xf32>
    %319 = vector.multi_reduction <add>, %318, %cst_111 [1] : vector<8x8xf32> to vector<8xf32>
    %320 = vector.shape_cast %319 : vector<8xf32> to vector<8x1xf32>
    %321 = tpu.reciprocal %320 {approx = true} : vector<8x1xf32> -> vector<8x1xf32>
    %322 = vector.broadcast %321 : vector<8x1xf32> to vector<8x8xf32>
    %323 = arith.mulf %318, %322 : vector<8x8xf32>
    %324 = arith.truncf %323 : vector<8x8xf32> to vector<8x8xbf16>
    %cst_112 = arith.constant dense<0.000000e+00> : vector<8x32xf32>
    %325 = tpu.matmul %324, %308, %cst_112 {dimension_numbers = #tpu.dot_dimension_numbers<[1], [0], [0], [1], [0, 0, 1, 1], [], []>} : vector<8x8xbf16>, vector<8x32xbf16>, vector<8x32xf32> -> vector<8x32xf32>
    %326 = tpu.concatenate %256, %279, %302, %325 in 1 : vector<8x32xf32>, vector<8x32xf32>, vector<8x32xf32>, vector<8x32xf32> -> vector<8x128xf32>
    %c1_113 = arith.constant 1 : index
    %c0_114 = arith.constant 0 : index
    %c0_115 = arith.constant 0 : index
    %327 = vector.load %arg7[%c1_113, %c0_114, %c0_115] : memref<2x128x128xbf16, #tpu.memory_space<vmem>>, vector<1x128x128xbf16>
    %328 = vector.shape_cast %327 : vector<1x128x128xbf16> to vector<128x128xbf16>
    %329 = arith.truncf %326 : vector<8x128xf32> to vector<8x128xbf16>
    %cst_116 = arith.constant dense<0.000000e+00> : vector<8x128xf32>
    %330 = tpu.matmul %329, %328, %cst_116 {dimension_numbers = #tpu.dot_dimension_numbers<[1], [0], [0], [1], [0, 0, 1, 1], [], []>} : vector<8x128xbf16>, vector<128x128xbf16>, vector<8x128xf32> -> vector<8x128xf32>
    %c1_117 = arith.constant 1 : index
    %c0_118 = arith.constant 0 : index
    %c0_119 = arith.constant 0 : index
    %331 = vector.load %arg8[%c1_117, %c0_118, %c0_119] : memref<2x1x128xf32, #tpu.memory_space<vmem>>, vector<1x1x128xf32>
    %332 = vector.shape_cast %331 : vector<1x1x128xf32> to vector<1x128xf32>
    %333 = vector.broadcast %332 : vector<1x128xf32> to vector<8x128xf32>
    %334 = arith.addf %330, %333 : vector<8x128xf32>
    %335 = arith.addf %334, %222 : vector<8x128xf32>
    %c1_120 = arith.constant 1 : index
    %c0_121 = arith.constant 0 : index
    %c0_122 = arith.constant 0 : index
    %336 = vector.load %arg9[%c1_120, %c0_121, %c0_122] : memref<2x1x128xf32, #tpu.memory_space<vmem>>, vector<1x1x128xf32>
    %337 = vector.shape_cast %336 : vector<1x1x128xf32> to vector<1x128xf32>
    %c1_123 = arith.constant 1 : index
    %c0_124 = arith.constant 0 : index
    %c0_125 = arith.constant 0 : index
    %338 = vector.load %arg10[%c1_123, %c0_124, %c0_125] : memref<2x1x128xf32, #tpu.memory_space<vmem>>, vector<1x1x128xf32>
    %339 = vector.shape_cast %338 : vector<1x1x128xf32> to vector<1x128xf32>
    %cst_126 = arith.constant dense<0.000000e+00> : vector<8xf32>
    %340 = vector.multi_reduction <add>, %335, %cst_126 [1] : vector<8x128xf32> to vector<8xf32>
    %341 = vector.shape_cast %340 : vector<8xf32> to vector<8x1xf32>
    %cst_127 = arith.constant 1.280000e+02 : f32
    %342 = vector.broadcast %cst_127 : f32 to vector<8x1xf32>
    %343 = arith.divf %341, %342 : vector<8x1xf32>
    %344 = vector.broadcast %343 : vector<8x1xf32> to vector<8x128xf32>
    %345 = arith.subf %335, %344 : vector<8x128xf32>
    %346 = arith.mulf %345, %345 : vector<8x128xf32>
    %cst_128 = arith.constant dense<0.000000e+00> : vector<8xf32>
    %347 = vector.multi_reduction <add>, %346, %cst_128 [1] : vector<8x128xf32> to vector<8xf32>
    %348 = vector.shape_cast %347 : vector<8xf32> to vector<8x1xf32>
    %cst_129 = arith.constant 1.280000e+02 : f32
    %349 = vector.broadcast %cst_129 : f32 to vector<8x1xf32>
    %350 = arith.divf %348, %349 : vector<8x1xf32>
    %351 = vector.broadcast %343 : vector<8x1xf32> to vector<8x128xf32>
    %352 = arith.subf %335, %351 : vector<8x128xf32>
    %cst_130 = arith.constant 9.99999996E-13 : f32
    %353 = vector.broadcast %cst_130 : f32 to vector<8x1xf32>
    %354 = arith.addf %350, %353 : vector<8x1xf32>
    %355 = math.rsqrt %354 : vector<8x1xf32>
    %356 = vector.broadcast %355 : vector<8x1xf32> to vector<8x128xf32>
    %357 = arith.mulf %352, %356 : vector<8x128xf32>
    %358 = vector.broadcast %337 : vector<1x128xf32> to vector<8x128xf32>
    %359 = arith.mulf %357, %358 : vector<8x128xf32>
    %360 = vector.broadcast %339 : vector<1x128xf32> to vector<8x128xf32>
    %361 = arith.addf %359, %360 : vector<8x128xf32>
    %c1_131 = arith.constant 1 : index
    %c0_132 = arith.constant 0 : index
    %c0_133 = arith.constant 0 : index
    %362 = vector.load %arg11[%c1_131, %c0_132, %c0_133] : memref<2x128x512xbf16, #tpu.memory_space<vmem>>, vector<1x128x512xbf16>
    %363 = vector.shape_cast %362 : vector<1x128x512xbf16> to vector<128x512xbf16>
    %364 = arith.truncf %361 : vector<8x128xf32> to vector<8x128xbf16>
    %cst_134 = arith.constant dense<0.000000e+00> : vector<8x512xf32>
    %365 = tpu.matmul %364, %363, %cst_134 {dimension_numbers = #tpu.dot_dimension_numbers<[1], [0], [0], [1], [0, 0, 1, 1], [], []>} : vector<8x128xbf16>, vector<128x512xbf16>, vector<8x512xf32> -> vector<8x512xf32>
    %c1_135 = arith.constant 1 : index
    %c0_136 = arith.constant 0 : index
    %c0_137 = arith.constant 0 : index
    %366 = vector.load %arg12[%c1_135, %c0_136, %c0_137] : memref<2x1x512xf32, #tpu.memory_space<vmem>>, vector<1x1x512xf32>
    %367 = vector.shape_cast %366 : vector<1x1x512xf32> to vector<1x512xf32>
    %368 = vector.broadcast %367 : vector<1x512xf32> to vector<8x512xf32>
    %369 = arith.addf %365, %368 : vector<8x512xf32>
    %370 = arith.mulf %369, %369 : vector<8x512xf32>
    %371 = arith.mulf %369, %370 : vector<8x512xf32>
    %cst_138 = arith.constant 4.471500e-02 : f32
    %372 = vector.broadcast %cst_138 : f32 to vector<8x512xf32>
    %373 = arith.mulf %372, %371 : vector<8x512xf32>
    %374 = arith.addf %369, %373 : vector<8x512xf32>
    %cst_139 = arith.constant 0.797884583 : f32
    %375 = vector.broadcast %cst_139 : f32 to vector<8x512xf32>
    %376 = arith.mulf %375, %374 : vector<8x512xf32>
    %377 = math.tanh %376 : vector<8x512xf32>
    %cst_140 = arith.constant 1.000000e+00 : f32
    %378 = vector.broadcast %cst_140 : f32 to vector<8x512xf32>
    %379 = arith.addf %378, %377 : vector<8x512xf32>
    %cst_141 = arith.constant 5.000000e-01 : f32
    %380 = vector.broadcast %cst_141 : f32 to vector<8x512xf32>
    %381 = arith.mulf %380, %379 : vector<8x512xf32>
    %382 = arith.mulf %369, %381 : vector<8x512xf32>
    %c1_142 = arith.constant 1 : index
    %c0_143 = arith.constant 0 : index
    %c0_144 = arith.constant 0 : index
    %383 = vector.load %arg13[%c1_142, %c0_143, %c0_144] : memref<2x512x128xbf16, #tpu.memory_space<vmem>>, vector<1x512x128xbf16>
    %384 = vector.shape_cast %383 : vector<1x512x128xbf16> to vector<512x128xbf16>
    %385 = arith.truncf %382 : vector<8x512xf32> to vector<8x512xbf16>
    %cst_145 = arith.constant dense<0.000000e+00> : vector<8x128xf32>
    %386 = tpu.matmul %385, %384, %cst_145 {dimension_numbers = #tpu.dot_dimension_numbers<[1], [0], [0], [1], [0, 0, 1, 1], [], []>} : vector<8x512xbf16>, vector<512x128xbf16>, vector<8x128xf32> -> vector<8x128xf32>
    %c1_146 = arith.constant 1 : index
    %c0_147 = arith.constant 0 : index
    %c0_148 = arith.constant 0 : index
    %387 = vector.load %arg14[%c1_146, %c0_147, %c0_148] : memref<2x1x128xf32, #tpu.memory_space<vmem>>, vector<1x1x128xf32>
    %388 = vector.shape_cast %387 : vector<1x1x128xf32> to vector<1x128xf32>
    %389 = vector.broadcast %388 : vector<1x128xf32> to vector<8x128xf32>
    %390 = arith.addf %386, %389 : vector<8x128xf32>
    %391 = arith.addf %390, %361 : vector<8x128xf32>
    %c1_149 = arith.constant 1 : index
    %c0_150 = arith.constant 0 : index
    %c0_151 = arith.constant 0 : index
    %392 = vector.load %arg15[%c1_149, %c0_150, %c0_151] : memref<2x1x128xf32, #tpu.memory_space<vmem>>, vector<1x1x128xf32>
    %393 = vector.shape_cast %392 : vector<1x1x128xf32> to vector<1x128xf32>
    %c1_152 = arith.constant 1 : index
    %c0_153 = arith.constant 0 : index
    %c0_154 = arith.constant 0 : index
    %394 = vector.load %arg16[%c1_152, %c0_153, %c0_154] : memref<2x1x128xf32, #tpu.memory_space<vmem>>, vector<1x1x128xf32>
    %395 = vector.shape_cast %394 : vector<1x1x128xf32> to vector<1x128xf32>
    %cst_155 = arith.constant dense<0.000000e+00> : vector<8xf32>
    %396 = vector.multi_reduction <add>, %391, %cst_155 [1] : vector<8x128xf32> to vector<8xf32>
    %397 = vector.shape_cast %396 : vector<8xf32> to vector<8x1xf32>
    %cst_156 = arith.constant 1.280000e+02 : f32
    %398 = vector.broadcast %cst_156 : f32 to vector<8x1xf32>
    %399 = arith.divf %397, %398 : vector<8x1xf32>
    %400 = vector.broadcast %399 : vector<8x1xf32> to vector<8x128xf32>
    %401 = arith.subf %391, %400 : vector<8x128xf32>
    %402 = arith.mulf %401, %401 : vector<8x128xf32>
    %cst_157 = arith.constant dense<0.000000e+00> : vector<8xf32>
    %403 = vector.multi_reduction <add>, %402, %cst_157 [1] : vector<8x128xf32> to vector<8xf32>
    %404 = vector.shape_cast %403 : vector<8xf32> to vector<8x1xf32>
    %cst_158 = arith.constant 1.280000e+02 : f32
    %405 = vector.broadcast %cst_158 : f32 to vector<8x1xf32>
    %406 = arith.divf %404, %405 : vector<8x1xf32>
    %407 = vector.broadcast %399 : vector<8x1xf32> to vector<8x128xf32>
    %408 = arith.subf %391, %407 : vector<8x128xf32>
    %cst_159 = arith.constant 9.99999996E-13 : f32
    %409 = vector.broadcast %cst_159 : f32 to vector<8x1xf32>
    %410 = arith.addf %406, %409 : vector<8x1xf32>
    %411 = math.rsqrt %410 : vector<8x1xf32>
    %412 = vector.broadcast %411 : vector<8x1xf32> to vector<8x128xf32>
    %413 = arith.mulf %408, %412 : vector<8x128xf32>
    %414 = vector.broadcast %393 : vector<1x128xf32> to vector<8x128xf32>
    %415 = arith.mulf %413, %414 : vector<8x128xf32>
    %416 = vector.broadcast %395 : vector<1x128xf32> to vector<8x128xf32>
    %417 = arith.addf %415, %416 : vector<8x128xf32>
    %418 = vector.extract_strided_slice %417 {offsets = [0, 0], sizes = [1, 128], strides = [1, 1]} : vector<8x128xf32> to vector<1x128xf32>
    %c0_160 = arith.constant 0 : index
    %c0_161 = arith.constant 0 : index
    %419 = vector.load %arg17[%c0_160, %c0_161] : memref<128x128xbf16, #tpu.memory_space<vmem>>, vector<128x128xbf16>
    %420 = arith.truncf %418 : vector<1x128xf32> to vector<1x128xbf16>
    %cst_162 = arith.constant dense<0.000000e+00> : vector<1x128xf32>
    %421 = tpu.matmul %420, %419, %cst_162 {dimension_numbers = #tpu.dot_dimension_numbers<[1], [0], [0], [1], [0, 0, 1, 1], [], []>} : vector<1x128xbf16>, vector<128x128xbf16>, vector<1x128xf32> -> vector<1x128xf32>
    %c0_163 = arith.constant 0 : index
    %c0_164 = arith.constant 0 : index
    %422 = vector.load %arg18[%c0_163, %c0_164] : memref<1x128xf32, #tpu.memory_space<vmem>>, vector<1x128xf32>
    %423 = arith.addf %421, %422 : vector<1x128xf32>
    %424 = math.tanh %423 : vector<1x128xf32>
    %c0_165 = arith.constant 0 : index
    %c0_166 = arith.constant 0 : index
    %425 = vector.load %arg19[%c0_165, %c0_166] : memref<128x128xbf16, #tpu.memory_space<vmem>>, vector<128x128xbf16>
    %426 = arith.truncf %424 : vector<1x128xf32> to vector<1x128xbf16>
    %cst_167 = arith.constant dense<0.000000e+00> : vector<1x128xf32>
    %427 = tpu.matmul %426, %425, %cst_167 {dimension_numbers = #tpu.dot_dimension_numbers<[1], [0], [0], [1], [0, 0, 1, 1], [], []>} : vector<1x128xbf16>, vector<128x128xbf16>, vector<1x128xf32> -> vector<1x128xf32>
    %c0_168 = arith.constant 0 : index
    %c0_169 = arith.constant 0 : index
    %428 = vector.load %arg20[%c0_168, %c0_169] : memref<1x128xf32, #tpu.memory_space<vmem>>, vector<1x128xf32>
    %429 = arith.addf %427, %428 : vector<1x128xf32>
    %c0_170 = arith.constant 0 : index
    %c0_171 = arith.constant 0 : index
    %c0_172 = arith.constant 0 : index
    %430 = vector.load %arg21[%c0_170, %c0_171, %c0_172] : memref<1x1x128xf32, #tpu.memory_space<vmem>>, vector<1x1x128xf32>
    %431 = vector.shape_cast %430 : vector<1x1x128xf32> to vector<1x128xf32>
    %432 = vector.shape_cast %429 : vector<1x128xf32> to vector<1x1x128xf32>
    tpu.vector_store %arg21[%c0_170, %c0_171, %c0_172], %432 {strides = array<i32>} : memref<1x1x128xf32, #tpu.memory_space<vmem>>, vector<1x1x128xf32>,
    return
  }
  func.func @transform_0(%arg0: i32) -> (i32, i32, i32) {
    %c0_i32 = arith.constant 0 : i32
    %c0_i32_0 = arith.constant 0 : i32
    %c0_i32_1 = arith.constant 0 : i32
    return %arg0, %c0_i32, %c0_i32_0 : i32, i32, i32
  }
  func.func @transform_1(%arg0: i32) -> (i32, i32, i32) {
    %c0_i32 = arith.constant 0 : i32
    %c0_i32_0 = arith.constant 0 : i32
    %c0_i32_1 = arith.constant 0 : i32
    return %arg0, %c0_i32, %c0_i32_0 : i32, i32, i32
  }
  func.func @transform_2(%arg0: i32) -> (i32, i32) {
    %c0_i32 = arith.constant 0 : i32
    %c0_i32_0 = arith.constant 0 : i32
    %c0_i32_1 = arith.constant 0 : i32
    return %c0_i32, %c0_i32_0 : i32, i32
  }
  func.func @transform_3(%arg0: i32) -> (i32, i32) {
    %c0_i32 = arith.constant 0 : i32
    %c0_i32_0 = arith.constant 0 : i32
    %c0_i32_1 = arith.constant 0 : i32
    return %c0_i32, %c0_i32_0 : i32, i32
  }
  func.func @transform_4(%arg0: i32) -> (i32, i32, i32) {
    %c0_i32 = arith.constant 0 : i32
    %c0_i32_0 = arith.constant 0 : i32
    %c0_i32_1 = arith.constant 0 : i32
    %c0_i32_2 = arith.constant 0 : i32
    return %c0_i32, %c0_i32_0, %c0_i32_1 : i32, i32, i32
  }
  func.func @transform_5(%arg0: i32) -> (i32, i32, i32) {
    %c0_i32 = arith.constant 0 : i32
    %c0_i32_0 = arith.constant 0 : i32
    %c0_i32_1 = arith.constant 0 : i32
    %c0_i32_2 = arith.constant 0 : i32
    return %c0_i32, %c0_i32_0, %c0_i32_1 : i32, i32, i32
  }
  func.func @transform_6(%arg0: i32) -> (i32, i32, i32) {
    %c0_i32 = arith.constant 0 : i32
    %c0_i32_0 = arith.constant 0 : i32
    %c0_i32_1 = arith.constant 0 : i32
    %c0_i32_2 = arith.constant 0 : i32
    return %c0_i32, %c0_i32_0, %c0_i32_1 : i32, i32, i32
  }
  func.func @transform_7(%arg0: i32) -> (i32, i32, i32) {
    %c0_i32 = arith.constant 0 : i32
    %c0_i32_0 = arith.constant 0 : i32
    %c0_i32_1 = arith.constant 0 : i32
    %c0_i32_2 = arith.constant 0 : i32
    return %c0_i32, %c0_i32_0, %c0_i32_1 : i32, i32, i32
  }
  func.func @transform_8(%arg0: i32) -> (i32, i32, i32) {
    %c0_i32 = arith.constant 0 : i32
    %c0_i32_0 = arith.constant 0 : i32
    %c0_i32_1 = arith.constant 0 : i32
    %c0_i32_2 = arith.constant 0 : i32
    return %c0_i32, %c0_i32_0, %c0_i32_1 : i32, i32, i32
  }
  func.func @transform_9(%arg0: i32) -> (i32, i32, i32) {
    %c0_i32 = arith.constant 0 : i32
    %c0_i32_0 = arith.constant 0 : i32
    %c0_i32_1 = arith.constant 0 : i32
    %c0_i32_2 = arith.constant 0 : i32
    return %c0_i32, %c0_i32_0, %c0_i32_1 : i32, i32, i32
  }
  func.func @transform_10(%arg0: i32) -> (i32, i32, i32) {
    %c0_i32 = arith.constant 0 : i32
    %c0_i32_0 = arith.constant 0 : i32
    %c0_i32_1 = arith.constant 0 : i32
    %c0_i32_2 = arith.constant 0 : i32
    return %c0_i32, %c0_i32_0, %c0_i32_1 : i32, i32, i32
  }
  func.func @transform_11(%arg0: i32) -> (i32, i32, i32) {
    %c0_i32 = arith.constant 0 : i32
    %c0_i32_0 = arith.constant 0 : i32
    %c0_i32_1 = arith.constant 0 : i32
    %c0_i32_2 = arith.constant 0 : i32
    return %c0_i32, %c0_i32_0, %c0_i32_1 : i32, i32, i32
  }
  func.func @transform_12(%arg0: i32) -> (i32, i32, i32) {
    %c0_i32 = arith.constant 0 : i32
    %c0_i32_0 = arith.constant 0 : i32
    %c0_i32_1 = arith.constant 0 : i32
    %c0_i32_2 = arith.constant 0 : i32
    return %c0_i32, %c0_i32_0, %c0_i32_1 : i32, i32, i32
  }
  func.func @transform_13(%arg0: i32) -> (i32, i32, i32) {
    %c0_i32 = arith.constant 0 : i32
    %c0_i32_0 = arith.constant 0 : i32
    %c0_i32_1 = arith.constant 0 : i32
    %c0_i32_2 = arith.constant 0 : i32
    return %c0_i32, %c0_i32_0, %c0_i32_1 : i32, i32, i32
  }
  func.func @transform_14(%arg0: i32) -> (i32, i32, i32) {
    %c0_i32 = arith.constant 0 : i32
    %c0_i32_0 = arith.constant 0 : i32
    %c0_i32_1 = arith.constant 0 : i32
    %c0_i32_2 = arith.constant 0 : i32
    return %c0_i32, %c0_i32_0, %c0_i32_1 : i32, i32, i32
  }
  func.func @transform_15(%arg0: i32) -> (i32, i32, i32) {
    %c0_i32 = arith.constant 0 : i32
    %c0_i32_0 = arith.constant 0 : i32
    %c0_i32_1 = arith.constant 0 : i32
    %c0_i32_2 = arith.constant 0 : i32
    return %c0_i32, %c0_i32_0, %c0_i32_1 : i32, i32, i32
  }
  func.func @transform_16(%arg0: i32) -> (i32, i32) {
    %c0_i32 = arith.constant 0 : i32
    %c0_i32_0 = arith.constant 0 : i32
    %c0_i32_1 = arith.constant 0 : i32
    return %c0_i32, %c0_i32_0 : i32, i32
  }
  func.func @transform_17(%arg0: i32) -> (i32, i32) {
    %c0_i32 = arith.constant 0 : i32
    %c0_i32_0 = arith.constant 0 : i32
    %c0_i32_1 = arith.constant 0 : i32
    return %c0_i32, %c0_i32_0 : i32, i32
  }
  func.func @transform_18(%arg0: i32) -> (i32, i32) {
    %c0_i32 = arith.constant 0 : i32
    %c0_i32_0 = arith.constant 0 : i32
    %c0_i32_1 = arith.constant 0 : i32
    return %c0_i32, %c0_i32_0 : i32, i32
  }
  func.func @transform_19(%arg0: i32) -> (i32, i32) {
    %c0_i32 = arith.constant 0 : i32
    %c0_i32_0 = arith.constant 0 : i32
    %c0_i32_1 = arith.constant 0 : i32
    return %c0_i32, %c0_i32_0 : i32, i32
  }
  func.func @transform_20(%arg0: i32) -> (i32, i32, i32) {
    %c0_i32 = arith.constant 0 : i32
    %c0_i32_0 = arith.constant 0 : i32
    %c0_i32_1 = arith.constant 0 : i32
    return %arg0, %c0_i32, %c0_i32_0 : i32, i32, i32
  }
}

</mosaic_0001>

<llo_original>
// kernel: bert_base_uncased_forward.1
$region0: #{bert_base_uncased_forward.1}
  #allocation0 [shape = 'u32[]', space=smem, size = 0x4, offset = 0x4, fixed_abs, tag = 'smem constant byte address 0x4 - core index']
  #allocation1 [shape = 'u32[144,128]{1,0:T(1,128)}', space=vmem, size = 0x12000, scoped, tag = 'internal scratch']
  %s0 = inlined_call_operand.vmem [shape: f32[2,8,128], index: 0, kind: input, shape index: {}]
  %s1 = inlined_call_operand.vmem [shape: f32[2,1,8], index: 1, kind: input, shape index: {}]
  %s2 = inlined_call_operand.vmem [shape: f32[1,128], index: 2, kind: input, shape index: {}]
  %s3 = inlined_call_operand.vmem [shape: f32[1,128], index: 3, kind: input, shape index: {}]
  %s4 = inlined_call_operand.hbm [shape: bf16[2,128,384], index: 4, kind: input, shape index: {}]
  %s5 = inlined_call_operand.vmem [shape: f32[2,1,384], index: 5, kind: input, shape index: {}]
  %s6 = inlined_call_operand.vmem [shape: bf16[2,128,128], index: 6, kind: input, shape index: {}]
  %s7 = inlined_call_operand.vmem [shape: f32[2,1,128], index: 7, kind: input, shape index: {}]
  %s8 = inlined_call_operand.vmem [shape: f32[2,1,128], index: 8, kind: input, shape index: {}]
  %s9 = inlined_call_operand.vmem [shape: f32[2,1,128], index: 9, kind: input, shape index: {}]
  %s10 = inlined_call_operand.hbm [shape: bf16[2,128,512], index: 10, kind: input, shape index: {}]
  %s11 = inlined_call_operand.vmem [shape: f32[2,1,512], index: 11, kind: input, shape index: {}]
  %s12 = inlined_call_operand.hbm [shape: bf16[2,512,128], index: 12, kind: input, shape index: {}]
  %s13 = inlined_call_operand.vmem [shape: f32[2,1,128], index: 13, kind: input, shape index: {}]
  %s14 = inlined_call_operand.vmem [shape: f32[2,1,128], index: 14, kind: input, shape index: {}]
  %s15 = inlined_call_operand.vmem [shape: f32[2,1,128], index: 15, kind: input, shape index: {}]
  %s16 = inlined_call_operand.vmem [shape: bf16[128,128], index: 16, kind: input, shape index: {}]
  %s17 = inlined_call_operand.vmem [shape: f32[1,128], index: 17, kind: input, shape index: {}]
  %s18 = inlined_call_operand.vmem [shape: bf16[128,128], index: 18, kind: input, shape index: {}]
  %s19 = inlined_call_operand.vmem [shape: f32[1,128], index: 19, kind: input, shape index: {}]
  %s20 = inlined_call_operand.vmem [shape: f32[2,1,128], index: 20, kind: output, shape index: {}]
  %s21 = sld [smem:[#allocation0]]
  $region125: #{bert_base_uncased_forward.1} parent=0
    _
  %s23 = ssub.s32 1, %s21
  %s24 = scalar_select 0, %s23, %s21
  $region1: #{bert_base_uncased_forward.1} parent=0
    #allocation2 [shape = 'u8[196608]{0}', space=vmem, size = 0x30000, scoped, tag = 'input window, operand 4, single buffered']
    #allocation3 [shape = 's32[2]{0}', space=sflag, size = 0x8, scoped, tag = 'scoped memory for bert_base_uncased_forward.1']
    #allocation4 [shape = 'u8[262144]{0}', space=vmem, size = 0x40000, scoped, tag = 'input window, operand 10, single buffered']
    #allocation5 [shape = 's32[1]{0}', space=sflag, size = 0x4, scoped, tag = 'scoped memory for bert_base_uncased_forward.1']
    #allocation6 [shape = 'u8[262144]{0}', space=vmem, size = 0x40000, scoped, tag = 'input window, operand 12, single buffered']
    %25 = vsyncpa [#allocation3], 0
    %26 = vsyncpa [#allocation5], 0
    loop: start=0, step=1, limit=4
    $region2: #{bert_base_uncased_forward.1} parent=1 // loop_pre_header
      _
    $region3: #{bert_base_uncased_forward.1} parent=1 // loop_header
      %s28 = sphi 0, %s32
      %p29 = scmp.ge.s32.totalorder %s28, 4
      %s38 = sphi 0, %s40
      %s41 = sphi 0, %s38
      %s42 = sphi 0, %s41
      %s58 = sphi 0, %s42
      %s64 = sphi 0, %s66
      %s67 = sphi 0, %s64
      %s68 = sphi 0, %s67
      %s84 = sphi 0, %s68
      %s88 = sphi 0, %s88
      %s90 = sphi 0, %s88
      %s91 = sphi 0, %s90
      %s105 = sphi 0, %s91
      %s109 = sphi 0, %s109
      %s111 = sphi 0, %s109
      %s112 = sphi 0, %s111
      %s126 = sphi 0, %s112
      %s130 = sphi 0, %s130
      %s132 = sphi 0, %s130
      %s133 = sphi 0, %s132
      %s147 = sphi 0, %s133
      %s151 = sphi 0, %s151
      %s153 = sphi 0, %s151
      %s154 = sphi 0, %s153
      %s168 = sphi 0, %s154
      %s172 = sphi 0, %s172
      %s174 = sphi 0, %s172
      %s175 = sphi 0, %s174
      %s189 = sphi 0, %s175
      %s193 = sphi 0, %s193
      %s195 = sphi 0, %s193
      %s196 = sphi 0, %s195
      %s210 = sphi 0, %s196
      %s214 = sphi 0, %s214
      %s216 = sphi 0, %s214
      %s217 = sphi 0, %s216
      %s231 = sphi 0, %s217
      %s235 = sphi 0, %s235
      %s237 = sphi 0, %s235
      %s238 = sphi 0, %s237
      %s252 = sphi 0, %s238
      %s256 = sphi 0, %s256
      %s258 = sphi 0, %s256
      %s259 = sphi 0, %s258
      %s273 = sphi 0, %s259
      %s277 = sphi 0, %s277
      %s279 = sphi 0, %s277
      %s280 = sphi 0, %s279
      %s294 = sphi 0, %s280
      %s298 = sphi 0, %s298
      %s300 = sphi 0, %s298
      %s301 = sphi 0, %s300
      %s315 = sphi 0, %s301
      %s319 = sphi 0, %s319
      %s321 = sphi 0, %s319
      %s322 = sphi 0, %s321
      %s336 = sphi 0, %s322
      %s340 = sphi 0, %s340
      %s342 = sphi 0, %s340
      %s343 = sphi 0, %s342
      %s357 = sphi 0, %s343
      %s361 = sphi 0, %s361
      %s363 = sphi 0, %s361
      %s364 = sphi 0, %s363
      %s378 = sphi 0, %s364
      %s382 = sphi 0, %s382
      %s384 = sphi 0, %s382
      %s385 = sphi 0, %s384
      %s399 = sphi 0, %s385
      %s403 = sphi 0, %s403
      %s405 = sphi 0, %s403
      %s406 = sphi 0, %s405
      %s420 = sphi 0, %s406
      %s424 = sphi 0, %s424
      %s426 = sphi 0, %s424
      %s427 = sphi 0, %s426
      %s441 = sphi 0, %s427
      %s445 = sphi 0, %s445
      %s447 = sphi 0, %s445
      %s448 = sphi 0, %s447
      %s462 = sphi 0, %s448
      %s468 = sphi 0, %s470
      %s471 = sphi 0, %s468
      %s472 = sphi 0, %s471
      %s488 = sphi 0, %s472
    $region4: #{bert_base_uncased_forward.1} parent=1 // loop_header_branch
      %31 = sbr.rel (%p29) target = $region8
    $region5: #{bert_base_uncased_forward.1} parent=1 // loop_body
      %s33 = ssub.s32 %s28, 1
      %s34 = ssub.s32 %s28, 2
      %s35 = sadd.s32 %s28, 1
      %s36 = ssub.s32 %s28, %s35
      %p37 = scmp.eq.s32.totalorder %s36, 0
      %s39 = sadd.s32 %s38, 1
      %s40 = scalar_select %p37, %s38, %s39
      %p43 = pneg %p37
      %p44 = scmp.eq.s32.totalorder %s28, 1
      %p45 = por %p43, %p44
      %p46 = scmp.ne.s32.totalorder %s38, %s41
      %p47 = scmp.eq.s32.totalorder %s28, 0
      %p48 = por %p46, %p47
      %p49 = scmp.ne.s32.totalorder %s38, %s41
      %p50 = scmp.eq.s32.totalorder %s33, 1
      %p51 = por %p49, %p50
      %p52 = scmp.ne.s32.totalorder %s41, %s42
      %p53 = scmp.eq.s32.totalorder %s33, 0
      %p54 = por %p52, %p53
      %p55 = scmp.ne.s32.totalorder %s41, %s42
      %p56 = scmp.eq.s32.totalorder %s34, 1
      %p57 = por %p55, %p56
      %p59 = scmp.ne.s32.totalorder %s42, %s58
      %p60 = scmp.eq.s32.totalorder %s34, 0
      %p61 = por %p59, %p60
      %s62 = ssub.s32 %s28, %s35
      %p63 = scmp.eq.s32.totalorder %s62, 0
      %s65 = sadd.s32 %s64, 1
      %s66 = scalar_select %p63, %s64, %s65
      %p69 = pneg %p63
      %p70 = scmp.eq.s32.totalorder %s28, 1
      %p71 = por %p69, %p70
      %p72 = scmp.ne.s32.totalorder %s64, %s67
      %p73 = scmp.eq.s32.totalorder %s28, 0
      %p74 = por %p72, %p73
      %p75 = scmp.ne.s32.totalorder %s64, %s67
      %p76 = scmp.eq.s32.totalorder %s33, 1
      %p77 = por %p75, %p76
      %p78 = scmp.ne.s32.totalorder %s67, %s68
      %p79 = scmp.eq.s32.totalorder %s33, 0
      %p80 = por %p78, %p79
      %p81 = scmp.ne.s32.totalorder %s67, %s68
      %p82 = scmp.eq.s32.totalorder %s34, 1
      %p83 = por %p81, %p82
      %p85 = scmp.ne.s32.totalorder %s68, %s84
      %p86 = scmp.eq.s32.totalorder %s34, 0
      %p87 = por %p85, %p86
      %s89 = sadd.s32 %s88, 1
      %p92 = scmp.eq.s32.totalorder %s28, 1
      %p93 = scmp.ne.s32.totalorder %s88, %s90
      %p94 = scmp.eq.s32.totalorder %s28, 0
      %p95 = por %p93, %p94
      %p96 = scmp.ne.s32.totalorder %s88, %s90
      %p97 = scmp.eq.s32.totalorder %s33, 1
      %p98 = por %p96, %p97
      %p99 = scmp.ne.s32.totalorder %s90, %s91
      %p100 = scmp.eq.s32.totalorder %s33, 0
      %p101 = por %p99, %p100
      %p102 = scmp.ne.s32.totalorder %s90, %s91
      %p103 = scmp.eq.s32.totalorder %s34, 1
      %p104 = por %p102, %p103
      %p106 = scmp.ne.s32.totalorder %s91, %s105
      %p107 = scmp.eq.s32.totalorder %s34, 0
      %p108 = por %p106, %p107
      %s110 = sadd.s32 %s109, 1
      %p113 = scmp.eq.s32.totalorder %s28, 1
      %p114 = scmp.ne.s32.totalorder %s109, %s111
      %p115 = scmp.eq.s32.totalorder %s28, 0
      %p116 = por %p114, %p115
      %p117 = scmp.ne.s32.totalorder %s109, %s111
      %p118 = scmp.eq.s32.totalorder %s33, 1
      %p119 = por %p117, %p118
      %p120 = scmp.ne.s32.totalorder %s111, %s112
      %p121 = scmp.eq.s32.totalorder %s33, 0
      %p122 = por %p120, %p121
      %p123 = scmp.ne.s32.totalorder %s111, %s112
      %p124 = scmp.eq.s32.totalorder %s34, 1
      %p125 = por %p123, %p124
      %p127 = scmp.ne.s32.totalorder %s112, %s126
      %p128 = scmp.eq.s32.totalorder %s34, 0
      %p129 = por %p127, %p128
      %s131 = sadd.s32 %s130, 1
      %p134 = scmp.eq.s32.totalorder %s28, 1
      %p135 = scmp.ne.s32.totalorder %s130, %s132
      %p136 = scmp.eq.s32.totalorder %s28, 0
      %p137 = por %p135, %p136
      %p138 = scmp.ne.s32.totalorder %s130, %s132
      %p139 = scmp.eq.s32.totalorder %s33, 1
      %p140 = por %p138, %p139
      %p141 = scmp.ne.s32.totalorder %s132, %s133
      %p142 = scmp.eq.s32.totalorder %s33, 0
      %p143 = por %p141, %p142
      %p144 = scmp.ne.s32.totalorder %s132, %s133
      %p145 = scmp.eq.s32.totalorder %s34, 1
      %p146 = por %p144, %p145
      %p148 = scmp.ne.s32.totalorder %s133, %s147
      %p149 = scmp.eq.s32.totalorder %s34, 0
      %p150 = por %p148, %p149
      %s152 = sadd.s32 %s151, 1
      %p155 = scmp.eq.s32.totalorder %s28, 1
      %p156 = scmp.ne.s32.totalorder %s151, %s153
      %p157 = scmp.eq.s32.totalorder %s28, 0
      %p158 = por %p156, %p157
      %p159 = scmp.ne.s32.totalorder %s151, %s153
      %p160 = scmp.eq.s32.totalorder %s33, 1
      %p161 = por %p159, %p160
      %p162 = scmp.ne.s32.totalorder %s153, %s154
      %p163 = scmp.eq.s32.totalorder %s33, 0
      %p164 = por %p162, %p163
      %p165 = scmp.ne.s32.totalorder %s153, %s154
      %p166 = scmp.eq.s32.totalorder %s34, 1
      %p167 = por %p165, %p166
      %p169 = scmp.ne.s32.totalorder %s154, %s168
      %p170 = scmp.eq.s32.totalorder %s34, 0
      %p171 = por %p169, %p170
      %s173 = sadd.s32 %s172, 1
      %p176 = scmp.eq.s32.totalorder %s28, 1
      %p177 = scmp.ne.s32.totalorder %s172, %s174
      %p178 = scmp.eq.s32.totalorder %s28, 0
      %p179 = por %p177, %p178
      %p180 = scmp.ne.s32.totalorder %s172, %s174
      %p181 = scmp.eq.s32.totalorder %s33, 1
      %p182 = por %p180, %p181
      %p183 = scmp.ne.s32.totalorder %s174, %s175
      %p184 = scmp.eq.s32.totalorder %s33, 0
      %p185 = por %p183, %p184
      %p186 = scmp.ne.s32.totalorder %s174, %s175
      %p187 = scmp.eq.s32.totalorder %s34, 1
      %p188 = por %p186, %p187
      %p190 = scmp.ne.s32.totalorder %s175, %s189
      %p191 = scmp.eq.s32.totalorder %s34, 0
      %p192 = por %p190, %p191
      %s194 = sadd.s32 %s193, 1
      %p197 = scmp.eq.s32.totalorder %s28, 1
      %p198 = scmp.ne.s32.totalorder %s193, %s195
      %p199 = scmp.eq.s32.totalorder %s28, 0
      %p200 = por %p198, %p199
      %p201 = scmp.ne.s32.totalorder %s193, %s195
      %p202 = scmp.eq.s32.totalorder %s33, 1
      %p203 = por %p201, %p202
      %p204 = scmp.ne.s32.totalorder %s195, %s196
      %p205 = scmp.eq.s32.totalorder %s33, 0
      %p206 = por %p204, %p205
      %p207 = scmp.ne.s32.totalorder %s195, %s196
      %p208 = scmp.eq.s32.totalorder %s34, 1
      %p209 = por %p207, %p208
      %p211 = scmp.ne.s32.totalorder %s196, %s210
      %p212 = scmp.eq.s32.totalorder %s34, 0
      %p213 = por %p211, %p212
      %s215 = sadd.s32 %s214, 1
      %p218 = scmp.eq.s32.totalorder %s28, 1
      %p219 = scmp.ne.s32.totalorder %s214, %s216
      %p220 = scmp.eq.s32.totalorder %s28, 0
      %p221 = por %p219, %p220
      %p222 = scmp.ne.s32.totalorder %s214, %s216
      %p223 = scmp.eq.s32.totalorder %s33, 1
      %p224 = por %p222, %p223
      %p225 = scmp.ne.s32.totalorder %s216, %s217
      %p226 = scmp.eq.s32.totalorder %s33, 0
      %p227 = por %p225, %p226
      %p228 = scmp.ne.s32.totalorder %s216, %s217
      %p229 = scmp.eq.s32.totalorder %s34, 1
      %p230 = por %p228, %p229
      %p232 = scmp.ne.s32.totalorder %s217, %s231
      %p233 = scmp.eq.s32.totalorder %s34, 0
      %p234 = por %p232, %p233
      %s236 = sadd.s32 %s235, 1
      %p239 = scmp.eq.s32.totalorder %s28, 1
      %p240 = scmp.ne.s32.totalorder %s235, %s237
      %p241 = scmp.eq.s32.totalorder %s28, 0
      %p242 = por %p240, %p241
      %p243 = scmp.ne.s32.totalorder %s235, %s237
      %p244 = scmp.eq.s32.totalorder %s33, 1
      %p245 = por %p243, %p244
      %p246 = scmp.ne.s32.totalorder %s237, %s238
      %p247 = scmp.eq.s32.totalorder %s33, 0
      %p248 = por %p246, %p247
      %p249 = scmp.ne.s32.totalorder %s237, %s238
      %p250 = scmp.eq.s32.totalorder %s34, 1
      %p251 = por %p249, %p250
      %p253 = scmp.ne.s32.totalorder %s238, %s252
      %p254 = scmp.eq.s32.totalorder %s34, 0
      %p255 = por %p253, %p254
      %s257 = sadd.s32 %s256, 1
      %p260 = scmp.eq.s32.totalorder %s28, 1
      %p261 = scmp.ne.s32.totalorder %s256, %s258
      %p262 = scmp.eq.s32.totalorder %s28, 0
      %p263 = por %p261, %p262
      %p264 = scmp.ne.s32.totalorder %s256, %s258
      %p265 = scmp.eq.s32.totalorder %s33, 1
      %p266 = por %p264, %p265
      %p267 = scmp.ne.s32.totalorder %s258, %s259
      %p268 = scmp.eq.s32.totalorder %s33, 0
      %p269 = por %p267, %p268
      %p270 = scmp.ne.s32.totalorder %s258, %s259
      %p271 = scmp.eq.s32.totalorder %s34, 1
      %p272 = por %p270, %p271
      %p274 = scmp.ne.s32.totalorder %s259, %s273
      %p275 = scmp.eq.s32.totalorder %s34, 0
      %p276 = por %p274, %p275
      %s278 = sadd.s32 %s277, 1
      %p281 = scmp.eq.s32.totalorder %s28, 1
      %p282 = scmp.ne.s32.totalorder %s277, %s279
      %p283 = scmp.eq.s32.totalorder %s28, 0
      %p284 = por %p282, %p283
      %p285 = scmp.ne.s32.totalorder %s277, %s279
      %p286 = scmp.eq.s32.totalorder %s33, 1
      %p287 = por %p285, %p286
      %p288 = scmp.ne.s32.totalorder %s279, %s280
      %p289 = scmp.eq.s32.totalorder %s33, 0
      %p290 = por %p288, %p289
      %p291 = scmp.ne.s32.totalorder %s279, %s280
      %p292 = scmp.eq.s32.totalorder %s34, 1
      %p293 = por %p291, %p292
      %p295 = scmp.ne.s32.totalorder %s280, %s294
      %p296 = scmp.eq.s32.totalorder %s34, 0
      %p297 = por %p295, %p296
      %s299 = sadd.s32 %s298, 1
      %p302 = scmp.eq.s32.totalorder %s28, 1
      %p303 = scmp.ne.s32.totalorder %s298, %s300
      %p304 = scmp.eq.s32.totalorder %s28, 0
      %p305 = por %p303, %p304
      %p306 = scmp.ne.s32.totalorder %s298, %s300
      %p307 = scmp.eq.s32.totalorder %s33, 1
      %p308 = por %p306, %p307
      %p309 = scmp.ne.s32.totalorder %s300, %s301
      %p310 = scmp.eq.s32.totalorder %s33, 0
      %p311 = por %p309, %p310
      %p312 = scmp.ne.s32.totalorder %s300, %s301
      %p313 = scmp.eq.s32.totalorder %s34, 1
      %p314 = por %p312, %p313
      %p316 = scmp.ne.s32.totalorder %s301, %s315
      %p317 = scmp.eq.s32.totalorder %s34, 0
      %p318 = por %p316, %p317
      %s320 = sadd.s32 %s319, 1
      %p323 = scmp.eq.s32.totalorder %s28, 1
      %p324 = scmp.ne.s32.totalorder %s319, %s321
      %p325 = scmp.eq.s32.totalorder %s28, 0
      %p326 = por %p324, %p325
      %p327 = scmp.ne.s32.totalorder %s319, %s321
      %p328 = scmp.eq.s32.totalorder %s33, 1
      %p329 = por %p327, %p328
      %p330 = scmp.ne.s32.totalorder %s321, %s322
      %p331 = scmp.eq.s32.totalorder %s33, 0
      %p332 = por %p330, %p331
      %p333 = scmp.ne.s32.totalorder %s321, %s322
      %p334 = scmp.eq.s32.totalorder %s34, 1
      %p335 = por %p333, %p334
      %p337 = scmp.ne.s32.totalorder %s322, %s336
      %p338 = scmp.eq.s32.totalorder %s34, 0
      %p339 = por %p337, %p338
      %s341 = sadd.s32 %s340, 1
      %p344 = scmp.eq.s32.totalorder %s28, 1
      %p345 = scmp.ne.s32.totalorder %s340, %s342
      %p346 = scmp.eq.s32.totalorder %s28, 0
      %p347 = por %p345, %p346
      %p348 = scmp.ne.s32.totalorder %s340, %s342
      %p349 = scmp.eq.s32.totalorder %s33, 1
      %p350 = por %p348, %p349
      %p351 = scmp.ne.s32.totalorder %s342, %s343
      %p352 = scmp.eq.s32.totalorder %s33, 0
      %p353 = por %p351, %p352
      %p354 = scmp.ne.s32.totalorder %s342, %s343
      %p355 = scmp.eq.s32.totalorder %s34, 1
      %p356 = por %p354, %p355
      %p358 = scmp.ne.s32.totalorder %s343, %s357
      %p359 = scmp.eq.s32.totalorder %s34, 0
      %p360 = por %p358, %p359
      %s362 = sadd.s32 %s361, 1
      %p365 = scmp.eq.s32.totalorder %s28, 1
      %p366 = scmp.ne.s32.totalorder %s361, %s363
      %p367 = scmp.eq.s32.totalorder %s28, 0
      %p368 = por %p366, %p367
      %p369 = scmp.ne.s32.totalorder %s361, %s363
      %p370 = scmp.eq.s32.totalorder %s33, 1
      %p371 = por %p369, %p370
      %p372 = scmp.ne.s32.totalorder %s363, %s364
      %p373 = scmp.eq.s32.totalorder %s33, 0
      %p374 = por %p372, %p373
      %p375 = scmp.ne.s32.totalorder %s363, %s364
      %p376 = scmp.eq.s32.totalorder %s34, 1
      %p377 = por %p375, %p376
      %p379 = scmp.ne.s32.totalorder %s364, %s378
      %p380 = scmp.eq.s32.totalorder %s34, 0
      %p381 = por %p379, %p380
      %s383 = sadd.s32 %s382, 1
      %p386 = scmp.eq.s32.totalorder %s28, 1
      %p387 = scmp.ne.s32.totalorder %s382, %s384
      %p388 = scmp.eq.s32.totalorder %s28, 0
      %p389 = por %p387, %p388
      %p390 = scmp.ne.s32.totalorder %s382, %s384
      %p391 = scmp.eq.s32.totalorder %s33, 1
      %p392 = por %p390, %p391
      %p393 = scmp.ne.s32.totalorder %s384, %s385
      %p394 = scmp.eq.s32.totalorder %s33, 0
      %p395 = por %p393, %p394
      %p396 = scmp.ne.s32.totalorder %s384, %s385
      %p397 = scmp.eq.s32.totalorder %s34, 1
      %p398 = por %p396, %p397
      %p400 = scmp.ne.s32.totalorder %s385, %s399
      %p401 = scmp.eq.s32.totalorder %s34, 0
      %p402 = por %p400, %p401
      %s404 = sadd.s32 %s403, 1
      %p407 = scmp.eq.s32.totalorder %s28, 1
      %p408 = scmp.ne.s32.totalorder %s403, %s405
      %p409 = scmp.eq.s32.totalorder %s28, 0
      %p410 = por %p408, %p409
      %p411 = scmp.ne.s32.totalorder %s403, %s405
      %p412 = scmp.eq.s32.totalorder %s33, 1
      %p413 = por %p411, %p412
      %p414 = scmp.ne.s32.totalorder %s405, %s406
      %p415 = scmp.eq.s32.totalorder %s33, 0
      %p416 = por %p414, %p415
      %p417 = scmp.ne.s32.totalorder %s405, %s406
      %p418 = scmp.eq.s32.totalorder %s34, 1
      %p419 = por %p417, %p418
      %p421 = scmp.ne.s32.totalorder %s406, %s420
      %p422 = scmp.eq.s32.totalorder %s34, 0
      %p423 = por %p421, %p422
      %s425 = sadd.s32 %s424, 1
      %p428 = scmp.eq.s32.totalorder %s28, 1
      %p429 = scmp.ne.s32.totalorder %s424, %s426
      %p430 = scmp.eq.s32.totalorder %s28, 0
      %p431 = por %p429, %p430
      %p432 = scmp.ne.s32.totalorder %s424, %s426
      %p433 = scmp.eq.s32.totalorder %s33, 1
      %p434 = por %p432, %p433
      %p435 = scmp.ne.s32.totalorder %s426, %s427
      %p436 = scmp.eq.s32.totalorder %s33, 0
      %p437 = por %p435, %p436
      %p438 = scmp.ne.s32.totalorder %s426, %s427
      %p439 = scmp.eq.s32.totalorder %s34, 1
      %p440 = por %p438, %p439
      %p442 = scmp.ne.s32.totalorder %s427, %s441
      %p443 = scmp.eq.s32.totalorder %s34, 0
      %p444 = por %p442, %p443
      %s446 = sadd.s32 %s445, 1
      %p449 = scmp.eq.s32.totalorder %s28, 1
      %p450 = scmp.ne.s32.totalorder %s445, %s447
      %p451 = scmp.eq.s32.totalorder %s28, 0
      %p452 = por %p450, %p451
      %p453 = scmp.ne.s32.totalorder %s445, %s447
      %p454 = scmp.eq.s32.totalorder %s33, 1
      %p455 = por %p453, %p454
      %p456 = scmp.ne.s32.totalorder %s447, %s448
      %p457 = scmp.eq.s32.totalorder %s33, 0
      %p458 = por %p456, %p457
      %p459 = scmp.ne.s32.totalorder %s447, %s448
      %p460 = scmp.eq.s32.totalorder %s34, 1
      %p461 = por %p459, %p460
      %p463 = scmp.ne.s32.totalorder %s448, %s462
      %p464 = scmp.eq.s32.totalorder %s34, 0
      %p465 = por %p463, %p464
      %s466 = ssub.s32 %s28, %s35
      %p467 = scmp.eq.s32.totalorder %s466, 0
      %s469 = sadd.s32 %s468, 1
      %s470 = scalar_select %p467, %s468, %s469
      %p473 = pneg %p467
      %p474 = scmp.eq.s32.totalorder %s28, 1
      %p475 = por %p473, %p474
      %p476 = scmp.ne.s32.totalorder %s468, %s471
      %p477 = scmp.eq.s32.totalorder %s28, 0
      %p478 = por %p476, %p477
      %p479 = scmp.ne.s32.totalorder %s468, %s471
      %p480 = scmp.eq.s32.totalorder %s33, 1
      %p481 = por %p479, %p480
      %p482 = scmp.ne.s32.totalorder %s471, %s472
      %p483 = scmp.eq.s32.totalorder %s33, 0
      %p484 = por %p482, %p483
      %p485 = scmp.ne.s32.totalorder %s471, %s472
      %p486 = scmp.eq.s32.totalorder %s34, 1
      %p487 = por %p485, %p486
      %p489 = scmp.ne.s32.totalorder %s472, %s488
      %p490 = scmp.eq.s32.totalorder %s34, 0
      %p491 = por %p489, %p490
      %p492 = scmp.le.s32.totalorder 1, %s28
      %p493 = scmp.lt.s32.totalorder %s28, 3
      %p494 = pnand %p492, %p493
      %p495 = pneg %p494
      // Predicated region
      $region9: #{bert_base_uncased_forward.1} parent=5 // pred_check
        _
      $region10: #{bert_base_uncased_forward.1} parent=5 // pred_check_branch
        %497 = sbr.rel (%p494) target = $region12
      $region11: #{bert_base_uncased_forward.1} parent=5 // pred_region
        %s498 = ssub.s32 %s28, 1
        // Predicated region
        $region13: #{bert_base_uncased_forward.1} parent=11 // pred_check
          %p499 = pneg %p101
        $region14: #{bert_base_uncased_forward.1} parent=11 // pred_check_branch
          %501 = sbr.rel (%p499) target = $region16
        $region15: #{bert_base_uncased_forward.1} parent=11 // pred_region
          _
        $region16: #{bert_base_uncased_forward.1} parent=11 // pred_fallthru
          _
        // Predicated region
        $region17: #{bert_base_uncased_forward.1} parent=11 // pred_check
          %p502 = pneg %p122
        $region18: #{bert_base_uncased_forward.1} parent=11 // pred_check_branch
          %504 = sbr.rel (%p502) target = $region20
        $region19: #{bert_base_uncased_forward.1} parent=11 // pred_region
          _
        $region20: #{bert_base_uncased_forward.1} parent=11 // pred_fallthru
          _
        // Predicated region
        $region21: #{bert_base_uncased_forward.1} parent=11 // pred_check
          %p505 = pneg %p143
        $region22: #{bert_base_uncased_forward.1} parent=11 // pred_check_branch
          %507 = sbr.rel (%p505) target = $region24
        $region23: #{bert_base_uncased_forward.1} parent=11 // pred_region
          %s509 = ssub.s32 6144, 6144
          %510 = vsyncadd [#allocation3], %s509
          %s511 = sshll.u32 [#allocation2], 4
          %s512 = int_to_ptr.vmem [resolvable:$true] %s511
          %517 = dma.hbm_to_vmem [thread:$0]  %s4, 6144, %s512, [#allocation3], 192, 192, 12
        $region24: #{bert_base_uncased_forward.1} parent=11 // pred_fallthru
          _
        // Predicated region
        $region25: #{bert_base_uncased_forward.1} parent=11 // pred_check
          %p518 = pneg %p164
        $region26: #{bert_base_uncased_forward.1} parent=11 // pred_check_branch
          %520 = sbr.rel (%p518) target = $region28
        $region27: #{bert_base_uncased_forward.1} parent=11 // pred_region
          _
        $region28: #{bert_base_uncased_forward.1} parent=11 // pred_fallthru
          _
        // Predicated region
        $region29: #{bert_base_uncased_forward.1} parent=11 // pred_check
          %p521 = pneg %p185
        $region30: #{bert_base_uncased_forward.1} parent=11 // pred_check_branch
          %523 = sbr.rel (%p521) target = $region32
        $region31: #{bert_base_uncased_forward.1} parent=11 // pred_region
          _
        $region32: #{bert_base_uncased_forward.1} parent=11 // pred_fallthru
          _
        // Predicated region
        $region33: #{bert_base_uncased_forward.1} parent=11 // pred_check
          %p524 = pneg %p206
        $region34: #{bert_base_uncased_forward.1} parent=11 // pred_check_branch
          %526 = sbr.rel (%p524) target = $region36
        $region35: #{bert_base_uncased_forward.1} parent=11 // pred_region
          _
        $region36: #{bert_base_uncased_forward.1} parent=11 // pred_fallthru
          _
        // Predicated region
        $region37: #{bert_base_uncased_forward.1} parent=11 // pred_check
          %p527 = pneg %p227
        $region38: #{bert_base_uncased_forward.1} parent=11 // pred_check_branch
          %529 = sbr.rel (%p527) target = $region40
        $region39: #{bert_base_uncased_forward.1} parent=11 // pred_region
          _
        $region40: #{bert_base_uncased_forward.1} parent=11 // pred_fallthru
          _
        // Predicated region
        $region41: #{bert_base_uncased_forward.1} parent=11 // pred_check
          %p530 = pneg %p248
        $region42: #{bert_base_uncased_forward.1} parent=11 // pred_check_branch
          %532 = sbr.rel (%p530) target = $region44
        $region43: #{bert_base_uncased_forward.1} parent=11 // pred_region
          _
        $region44: #{bert_base_uncased_forward.1} parent=11 // pred_fallthru
          _
        // Predicated region
        $region45: #{bert_base_uncased_forward.1} parent=11 // pred_check
          %p533 = pneg %p269
        $region46: #{bert_base_uncased_forward.1} parent=11 // pred_check_branch
          %535 = sbr.rel (%p533) target = $region48
        $region47: #{bert_base_uncased_forward.1} parent=11 // pred_region
          %s537 = ssub.s32 8192, 8192
          %538 = vsyncadd [#allocation5], %s537
          %s539 = sshll.u32 [#allocation4], 4
          %s540 = int_to_ptr.vmem [resolvable:$true] %s539
          %545 = dma.hbm_to_vmem [thread:$0]  %s10, 8192, %s540, [#allocation5], 256, 256, 16
        $region48: #{bert_base_uncased_forward.1} parent=11 // pred_fallthru
          _
        // Predicated region
        $region49: #{bert_base_uncased_forward.1} parent=11 // pred_check
          %p546 = pneg %p290
        $region50: #{bert_base_uncased_forward.1} parent=11 // pred_check_branch
          %548 = sbr.rel (%p546) target = $region52
        $region51: #{bert_base_uncased_forward.1} parent=11 // pred_region
          _
        $region52: #{bert_base_uncased_forward.1} parent=11 // pred_fallthru
          _
        // Predicated region
        $region53: #{bert_base_uncased_forward.1} parent=11 // pred_check
          %p549 = pneg %p311
        $region54: #{bert_base_uncased_forward.1} parent=11 // pred_check_branch
          %551 = sbr.rel (%p549) target = $region56
        $region55: #{bert_base_uncased_forward.1} parent=11 // pred_region
          %s553 = ssub.s32 8192, 8192
          %554 = vsyncadd [#allocation5], %s553
          %s555 = sshll.u32 [#allocation6], 4
          %s556 = int_to_ptr.vmem [resolvable:$true] %s555
          %561 = dma.hbm_to_vmem [thread:$0]  %s12, 8192, %s556, [#allocation5], 64, 64, 4
        $region56: #{bert_base_uncased_forward.1} parent=11 // pred_fallthru
          _
        // Predicated region
        $region57: #{bert_base_uncased_forward.1} parent=11 // pred_check
          %p562 = pneg %p332
        $region58: #{bert_base_uncased_forward.1} parent=11 // pred_check_branch
          %564 = sbr.rel (%p562) target = $region60
        $region59: #{bert_base_uncased_forward.1} parent=11 // pred_region
          _
        $region60: #{bert_base_uncased_forward.1} parent=11 // pred_fallthru
          _
        // Predicated region
        $region61: #{bert_base_uncased_forward.1} parent=11 // pred_check
          %p565 = pneg %p353
        $region62: #{bert_base_uncased_forward.1} parent=11 // pred_check_branch
          %567 = sbr.rel (%p565) target = $region64
        $region63: #{bert_base_uncased_forward.1} parent=11 // pred_region
          _
        $region64: #{bert_base_uncased_forward.1} parent=11 // pred_fallthru
          _
        // Predicated region
        $region65: #{bert_base_uncased_forward.1} parent=11 // pred_check
          %p568 = pneg %p374
        $region66: #{bert_base_uncased_forward.1} parent=11 // pred_check_branch
          %570 = sbr.rel (%p568) target = $region68
        $region67: #{bert_base_uncased_forward.1} parent=11 // pred_region
          _
        $region68: #{bert_base_uncased_forward.1} parent=11 // pred_fallthru
          _
        // Predicated region
        $region69: #{bert_base_uncased_forward.1} parent=11 // pred_check
          %p571 = pneg %p395
        $region70: #{bert_base_uncased_forward.1} parent=11 // pred_check_branch
          %573 = sbr.rel (%p571) target = $region72
        $region71: #{bert_base_uncased_forward.1} parent=11 // pred_region
          _
        $region72: #{bert_base_uncased_forward.1} parent=11 // pred_fallthru
          _
        // Predicated region
        $region73: #{bert_base_uncased_forward.1} parent=11 // pred_check
          %p574 = pneg %p416
        $region74: #{bert_base_uncased_forward.1} parent=11 // pred_check_branch
          %576 = sbr.rel (%p574) target = $region76
        $region75: #{bert_base_uncased_forward.1} parent=11 // pred_region
          _
        $region76: #{bert_base_uncased_forward.1} parent=11 // pred_fallthru
          _
        // Predicated region
        $region77: #{bert_base_uncased_forward.1} parent=11 // pred_check
          %p577 = pneg %p437
        $region78: #{bert_base_uncased_forward.1} parent=11 // pred_check_branch
          %579 = sbr.rel (%p577) target = $region80
        $region79: #{bert_base_uncased_forward.1} parent=11 // pred_region
          _
        $region80: #{bert_base_uncased_forward.1} parent=11 // pred_fallthru
          _
        // Predicated region
        $region81: #{bert_base_uncased_forward.1} parent=11 // pred_check
          %p580 = pneg %p458
        $region82: #{bert_base_uncased_forward.1} parent=11 // pred_check_branch
          %582 = sbr.rel (%p580) target = $region84
        $region83: #{bert_base_uncased_forward.1} parent=11 // pred_region
          _
        $region84: #{bert_base_uncased_forward.1} parent=11 // pred_fallthru
          _
      $region12: #{bert_base_uncased_forward.1} parent=5 // pred_fallthru
        _
      %p583 = scmp.lt.s32.totalorder %s28, 2
      // Predicated region
      $region85: #{bert_base_uncased_forward.1} parent=5 // pred_check
        %p584 = pneg %p583
      $region86: #{bert_base_uncased_forward.1} parent=5 // pred_check_branch
        %586 = sbr.rel (%p584) target = $region88
      $region87: #{bert_base_uncased_forward.1} parent=5 // pred_region
        // Predicated region
        $region89: #{bert_base_uncased_forward.1} parent=87 // pred_check
          %p587 = pneg %p48
        $region90: #{bert_base_uncased_forward.1} parent=87 // pred_check_branch
          %589 = sbr.rel (%p587) target = $region92
        $region91: #{bert_base_uncased_forward.1} parent=87 // pred_region
          %p590 = scmp.lt.s32.totalorder %s28, 1
          %s591 = scalar_select %p590, %s28, 1
          %s592 = smul.addr %s591, 8
          %s593 = scalar_lea.vmem %s0, %s592
        $region92: #{bert_base_uncased_forward.1} parent=87 // pred_fallthru
          _
        // Predicated region
        $region93: #{bert_base_uncased_forward.1} parent=87 // pred_check
          %p594 = pneg %p74
        $region94: #{bert_base_uncased_forward.1} parent=87 // pred_check_branch
          %596 = sbr.rel (%p594) target = $region96
        $region95: #{bert_base_uncased_forward.1} parent=87 // pred_region
          %p597 = scmp.lt.s32.totalorder %s28, 1
          %s598 = scalar_select %p597, %s28, 1
          %s599 = scalar_lea.vmem %s1, %s598
        $region96: #{bert_base_uncased_forward.1} parent=87 // pred_fallthru
          _
      $region88: #{bert_base_uncased_forward.1} parent=5 // pred_fallthru
        _
      %p600 = scmp.le.s32.totalorder 1, %s28
      %p601 = scmp.lt.s32.totalorder %s28, 3
      %p602 = pnand %p600, %p601
      %p603 = pneg %p602
      // Predicated region
      $region97: #{bert_base_uncased_forward.1} parent=5 // pred_check
        _
      $region98: #{bert_base_uncased_forward.1} parent=5 // pred_check_branch
        %605 = sbr.rel (%p602) target = $region100
      $region99: #{bert_base_uncased_forward.1} parent=5 // pred_region
        %s606 = ssub.s32 %s28, 1
        // Predicated region
        $region101: #{bert_base_uncased_forward.1} parent=99 // pred_check
          %p607 = pneg %p143
        $region102: #{bert_base_uncased_forward.1} parent=99 // pred_check_branch
          %609 = sbr.rel (%p607) target = $region104
        $region103: #{bert_base_uncased_forward.1} parent=99 // pred_region
          %610 = dma.done [#allocation3], 6144
        $region104: #{bert_base_uncased_forward.1} parent=99 // pred_fallthru
          _
        // Predicated region
        $region105: #{bert_base_uncased_forward.1} parent=99 // pred_check
          %p611 = pneg %p269
        $region106: #{bert_base_uncased_forward.1} parent=99 // pred_check_branch
          %613 = sbr.rel (%p611) target = $region108
        $region107: #{bert_base_uncased_forward.1} parent=99 // pred_region
          %614 = dma.done [#allocation5], 8192
        $region108: #{bert_base_uncased_forward.1} parent=99 // pred_fallthru
          _
        // Predicated region
        $region109: #{bert_base_uncased_forward.1} parent=99 // pred_check
          %p615 = pneg %p311
        $region110: #{bert_base_uncased_forward.1} parent=99 // pred_check_branch
          %617 = sbr.rel (%p615) target = $region112
        $region111: #{bert_base_uncased_forward.1} parent=99 // pred_region
          %618 = dma.done [#allocation5], 8192
        $region112: #{bert_base_uncased_forward.1} parent=99 // pred_fallthru
          _
        %p619 = scmp.lt.s32.totalorder %s33, 1
        %s620 = scalar_select %p619, %s33, 1
        %s621 = smul.addr %s620, 8
        %s622 = scalar_lea.vmem %s0, %s621
        %p623 = pneg %p54
        %p624 = pneg %p51
        %p625 = scmp.lt.s32.totalorder %s33, 1
        %s626 = scalar_select %p625, %s33, 1
        %s627 = scalar_lea.vmem %s1, %s626
        %p628 = pneg %p80
        %p629 = pneg %p77
        %p630 = pneg %p101
        %p631 = pneg %p98
        %p632 = pneg %p122
        %p633 = pneg %p119
        %p634 = pneg %p143
        %p635 = pneg %p140
        %p636 = pneg %p164
        %p637 = pneg %p161
        %p638 = pneg %p185
        %p639 = pneg %p182
        %p640 = pneg %p206
        %p641 = pneg %p203
        %p642 = pneg %p227
        %p643 = pneg %p224
        %p644 = pneg %p248
        %p645 = pneg %p245
        %p646 = pneg %p269
        %p647 = pneg %p266
        %p648 = pneg %p290
        %p649 = pneg %p287
        %p650 = pneg %p311
        %p651 = pneg %p308
        %p652 = pneg %p332
        %p653 = pneg %p329
        %p654 = pneg %p353
        %p655 = pneg %p350
        %p656 = pneg %p374
        %p657 = pneg %p371
        %p658 = pneg %p395
        %p659 = pneg %p392
        %p660 = pneg %p416
        %p661 = pneg %p413
        %p662 = pneg %p437
        %p663 = pneg %p434
        %p664 = pneg %p458
        %p665 = pneg %p455
        %p666 = pneg %p484
        %p667 = pneg %p481
        %p668 = scmp.lt.s32.totalorder %s33, 1
        %s669 = scalar_select %p668, %s33, 1
        %s670 = scalar_lea.vmem %s20, %s669
        %p671 = scmp.lt.s32.totalorder %s33, 1
        %s672 = scalar_select %p671, %s33, 1
        %s673 = smul.addr %s672, 8
        %s674 = scalar_lea.vmem %s0, %s673
        %p675 = scmp.lt.s32.totalorder %s33, 1
        %s676 = scalar_select %p675, %s33, 1
        %s677 = scalar_lea.vmem %s1, %s676
        %p678 = scmp.lt.s32.totalorder %s33, 1
        %s679 = scalar_select %p678, %s33, 1
        %s680 = scalar_lea.vmem %s20, %s679
        %v682 = vld [vmem:[%s674] sm:$0xff]
        %v683 = vld [vmem:[%s2] sm:$0x1]
        %v684 = vld [vmem:[%s3] sm:$0x1]
        %685 = vadd.xlane.f32.xlu0 %v682
        %v686 = vpop.xlane.xlu0 %685
        %v687 = vrcp.pop 128.0
        %v688 = vmul.f32 %v686, %v687
        %v689 = vsub.f32 %v682, %v688
        %v690 = vmul.f32 %v689, %v689
        %691 = vadd.xlane.f32.xlu0 %v690
        %v692 = vpop.xlane.xlu0 %691
        %v693 = vmul.f32 %v692, %v687
        %v694 = vadd.f32 %v693, 1e-12
        %v695 = vrsqrt.pop %v694
        %v696 = vmul.f32 %v689, %v695
        %v698 = vlaneseq
        %v699 = vshrl.u32 %v698, 7
        %v700 = vsub.s32 0, %v699
        %v701 = vrot.slane %v683, %v700
        %v703 = vmul.f32 %v696, %v701
        %v705 = vlaneseq
        %v706 = vshrl.u32 %v705, 7
        %v707 = vsub.s32 0, %v706
        %v708 = vrot.slane %v684, %v707
        %v710 = vadd.f32 %v703, %v708
        %v711 = vld [vmem:[%s677] sm:$0x1]
        %v712 = vld [vmem:[#allocation2] sm:$0xff]
        %v713 = vld [vmem:[#allocation2 + $0x8] sm:$0xf]
        %v714 = vld [vmem:[#allocation2 + $0xc] sm:$0xff]
        %v715 = vld [vmem:[#allocation2 + $0x14] sm:$0xf]
        %v716 = vld [vmem:[#allocation2 + $0x18] sm:$0xff]
        %v717 = vld [vmem:[#allocation2 + $0x20] sm:$0xf]
        %v718 = vld [vmem:[#allocation2 + $0x24] sm:$0xff]
        %v719 = vld [vmem:[#allocation2 + $0x2c] sm:$0xf]
        %v720 = vld [vmem:[#allocation2 + $0x30] sm:$0xff]
        %v721 = vld [vmem:[#allocation2 + $0x38] sm:$0xf]
        %v722 = vld [vmem:[#allocation2 + $0x3c] sm:$0xff]
        %v723 = vld [vmem:[#allocation2 + $0x44] sm:$0xf]
        %v724 = vld [vmem:[#allocation2 + $0x48] sm:$0xff]
        %v725 = vld [vmem:[#allocation2 + $0x50] sm:$0xf]
        %v726 = vld [vmem:[#allocation2 + $0x54] sm:$0xff]
        %v727 = vld [vmem:[#allocation2 + $0x5c] sm:$0xf]
        %v728 = vld [vmem:[#allocation2 + $0x60] sm:$0xff]
        %v729 = vld [vmem:[#allocation2 + $0x68] sm:$0xf]
        %v730 = vld [vmem:[#allocation2 + $0x6c] sm:$0xff]
        %v731 = vld [vmem:[#allocation2 + $0x74] sm:$0xf]
        %v732 = vld [vmem:[#allocation2 + $0x78] sm:$0xff]
        %v733 = vld [vmem:[#allocation2 + $0x80] sm:$0xf]
        %v734 = vld [vmem:[#allocation2 + $0x84] sm:$0xff]
        %v735 = vld [vmem:[#allocation2 + $0x8c] sm:$0xf]
        %v736 = vld [vmem:[#allocation2 + $0x90] sm:$0xff]
        %v737 = vld [vmem:[#allocation2 + $0x98] sm:$0xf]
        %v738 = vld [vmem:[#allocation2 + $0x9c] sm:$0xff]
        %v739 = vld [vmem:[#allocation2 + $0xa4] sm:$0xf]
        %v740 = vld [vmem:[#allocation2 + $0xa8] sm:$0xff]
        %v741 = vld [vmem:[#allocation2 + $0xb0] sm:$0xf]
        %v742 = vld [vmem:[#allocation2 + $0xb4] sm:$0xff]
        %v743 = vld [vmem:[#allocation2 + $0xbc] sm:$0xf]
        %v744 = vpack.c.bf16 %v710, %v710
        %v745 = vld [vmem:[%s5] sm:$0x7]
        %v747 = vlaneseq
        %v748 = vshrl.u32 %v747, 7
        %v749 = vsub.s32 0, %v748
        %v750 = vrot.slane %v745, %v749
        %v751 = vlaneseq
        %v752 = vshrl.u32 %v751, 7
        %v753 = vsub.s32 1, %v752
        %v754 = vrot.slane %v745, %v753
        %v755 = vlaneseq
        %v756 = vshrl.u32 %v755, 7
        %v757 = vsub.s32 2, %v756
        %v758 = vrot.slane %v745, %v757
        %v794 = vunpack.c.l.b16 %v712
        %v795 = vunpack.c.h.b16 %v712
        %v796 = vunpack.c.l.b16 %v713
        %v797 = vunpack.c.l.b16 %v714
        %v798 = vunpack.c.h.b16 %v714
        %v799 = vunpack.c.l.b16 %v715
        %v800 = vunpack.c.l.b16 %v716
        %v801 = vunpack.c.h.b16 %v716
        %v802 = vunpack.c.l.b16 %v717
        %v803 = vunpack.c.l.b16 %v718
        %v804 = vunpack.c.h.b16 %v718
        %v805 = vunpack.c.l.b16 %v719
        %v806 = vunpack.c.l.b16 %v720
        %v807 = vunpack.c.h.b16 %v720
        %v808 = vunpack.c.l.b16 %v721
        %v809 = vunpack.c.l.b16 %v722
        %v810 = vunpack.c.h.b16 %v722
        %v811 = vunpack.c.l.b16 %v723
        %v812 = vunpack.c.l.b16 %v724
        %v813 = vunpack.c.h.b16 %v724
        %v814 = vunpack.c.l.b16 %v725
        %v815 = vunpack.c.l.b16 %v726
        %v816 = vunpack.c.h.b16 %v726
        %v817 = vunpack.c.l.b16 %v727
        %v818 = vunpack.c.l.b16 %v728
        %v819 = vunpack.c.h.b16 %v728
        %v820 = vunpack.c.l.b16 %v729
        %v821 = vunpack.c.l.b16 %v730
        %v822 = vunpack.c.h.b16 %v730
        %v823 = vunpack.c.l.b16 %v731
        %v824 = vunpack.c.l.b16 %v732
        %v825 = vunpack.c.h.b16 %v732
        %v826 = vunpack.c.l.b16 %v733
        %v827 = vunpack.c.l.b16 %v734
        %v828 = vunpack.c.h.b16 %v734
        %v829 = vunpack.c.l.b16 %v735
        %v830 = vunpack.c.l.b16 %v736
        %v831 = vunpack.c.h.b16 %v736
        %v832 = vunpack.c.l.b16 %v737
        %v833 = vunpack.c.l.b16 %v738
        %v834 = vunpack.c.h.b16 %v738
        %v835 = vunpack.c.l.b16 %v739
        %v836 = vunpack.c.l.b16 %v740
        %v837 = vunpack.c.h.b16 %v740
        %v838 = vunpack.c.l.b16 %v741
        %v839 = vunpack.c.l.b16 %v742
        %v840 = vunpack.c.h.b16 %v742
        %v841 = vunpack.c.l.b16 %v743
        %v842 = vpack.c.b16 %v797, %v794
        %v843 = vpack.c.b16 %v798, %v795
        %v844 = vpack.c.b16 %v799, %v796
        %v845 = vpack.c.b16 %v803, %v800
        %v846 = vpack.c.b16 %v804, %v801
        %v847 = vpack.c.b16 %v805, %v802
        %v848 = vpack.c.b16 %v809, %v806
        %v849 = vpack.c.b16 %v810, %v807
        %v850 = vpack.c.b16 %v811, %v808
        %v851 = vpack.c.b16 %v815, %v812
        %v852 = vpack.c.b16 %v816, %v813
        %v853 = vpack.c.b16 %v817, %v814
        %v854 = vpack.c.b16 %v821, %v818
        %v855 = vpack.c.b16 %v822, %v819
        %v856 = vpack.c.b16 %v823, %v820
        %v857 = vpack.c.b16 %v827, %v824
        %v858 = vpack.c.b16 %v828, %v825
        %v859 = vpack.c.b16 %v829, %v826
        %v860 = vpack.c.b16 %v833, %v830
        %v861 = vpack.c.b16 %v834, %v831
        %v862 = vpack.c.b16 %v835, %v832
        %v863 = vpack.c.b16 %v839, %v836
        %v864 = vpack.c.b16 %v840, %v837
        %v865 = vpack.c.b16 %v841, %v838
        %890 = vmatprep.subr.bf16.mxu0 %v843
        %891 = vmatpush1.bf16.msra.mxu0 %v842
        %892 = vmatprep.subr.bf16.mxu0 %v846
        %893 = vmatpush1.bf16.msra.mxu0 %v845
        %894 = vmatprep.subr.bf16.mxu0 %v849
        %895 = vmatpush1.bf16.msra.mxu0 %v848
        %896 = vmatprep.subr.bf16.mxu0 %v852
        %897 = vmatpush1.bf16.msra.mxu0 %v851
        %898 = vmatprep.subr.bf16.mxu0 %v855
        %899 = vmatpush1.bf16.msra.mxu0 %v854
        %900 = vmatprep.subr.bf16.mxu0 %v858
        %901 = vmatpush1.bf16.msra.mxu0 %v857
        %902 = vmatprep.subr.bf16.mxu0 %v861
        %903 = vmatpush1.bf16.msra.mxu0 %v860
        %904 = vmatprep.subr.bf16.mxu0 %v864
        %905 = vmatpush1.bf16.msra.mxu0 %v863
        %906 = vmatprep.subr.bf16.mxu0 0
        %907 = vmatpush1.bf16.msra.mxu0 0
        %908 = vmatprep.subr.bf16.mxu0 0
        %909 = vmatpush1.bf16.msra.mxu0 0
        %910 = vmatprep.subr.bf16.mxu0 0
        %911 = vmatpush1.bf16.msra.mxu0 0
        %912 = vmatprep.subr.bf16.mxu0 0
        %913 = vmatpush1.bf16.msra.mxu0 0
        %914 = vmatprep.subr.bf16.mxu0 0
        %915 = vmatpush1.bf16.msra.mxu0 0
        %916 = vmatprep.subr.bf16.mxu0 0
        %917 = vmatpush1.bf16.msra.mxu0 0
        %918 = vmatprep.subr.bf16.mxu0 0
        %919 = vmatpush1.bf16.msra.mxu0 0
        %920 = vmatprep.subr.bf16.mxu0 0
        %921 = vmatpush1.bf16.msra.mxu0 0
        %922 = vmatprep.mubr.bf16.mxu0 0
        %923 = vmatmul.mubr.bf16.gmra.mrb[0].mxu0 %v744
        %v924 = vpop.f32.mrb[0].mxu0
        %v925 = vadd.f32 %v750, %v924
        %v926 = vpop.f32.mrb[0].mxu0
        %v927 = vadd.f32 %v754, %v926
        %v928 = vpop.f32.mrb[0].mxu0
        %v929 = vpop.f32.mrb[0].mxu0
        %930 = vdwg.mxu0
        %931 = vmatprep.subr.bf16.mxu0 0
        %932 = vmatpush1.bf16.msra.mxu0 %v844
        %933 = vmatprep.subr.bf16.mxu0 0
        %934 = vmatpush1.bf16.msra.mxu0 %v847
        %935 = vmatprep.subr.bf16.mxu0 0
        %936 = vmatpush1.bf16.msra.mxu0 %v850
        %937 = vmatprep.subr.bf16.mxu0 0
        %938 = vmatpush1.bf16.msra.mxu0 %v853
        %939 = vmatprep.subr.bf16.mxu0 0
        %940 = vmatpush1.bf16.msra.mxu0 %v856
        %941 = vmatprep.subr.bf16.mxu0 0
        %942 = vmatpush1.bf16.msra.mxu0 %v859
        %943 = vmatprep.subr.bf16.mxu0 0
        %944 = vmatpush1.bf16.msra.mxu0 %v862
        %945 = vmatprep.subr.bf16.mxu0 0
        %946 = vmatpush1.bf16.msra.mxu0 %v865
        %947 = vmatprep.subr.bf16.mxu0 0
        %948 = vmatpush1.bf16.msra.mxu0 0
        %949 = vmatprep.subr.bf16.mxu0 0
        %950 = vmatpush1.bf16.msra.mxu0 0
        %951 = vmatprep.subr.bf16.mxu0 0
        %952 = vmatpush1.bf16.msra.mxu0 0
        %953 = vmatprep.subr.bf16.mxu0 0
        %954 = vmatpush1.bf16.msra.mxu0 0
        %955 = vmatprep.subr.bf16.mxu0 0
        %956 = vmatpush1.bf16.msra.mxu0 0
        %957 = vmatprep.subr.bf16.mxu0 0
        %958 = vmatpush1.bf16.msra.mxu0 0
        %959 = vmatprep.subr.bf16.mxu0 0
        %960 = vmatpush1.bf16.msra.mxu0 0
        %961 = vmatprep.subr.bf16.mxu0 0
        %962 = vmatpush1.bf16.msra.mxu0 0
        %963 = vmatprep.mubr.bf16.mxu0 0
        %964 = vmatmul.mubr.bf16.gmra.mrb[0].mxu0 %v744
        %v965 = vpop.f32.mrb[0].mxu0
        %v966 = vadd.f32 %v758, %v965
        %v967 = vpop.f32.mrb[0].mxu0
        %v968 = vpop.f32.mrb[0].mxu0
        %v969 = vpop.f32.mrb[0].mxu0
        %970 = vdwg.mxu0
        %v971 = vpack.c.bf16 %v925, %v925
        %v972 = vpack.c.bf16 %v927, %v927
        %v973 = vpack.c.bf16 %v966, %v966
        %vm974 = vcmask 261120
        %v976 = vsel %vm974, %v971, 0
        %v979 = vsel %vm974, %v972, 0
        %981 = vmatprep.subr.bf16.mxu0 0
        %982 = vmatpush1.bf16.xpose.msra.mxu0 %v979
        %983 = vmatprep.subr.bf16.mxu0 0
        %984 = vmatpush1.bf16.xpose.msra.mxu0 0
        %985 = vmatprep.subr.bf16.mxu0 0
        %986 = vmatpush1.bf16.xpose.msra.mxu0 0
        %987 = vmatprep.subr.bf16.mxu0 0
        %988 = vmatpush1.bf16.xpose.msra.mxu0 0
        %989 = vmatprep.subr.bf16.mxu0 0
        %990 = vmatpush1.bf16.xpose.msra.mxu0 0
        %991 = vmatprep.subr.bf16.mxu0 0
        %992 = vmatpush1.bf16.xpose.msra.mxu0 0
        %993 = vmatprep.subr.bf16.mxu0 0
        %994 = vmatpush1.bf16.xpose.msra.mxu0 0
        %995 = vmatprep.subr.bf16.mxu0 0
        %996 = vmatpush1.bf16.xpose.msra.mxu0 0
        %997 = vmatprep.subr.bf16.mxu0 0
        %998 = vmatpush1.bf16.xpose.msra.mxu0 0
        %999 = vmatprep.subr.bf16.mxu0 0
        %1000 = vmatpush1.bf16.xpose.msra.mxu0 0
        %1001 = vmatprep.subr.bf16.mxu0 0
        %1002 = vmatpush1.bf16.xpose.msra.mxu0 0
        %1003 = vmatprep.subr.bf16.mxu0 0
        %1004 = vmatpush1.bf16.xpose.msra.mxu0 0
        %1005 = vmatprep.subr.bf16.mxu0 0
        %1006 = vmatpush1.bf16.xpose.msra.mxu0 0
        %1007 = vmatprep.subr.bf16.mxu0 0
        %1008 = vmatpush1.bf16.xpose.msra.mxu0 0
        %1009 = vmatprep.subr.bf16.mxu0 0
        %1010 = vmatpush1.bf16.xpose.msra.mxu0 0
        %1011 = vmatprep.subr.bf16.mxu0 0
        %1012 = vmatpush1.bf16.xpose.msra.mxu0 0
        %1013 = vmatprep.mubr.bf16.mxu0 0
        %1014 = vmatmul.mubr.bf16.gmra.mrb[0].mxu0 %v976
        %v1015 = vpop.f32.mrb[0].mxu0
        %v1016 = vadd.f32 0.0, %v1015
        %v1017 = vpop.f32.mrb[0].mxu0
        %v1018 = vpop.f32.mrb[0].mxu0
        %v1019 = vpop.f32.mrb[0].mxu0
        %1020 = vdwg.mxu0
        %v1021 = vmul.f32 %v1016, 0.17677669
        %v1023 = vlaneseq
        %v1024 = vshrl.u32 %v1023, 7
        %v1025 = vsub.s32 0, %v1024
        %v1026 = vrot.slane %v711, %v1025
        %v1028 = vadd.f32 %v1021, %v1026
        %vm1029 = vcmask 64512
        %v1030 = vsel %vm1029, %v1028, -inf
        %1031 = vmax.xlane.f32.xlu0 %v1030
        %v1032 = vpop.xlane.xlu0 %1031
        %v1033 = vsub.f32 %v1028, %v1032
        %v1034 = vmul.f32 %v1033, 1.442695
        %v1035 = vpow.pop %v1034
        %v1036 = vsel %vm1029, %v1035, 0.0
        %1037 = vadd.xlane.f32.xlu0 %v1036
        %v1038 = vpop.xlane.xlu0 %1037
        %v1039 = vrcp.pop %v1038
        %v1040 = vmul.f32 %v1035, %v1039
        %v1041 = vpack.c.bf16 %v1040, %v1040
        %v1043 = vsel %vm1029, %v1041, 0
        %vm1045 = vcmask 1043456
        %v1047 = vsel %vm1045, %v973, 0
        %1049 = vmatprep.subr.bf16.mxu0 0
        %1050 = vmatpush1.bf16.msra.mxu0 %v1047
        %1051 = vmatprep.subr.bf16.mxu0 0
        %1052 = vmatpush1.bf16.msra.mxu0 0
        %1053 = vmatprep.subr.bf16.mxu0 0
        %1054 = vmatpush1.bf16.msra.mxu0 0
        %1055 = vmatprep.subr.bf16.mxu0 0
        %1056 = vmatpush1.bf16.msra.mxu0 0
        %1057 = vmatprep.subr.bf16.mxu0 0
        %1058 = vmatpush1.bf16.msra.mxu0 0
        %1059 = vmatprep.subr.bf16.mxu0 0
        %1060 = vmatpush1.bf16.msra.mxu0 0
        %1061 = vmatprep.subr.bf16.mxu0 0
        %1062 = vmatpush1.bf16.msra.mxu0 0
        %1063 = vmatprep.subr.bf16.mxu0 0
        %1064 = vmatpush1.bf16.msra.mxu0 0
        %1065 = vmatprep.subr.bf16.mxu0 0
        %1066 = vmatpush1.bf16.msra.mxu0 0
        %1067 = vmatprep.subr.bf16.mxu0 0
        %1068 = vmatpush1.bf16.msra.mxu0 0
        %1069 = vmatprep.subr.bf16.mxu0 0
        %1070 = vmatpush1.bf16.msra.mxu0 0
        %1071 = vmatprep.subr.bf16.mxu0 0
        %1072 = vmatpush1.bf16.msra.mxu0 0
        %1073 = vmatprep.subr.bf16.mxu0 0
        %1074 = vmatpush1.bf16.msra.mxu0 0
        %1075 = vmatprep.subr.bf16.mxu0 0
        %1076 = vmatpush1.bf16.msra.mxu0 0
        %1077 = vmatprep.subr.bf16.mxu0 0
        %1078 = vmatpush1.bf16.msra.mxu0 0
        %1079 = vmatprep.subr.bf16.mxu0 0
        %1080 = vmatpush1.bf16.msra.mxu0 0
        %1081 = vmatprep.mubr.bf16.mxu0 0
        %1082 = vmatmul.mubr.bf16.gmra.mrb[0].mxu0 %v1043
        %v1083 = vpop.f32.mrb[0].mxu0
        %v1084 = vadd.f32 0.0, %v1083
        %v1085 = vpop.f32.mrb[0].mxu0
        %v1086 = vpop.f32.mrb[0].mxu0
        %v1087 = vpop.f32.mrb[0].mxu0
        %1088 = vdwg.mxu0
        %1090 = vrot.lane.b32.xlu0 %v971, 96
        %v1091 = vpop.permute.xlu0 %1090
        %1093 = vrot.lane.b32.xlu0 %v972, 96
        %v1094 = vpop.permute.xlu0 %1093
        %v1096 = vsel %vm974, %v1091, 0
        %v1099 = vsel %vm974, %v1094, 0
        %1101 = vmatprep.subr.bf16.mxu0 0
        %1102 = vmatpush1.bf16.xpose.msra.mxu0 %v1099
        %1103 = vmatprep.subr.bf16.mxu0 0
        %1104 = vmatpush1.bf16.xpose.msra.mxu0 0
        %1105 = vmatprep.subr.bf16.mxu0 0
        %1106 = vmatpush1.bf16.xpose.msra.mxu0 0
        %1107 = vmatprep.subr.bf16.mxu0 0
        %1108 = vmatpush1.bf16.xpose.msra.mxu0 0
        %1109 = vmatprep.subr.bf16.mxu0 0
        %1110 = vmatpush1.bf16.xpose.msra.mxu0 0
        %1111 = vmatprep.subr.bf16.mxu0 0
        %1112 = vmatpush1.bf16.xpose.msra.mxu0 0
        %1113 = vmatprep.subr.bf16.mxu0 0
        %1114 = vmatpush1.bf16.xpose.msra.mxu0 0
        %1115 = vmatprep.subr.bf16.mxu0 0
        %1116 = vmatpush1.bf16.xpose.msra.mxu0 0
        %1117 = vmatprep.subr.bf16.mxu0 0
        %1118 = vmatpush1.bf16.xpose.msra.mxu0 0
        %1119 = vmatprep.subr.bf16.mxu0 0
        %1120 = vmatpush1.bf16.xpose.msra.mxu0 0
        %1121 = vmatprep.subr.bf16.mxu0 0
        %1122 = vmatpush1.bf16.xpose.msra.mxu0 0
        %1123 = vmatprep.subr.bf16.mxu0 0
        %1124 = vmatpush1.bf16.xpose.msra.mxu0 0
        %1125 = vmatprep.subr.bf16.mxu0 0
        %1126 = vmatpush1.bf16.xpose.msra.mxu0 0
        %1127 = vmatprep.subr.bf16.mxu0 0
        %1128 = vmatpush1.bf16.xpose.msra.mxu0 0
        %1129 = vmatprep.subr.bf16.mxu0 0
        %1130 = vmatpush1.bf16.xpose.msra.mxu0 0
        %1131 = vmatprep.subr.bf16.mxu0 0
        %1132 = vmatpush1.bf16.xpose.msra.mxu0 0
        %1133 = vmatprep.mubr.bf16.mxu0 0
        %1134 = vmatmul.mubr.bf16.gmra.mrb[0].mxu0 %v1096
        %v1135 = vpop.f32.mrb[0].mxu0
        %v1136 = vadd.f32 0.0, %v1135
        %v1137 = vpop.f32.mrb[0].mxu0
        %v1138 = vpop.f32.mrb[0].mxu0
        %v1139 = vpop.f32.mrb[0].mxu0
        %1140 = vdwg.mxu0
        %v1141 = vmul.f32 %v1136, 0.17677669
        %v1142 = vadd.f32 %v1141, %v1026
        %v1143 = vsel %vm1029, %v1142, -inf
        %1144 = vmax.xlane.f32.xlu0 %v1143
        %v1145 = vpop.xlane.xlu0 %1144
        %v1146 = vsub.f32 %v1142, %v1145
        %v1147 = vmul.f32 %v1146, 1.442695
        %v1148 = vpow.pop %v1147
        %v1149 = vsel %vm1029, %v1148, 0.0
        %1150 = vadd.xlane.f32.xlu0 %v1149
        %v1151 = vpop.xlane.xlu0 %1150
        %v1152 = vrcp.pop %v1151
        %v1153 = vmul.f32 %v1148, %v1152
        %v1154 = vpack.c.bf16 %v1153, %v1153
        %1156 = vrot.lane.b32.xlu0 %v973, 96
        %v1157 = vpop.permute.xlu0 %1156
        %v1159 = vsel %vm1029, %v1154, 0
        %v1162 = vsel %vm1045, %v1157, 0
        %1164 = vmatprep.subr.bf16.mxu0 0
        %1165 = vmatpush1.bf16.msra.mxu0 %v1162
        %1166 = vmatprep.subr.bf16.mxu0 0
        %1167 = vmatpush1.bf16.msra.mxu0 0
        %1168 = vmatprep.subr.bf16.mxu0 0
        %1169 = vmatpush1.bf16.msra.mxu0 0
        %1170 = vmatprep.subr.bf16.mxu0 0
        %1171 = vmatpush1.bf16.msra.mxu0 0
        %1172 = vmatprep.subr.bf16.mxu0 0
        %1173 = vmatpush1.bf16.msra.mxu0 0
        %1174 = vmatprep.subr.bf16.mxu0 0
        %1175 = vmatpush1.bf16.msra.mxu0 0
        %1176 = vmatprep.subr.bf16.mxu0 0
        %1177 = vmatpush1.bf16.msra.mxu0 0
        %1178 = vmatprep.subr.bf16.mxu0 0
        %1179 = vmatpush1.bf16.msra.mxu0 0
        %1180 = vmatprep.subr.bf16.mxu0 0
        %1181 = vmatpush1.bf16.msra.mxu0 0
        %1182 = vmatprep.subr.bf16.mxu0 0
        %1183 = vmatpush1.bf16.msra.mxu0 0
        %1184 = vmatprep.subr.bf16.mxu0 0
        %1185 = vmatpush1.bf16.msra.mxu0 0
        %1186 = vmatprep.subr.bf16.mxu0 0
        %1187 = vmatpush1.bf16.msra.mxu0 0
        %1188 = vmatprep.subr.bf16.mxu0 0
        %1189 = vmatpush1.bf16.msra.mxu0 0
        %1190 = vmatprep.subr.bf16.mxu0 0
        %1191 = vmatpush1.bf16.msra.mxu0 0
        %1192 = vmatprep.subr.bf16.mxu0 0
        %1193 = vmatpush1.bf16.msra.mxu0 0
        %1194 = vmatprep.subr.bf16.mxu0 0
        %1195 = vmatpush1.bf16.msra.mxu0 0
        %1196 = vmatprep.mubr.bf16.mxu0 0
        %1197 = vmatmul.mubr.bf16.gmra.mrb[0].mxu0 %v1159
        %v1198 = vpop.f32.mrb[0].mxu0
        %v1199 = vadd.f32 0.0, %v1198
        %v1200 = vpop.f32.mrb[0].mxu0
        %v1201 = vpop.f32.mrb[0].mxu0
        %v1202 = vpop.f32.mrb[0].mxu0
        %1203 = vdwg.mxu0
        %1204 = vrot.lane.b32.xlu0 %v971, 64
        %v1205 = vpop.permute.xlu0 %1204
        %1206 = vrot.lane.b32.xlu0 %v972, 64
        %v1207 = vpop.permute.xlu0 %1206
        %v1209 = vsel %vm974, %v1205, 0
        %v1212 = vsel %vm974, %v1207, 0
        %1214 = vmatprep.subr.bf16.mxu0 0
        %1215 = vmatpush1.bf16.xpose.msra.mxu0 %v1212
        %1216 = vmatprep.subr.bf16.mxu0 0
        %1217 = vmatpush1.bf16.xpose.msra.mxu0 0
        %1218 = vmatprep.subr.bf16.mxu0 0
        %1219 = vmatpush1.bf16.xpose.msra.mxu0 0
        %1220 = vmatprep.subr.bf16.mxu0 0
        %1221 = vmatpush1.bf16.xpose.msra.mxu0 0
        %1222 = vmatprep.subr.bf16.mxu0 0
        %1223 = vmatpush1.bf16.xpose.msra.mxu0 0
        %1224 = vmatprep.subr.bf16.mxu0 0
        %1225 = vmatpush1.bf16.xpose.msra.mxu0 0
        %1226 = vmatprep.subr.bf16.mxu0 0
        %1227 = vmatpush1.bf16.xpose.msra.mxu0 0
        %1228 = vmatprep.subr.bf16.mxu0 0
        %1229 = vmatpush1.bf16.xpose.msra.mxu0 0
        %1230 = vmatprep.subr.bf16.mxu0 0
        %1231 = vmatpush1.bf16.xpose.msra.mxu0 0
        %1232 = vmatprep.subr.bf16.mxu0 0
        %1233 = vmatpush1.bf16.xpose.msra.mxu0 0
        %1234 = vmatprep.subr.bf16.mxu0 0
        %1235 = vmatpush1.bf16.xpose.msra.mxu0 0
        %1236 = vmatprep.subr.bf16.mxu0 0
        %1237 = vmatpush1.bf16.xpose.msra.mxu0 0
        %1238 = vmatprep.subr.bf16.mxu0 0
        %1239 = vmatpush1.bf16.xpose.msra.mxu0 0
        %1240 = vmatprep.subr.bf16.mxu0 0
        %1241 = vmatpush1.bf16.xpose.msra.mxu0 0
        %1242 = vmatprep.subr.bf16.mxu0 0
        %1243 = vmatpush1.bf16.xpose.msra.mxu0 0
        %1244 = vmatprep.subr.bf16.mxu0 0
        %1245 = vmatpush1.bf16.xpose.msra.mxu0 0
        %1246 = vmatprep.mubr.bf16.mxu0 0
        %1247 = vmatmul.mubr.bf16.gmra.mrb[0].mxu0 %v1209
        %v1248 = vpop.f32.mrb[0].mxu0
        %v1249 = vadd.f32 0.0, %v1248
        %v1250 = vpop.f32.mrb[0].mxu0
        %v1251 = vpop.f32.mrb[0].mxu0
        %v1252 = vpop.f32.mrb[0].mxu0
        %1253 = vdwg.mxu0
        %v1254 = vmul.f32 %v1249, 0.17677669
        %v1255 = vadd.f32 %v1254, %v1026
        %v1256 = vsel %vm1029, %v1255, -inf
        %1257 = vmax.xlane.f32.xlu0 %v1256
        %v1258 = vpop.xlane.xlu0 %1257
        %v1259 = vsub.f32 %v1255, %v1258
        %v1260 = vmul.f32 %v1259, 1.442695
        %v1261 = vpow.pop %v1260
        %v1262 = vsel %vm1029, %v1261, 0.0
        %1263 = vadd.xlane.f32.xlu0 %v1262
        %v1264 = vpop.xlane.xlu0 %1263
        %v1265 = vrcp.pop %v1264
        %v1266 = vmul.f32 %v1261, %v1265
        %v1267 = vpack.c.bf16 %v1266, %v1266
        %1268 = vrot.lane.b32.xlu0 %v973, 64
        %v1269 = vpop.permute.xlu0 %1268
        %v1271 = vsel %vm1029, %v1267, 0
        %v1274 = vsel %vm1045, %v1269, 0
        %1276 = vmatprep.subr.bf16.mxu0 0
        %1277 = vmatpush1.bf16.msra.mxu0 %v1274
        %1278 = vmatprep.subr.bf16.mxu0 0
        %1279 = vmatpush1.bf16.msra.mxu0 0
        %1280 = vmatprep.subr.bf16.mxu0 0
        %1281 = vmatpush1.bf16.msra.mxu0 0
        %1282 = vmatprep.subr.bf16.mxu0 0
        %1283 = vmatpush1.bf16.msra.mxu0 0
        %1284 = vmatprep.subr.bf16.mxu0 0
        %1285 = vmatpush1.bf16.msra.mxu0 0
        %1286 = vmatprep.subr.bf16.mxu0 0
        %1287 = vmatpush1.bf16.msra.mxu0 0
        %1288 = vmatprep.subr.bf16.mxu0 0
        %1289 = vmatpush1.bf16.msra.mxu0 0
        %1290 = vmatprep.subr.bf16.mxu0 0
        %1291 = vmatpush1.bf16.msra.mxu0 0
        %1292 = vmatprep.subr.bf16.mxu0 0
        %1293 = vmatpush1.bf16.msra.mxu0 0
        %1294 = vmatprep.subr.bf16.mxu0 0
        %1295 = vmatpush1.bf16.msra.mxu0 0
        %1296 = vmatprep.subr.bf16.mxu0 0
        %1297 = vmatpush1.bf16.msra.mxu0 0
        %1298 = vmatprep.subr.bf16.mxu0 0
        %1299 = vmatpush1.bf16.msra.mxu0 0
        %1300 = vmatprep.subr.bf16.mxu0 0
        %1301 = vmatpush1.bf16.msra.mxu0 0
        %1302 = vmatprep.subr.bf16.mxu0 0
        %1303 = vmatpush1.bf16.msra.mxu0 0
        %1304 = vmatprep.subr.bf16.mxu0 0
        %1305 = vmatpush1.bf16.msra.mxu0 0
        %1306 = vmatprep.subr.bf16.mxu0 0
        %1307 = vmatpush1.bf16.msra.mxu0 0
        %1308 = vmatprep.mubr.bf16.mxu0 0
        %1309 = vmatmul.mubr.bf16.gmra.mrb[0].mxu0 %v1271
        %v1310 = vpop.f32.mrb[0].mxu0
        %v1311 = vadd.f32 0.0, %v1310
        %v1312 = vpop.f32.mrb[0].mxu0
        %v1313 = vpop.f32.mrb[0].mxu0
        %v1314 = vpop.f32.mrb[0].mxu0
        %1315 = vdwg.mxu0
        %1316 = vrot.lane.b32.xlu0 %v971, 32
        %v1317 = vpop.permute.xlu0 %1316
        %1318 = vrot.lane.b32.xlu0 %v972, 32
        %v1319 = vpop.permute.xlu0 %1318
        %v1321 = vsel %vm974, %v1317, 0
        %v1324 = vsel %vm974, %v1319, 0
        %1326 = vmatprep.subr.bf16.mxu0 0
        %1327 = vmatpush1.bf16.xpose.msra.mxu0 %v1324
        %1328 = vmatprep.subr.bf16.mxu0 0
        %1329 = vmatpush1.bf16.xpose.msra.mxu0 0
        %1330 = vmatprep.subr.bf16.mxu0 0
        %1331 = vmatpush1.bf16.xpose.msra.mxu0 0
        %1332 = vmatprep.subr.bf16.mxu0 0
        %1333 = vmatpush1.bf16.xpose.msra.mxu0 0
        %1334 = vmatprep.subr.bf16.mxu0 0
        %1335 = vmatpush1.bf16.xpose.msra.mxu0 0
        %1336 = vmatprep.subr.bf16.mxu0 0
        %1337 = vmatpush1.bf16.xpose.msra.mxu0 0
        %1338 = vmatprep.subr.bf16.mxu0 0
        %1339 = vmatpush1.bf16.xpose.msra.mxu0 0
        %1340 = vmatprep.subr.bf16.mxu0 0
        %1341 = vmatpush1.bf16.xpose.msra.mxu0 0
        %1342 = vmatprep.subr.bf16.mxu0 0
        %1343 = vmatpush1.bf16.xpose.msra.mxu0 0
        %1344 = vmatprep.subr.bf16.mxu0 0
        %1345 = vmatpush1.bf16.xpose.msra.mxu0 0
        %1346 = vmatprep.subr.bf16.mxu0 0
        %1347 = vmatpush1.bf16.xpose.msra.mxu0 0
        %1348 = vmatprep.subr.bf16.mxu0 0
        %1349 = vmatpush1.bf16.xpose.msra.mxu0 0
        %1350 = vmatprep.subr.bf16.mxu0 0
        %1351 = vmatpush1.bf16.xpose.msra.mxu0 0
        %1352 = vmatprep.subr.bf16.mxu0 0
        %1353 = vmatpush1.bf16.xpose.msra.mxu0 0
        %1354 = vmatprep.subr.bf16.mxu0 0
        %1355 = vmatpush1.bf16.xpose.msra.mxu0 0
        %1356 = vmatprep.subr.bf16.mxu0 0
        %1357 = vmatpush1.bf16.xpose.msra.mxu0 0
        %1358 = vmatprep.mubr.bf16.mxu0 0
        %1359 = vmatmul.mubr.bf16.gmra.mrb[0].mxu0 %v1321
        %v1360 = vpop.f32.mrb[0].mxu0
        %v1361 = vadd.f32 0.0, %v1360
        %v1362 = vpop.f32.mrb[0].mxu0
        %v1363 = vpop.f32.mrb[0].mxu0
        %v1364 = vpop.f32.mrb[0].mxu0
        %1365 = vdwg.mxu0
        %v1366 = vmul.f32 %v1361, 0.17677669
        %v1367 = vadd.f32 %v1366, %v1026
        %v1368 = vsel %vm1029, %v1367, -inf
        %1369 = vmax.xlane.f32.xlu0 %v1368
        %v1370 = vpop.xlane.xlu0 %1369
        %v1371 = vsub.f32 %v1367, %v1370
        %v1372 = vmul.f32 %v1371, 1.442695
        %v1373 = vpow.pop %v1372
        %v1374 = vsel %vm1029, %v1373, 0.0
        %1375 = vadd.xlane.f32.xlu0 %v1374
        %v1376 = vpop.xlane.xlu0 %1375
        %v1377 = vrcp.pop %v1376
        %v1378 = vmul.f32 %v1373, %v1377
        %v1379 = vpack.c.bf16 %v1378, %v1378
        %1380 = vrot.lane.b32.xlu0 %v973, 32
        %v1381 = vpop.permute.xlu0 %1380
        %v1383 = vsel %vm1029, %v1379, 0
        %v1386 = vsel %vm1045, %v1381, 0
        %1388 = vmatprep.subr.bf16.mxu0 0
        %1389 = vmatpush1.bf16.msra.mxu0 %v1386
        %1390 = vmatprep.subr.bf16.mxu0 0
        %1391 = vmatpush1.bf16.msra.mxu0 0
        %1392 = vmatprep.subr.bf16.mxu0 0
        %1393 = vmatpush1.bf16.msra.mxu0 0
        %1394 = vmatprep.subr.bf16.mxu0 0
        %1395 = vmatpush1.bf16.msra.mxu0 0
        %1396 = vmatprep.subr.bf16.mxu0 0
        %1397 = vmatpush1.bf16.msra.mxu0 0
        %1398 = vmatprep.subr.bf16.mxu0 0
        %1399 = vmatpush1.bf16.msra.mxu0 0
        %1400 = vmatprep.subr.bf16.mxu0 0
        %1401 = vmatpush1.bf16.msra.mxu0 0
        %1402 = vmatprep.subr.bf16.mxu0 0
        %1403 = vmatpush1.bf16.msra.mxu0 0
        %1404 = vmatprep.subr.bf16.mxu0 0
        %1405 = vmatpush1.bf16.msra.mxu0 0
        %1406 = vmatprep.subr.bf16.mxu0 0
        %1407 = vmatpush1.bf16.msra.mxu0 0
        %1408 = vmatprep.subr.bf16.mxu0 0
        %1409 = vmatpush1.bf16.msra.mxu0 0
        %1410 = vmatprep.subr.bf16.mxu0 0
        %1411 = vmatpush1.bf16.msra.mxu0 0
        %1412 = vmatprep.subr.bf16.mxu0 0
        %1413 = vmatpush1.bf16.msra.mxu0 0
        %1414 = vmatprep.subr.bf16.mxu0 0
        %1415 = vmatpush1.bf16.msra.mxu0 0
        %1416 = vmatprep.subr.bf16.mxu0 0
        %1417 = vmatpush1.bf16.msra.mxu0 0
        %1418 = vmatprep.subr.bf16.mxu0 0
        %1419 = vmatpush1.bf16.msra.mxu0 0
        %1420 = vmatprep.mubr.bf16.mxu0 0
        %1421 = vmatmul.mubr.bf16.gmra.mrb[0].mxu0 %v1383
        %v1422 = vpop.f32.mrb[0].mxu0
        %v1423 = vadd.f32 0.0, %v1422
        %v1424 = vpop.f32.mrb[0].mxu0
        %v1425 = vpop.f32.mrb[0].mxu0
        %v1426 = vpop.f32.mrb[0].mxu0
        %1427 = vdwg.mxu0
        %1429 = vrot.lane.b32.xlu0 %v1199, 32
        %v1430 = vpop.permute.xlu0 %1429
        %1433 = vrot.lane.b32.xlu0 %v1311, 64
        %v1434 = vpop.permute.xlu0 %1433
        %1437 = vrot.lane.b32.xlu0 %v1423, 96
        %v1438 = vpop.permute.xlu0 %1437
        %v1440 = vsel %vm974, %v1084, %v1430
        %vm1441 = vcmask 523264
        %v1442 = vsel %vm1441, %v1440, %v1434
        %vm1443 = vcmask 785408
        %v1444 = vsel %vm1443, %v1442, %v1438
        %v1445 = vld [vmem:[%s6] sm:$0xf]
        %v1446 = vld [vmem:[%s6 + $0x4] sm:$0xf]
        %v1447 = vld [vmem:[%s6 + $0x8] sm:$0xf]
        %v1448 = vld [vmem:[%s6 + $0xc] sm:$0xf]
        %v1449 = vld [vmem:[%s6 + $0x10] sm:$0xf]
        %v1450 = vld [vmem:[%s6 + $0x14] sm:$0xf]
        %v1451 = vld [vmem:[%s6 + $0x18] sm:$0xf]
        %v1452 = vld [vmem:[%s6 + $0x1c] sm:$0xf]
        %v1453 = vld [vmem:[%s6 + $0x20] sm:$0xf]
        %v1454 = vld [vmem:[%s6 + $0x24] sm:$0xf]
        %v1455 = vld [vmem:[%s6 + $0x28] sm:$0xf]
        %v1456 = vld [vmem:[%s6 + $0x2c] sm:$0xf]
        %v1457 = vld [vmem:[%s6 + $0x30] sm:$0xf]
        %v1458 = vld [vmem:[%s6 + $0x34] sm:$0xf]
        %v1459 = vld [vmem:[%s6 + $0x38] sm:$0xf]
        %v1460 = vld [vmem:[%s6 + $0x3c] sm:$0xf]
        %v1461 = vpack.c.bf16 %v1444, %v1444
        %v1462 = vld [vmem:[%s7] sm:$0x1]
        %v1464 = vlaneseq
        %v1465 = vshrl.u32 %v1464, 7
        %v1466 = vsub.s32 0, %v1465
        %v1467 = vrot.slane %v1462, %v1466
        %v1485 = vunpack.c.l.b16 %v1445
        %v1486 = vunpack.c.l.b16 %v1446
        %v1487 = vunpack.c.l.b16 %v1447
        %v1488 = vunpack.c.l.b16 %v1448
        %v1489 = vunpack.c.l.b16 %v1449
        %v1490 = vunpack.c.l.b16 %v1450
        %v1491 = vunpack.c.l.b16 %v1451
        %v1492 = vunpack.c.l.b16 %v1452
        %v1493 = vunpack.c.l.b16 %v1453
        %v1494 = vunpack.c.l.b16 %v1454
        %v1495 = vunpack.c.l.b16 %v1455
        %v1496 = vunpack.c.l.b16 %v1456
        %v1497 = vunpack.c.l.b16 %v1457
        %v1498 = vunpack.c.l.b16 %v1458
        %v1499 = vunpack.c.l.b16 %v1459
        %v1500 = vunpack.c.l.b16 %v1460
        %v1501 = vpack.c.b16 %v1486, %v1485
        %v1502 = vpack.c.b16 %v1488, %v1487
        %v1503 = vpack.c.b16 %v1490, %v1489
        %v1504 = vpack.c.b16 %v1492, %v1491
        %v1505 = vpack.c.b16 %v1494, %v1493
        %v1506 = vpack.c.b16 %v1496, %v1495
        %v1507 = vpack.c.b16 %v1498, %v1497
        %v1508 = vpack.c.b16 %v1500, %v1499
        %1517 = vmatprep.subr.bf16.mxu0 0
        %1518 = vmatpush1.bf16.msra.mxu0 %v1501
        %1519 = vmatprep.subr.bf16.mxu0 0
        %1520 = vmatpush1.bf16.msra.mxu0 %v1502
        %1521 = vmatprep.subr.bf16.mxu0 0
        %1522 = vmatpush1.bf16.msra.mxu0 %v1503
        %1523 = vmatprep.subr.bf16.mxu0 0
        %1524 = vmatpush1.bf16.msra.mxu0 %v1504
        %1525 = vmatprep.subr.bf16.mxu0 0
        %1526 = vmatpush1.bf16.msra.mxu0 %v1505
        %1527 = vmatprep.subr.bf16.mxu0 0
        %1528 = vmatpush1.bf16.msra.mxu0 %v1506
        %1529 = vmatprep.subr.bf16.mxu0 0
        %1530 = vmatpush1.bf16.msra.mxu0 %v1507
        %1531 = vmatprep.subr.bf16.mxu0 0
        %1532 = vmatpush1.bf16.msra.mxu0 %v1508
        %1533 = vmatprep.subr.bf16.mxu0 0
        %1534 = vmatpush1.bf16.msra.mxu0 0
        %1535 = vmatprep.subr.bf16.mxu0 0
        %1536 = vmatpush1.bf16.msra.mxu0 0
        %1537 = vmatprep.subr.bf16.mxu0 0
        %1538 = vmatpush1.bf16.msra.mxu0 0
        %1539 = vmatprep.subr.bf16.mxu0 0
        %1540 = vmatpush1.bf16.msra.mxu0 0
        %1541 = vmatprep.subr.bf16.mxu0 0
        %1542 = vmatpush1.bf16.msra.mxu0 0
        %1543 = vmatprep.subr.bf16.mxu0 0
        %1544 = vmatpush1.bf16.msra.mxu0 0
        %1545 = vmatprep.subr.bf16.mxu0 0
        %1546 = vmatpush1.bf16.msra.mxu0 0
        %1547 = vmatprep.subr.bf16.mxu0 0
        %1548 = vmatpush1.bf16.msra.mxu0 0
        %1549 = vmatprep.mubr.bf16.mxu0 0
        %1550 = vmatmul.mubr.bf16.gmra.mrb[0].mxu0 %v1461
        %v1551 = vpop.f32.mrb[0].mxu0
        %v1552 = vadd.f32 %v1467, %v1551
        %v1553 = vpop.f32.mrb[0].mxu0
        %v1554 = vpop.f32.mrb[0].mxu0
        %v1555 = vpop.f32.mrb[0].mxu0
        %1556 = vdwg.mxu0
        %v1557 = vadd.f32 %v1552, %v710
        %v1558 = vld [vmem:[%s8] sm:$0x1]
        %v1559 = vld [vmem:[%s9] sm:$0x1]
        %1560 = vadd.xlane.f32.xlu0 %v1557
        %v1561 = vpop.xlane.xlu0 %1560
        %v1562 = vmul.f32 %v1561, %v687
        %v1563 = vsub.f32 %v1557, %v1562
        %v1564 = vmul.f32 %v1563, %v1563
        %1565 = vadd.xlane.f32.xlu0 %v1564
        %v1566 = vpop.xlane.xlu0 %1565
        %v1567 = vmul.f32 %v1566, %v687
        %v1568 = vadd.f32 %v1567, 1e-12
        %v1569 = vrsqrt.pop %v1568
        %v1570 = vmul.f32 %v1563, %v1569
        %v1572 = vlaneseq
        %v1573 = vshrl.u32 %v1572, 7
        %v1574 = vsub.s32 0, %v1573
        %v1575 = vrot.slane %v1558, %v1574
        %v1577 = vmul.f32 %v1570, %v1575
        %v1579 = vlaneseq
        %v1580 = vshrl.u32 %v1579, 7
        %v1581 = vsub.s32 0, %v1580
        %v1582 = vrot.slane %v1559, %v1581
        %v1584 = vadd.f32 %v1577, %v1582
        %v1585 = vld [vmem:[#allocation4] sm:$0xff]
        %v1586 = vld [vmem:[#allocation4 + $0x8] sm:$0xff]
        %v1587 = vld [vmem:[#allocation4 + $0x10] sm:$0xff]
        %v1588 = vld [vmem:[#allocation4 + $0x18] sm:$0xff]
        %v1589 = vld [vmem:[#allocation4 + $0x20] sm:$0xff]
        %v1590 = vld [vmem:[#allocation4 + $0x28] sm:$0xff]
        %v1591 = vld [vmem:[#allocation4 + $0x30] sm:$0xff]
        %v1592 = vld [vmem:[#allocation4 + $0x38] sm:$0xff]
        %v1593 = vld [vmem:[#allocation4 + $0x40] sm:$0xff]
        %v1594 = vld [vmem:[#allocation4 + $0x48] sm:$0xff]
        %v1595 = vld [vmem:[#allocation4 + $0x50] sm:$0xff]
        %v1596 = vld [vmem:[#allocation4 + $0x58] sm:$0xff]
        %v1597 = vld [vmem:[#allocation4 + $0x60] sm:$0xff]
        %v1598 = vld [vmem:[#allocation4 + $0x68] sm:$0xff]
        %v1599 = vld [vmem:[#allocation4 + $0x70] sm:$0xff]
        %v1600 = vld [vmem:[#allocation4 + $0x78] sm:$0xff]
        %v1601 = vld [vmem:[#allocation4 + $0x80] sm:$0xff]
        %v1602 = vld [vmem:[#allocation4 + $0x88] sm:$0xff]
        %v1603 = vld [vmem:[#allocation4 + $0x90] sm:$0xff]
        %v1604 = vld [vmem:[#allocation4 + $0x98] sm:$0xff]
        %v1605 = vld [vmem:[#allocation4 + $0xa0] sm:$0xff]
        %v1606 = vld [vmem:[#allocation4 + $0xa8] sm:$0xff]
        %v1607 = vld [vmem:[#allocation4 + $0xb0] sm:$0xff]
        %v1608 = vld [vmem:[#allocation4 + $0xb8] sm:$0xff]
        %v1609 = vld [vmem:[#allocation4 + $0xc0] sm:$0xff]
        %v1610 = vld [vmem:[#allocation4 + $0xc8] sm:$0xff]
        %v1611 = vld [vmem:[#allocation4 + $0xd0] sm:$0xff]
        %v1612 = vld [vmem:[#allocation4 + $0xd8] sm:$0xff]
        %v1613 = vld [vmem:[#allocation4 + $0xe0] sm:$0xff]
        %v1614 = vld [vmem:[#allocation4 + $0xe8] sm:$0xff]
        %v1615 = vld [vmem:[#allocation4 + $0xf0] sm:$0xff]
        %v1616 = vld [vmem:[#allocation4 + $0xf8] sm:$0xff]
        %v1617 = vpack.c.bf16 %v1584, %v1584
        %v1618 = vld [vmem:[%s11] sm:$0xf]
        %v1620 = vlaneseq
        %v1621 = vshrl.u32 %v1620, 7
        %v1622 = vsub.s32 0, %v1621
        %v1623 = vrot.slane %v1618, %v1622
        %v1624 = vlaneseq
        %v1625 = vshrl.u32 %v1624, 7
        %v1626 = vsub.s32 1, %v1625
        %v1627 = vrot.slane %v1618, %v1626
        %v1628 = vlaneseq
        %v1629 = vshrl.u32 %v1628, 7
        %v1630 = vsub.s32 2, %v1629
        %v1631 = vrot.slane %v1618, %v1630
        %v1632 = vlaneseq
        %v1633 = vshrl.u32 %v1632, 7
        %v1634 = vsub.s32 3, %v1633
        %v1635 = vrot.slane %v1618, %v1634
        %v1672 = vunpack.c.l.b16 %v1585
        %v1673 = vunpack.c.h.b16 %v1585
        %v1674 = vunpack.c.l.b16 %v1586
        %v1675 = vunpack.c.h.b16 %v1586
        %v1676 = vunpack.c.l.b16 %v1587
        %v1677 = vunpack.c.h.b16 %v1587
        %v1678 = vunpack.c.l.b16 %v1588
        %v1679 = vunpack.c.h.b16 %v1588
        %v1680 = vunpack.c.l.b16 %v1589
        %v1681 = vunpack.c.h.b16 %v1589
        %v1682 = vunpack.c.l.b16 %v1590
        %v1683 = vunpack.c.h.b16 %v1590
        %v1684 = vunpack.c.l.b16 %v1591
        %v1685 = vunpack.c.h.b16 %v1591
        %v1686 = vunpack.c.l.b16 %v1592
        %v1687 = vunpack.c.h.b16 %v1592
        %v1688 = vunpack.c.l.b16 %v1593
        %v1689 = vunpack.c.h.b16 %v1593
        %v1690 = vunpack.c.l.b16 %v1594
        %v1691 = vunpack.c.h.b16 %v1594
        %v1692 = vunpack.c.l.b16 %v1595
        %v1693 = vunpack.c.h.b16 %v1595
        %v1694 = vunpack.c.l.b16 %v1596
        %v1695 = vunpack.c.h.b16 %v1596
        %v1696 = vunpack.c.l.b16 %v1597
        %v1697 = vunpack.c.h.b16 %v1597
        %v1698 = vunpack.c.l.b16 %v1598
        %v1699 = vunpack.c.h.b16 %v1598
        %v1700 = vunpack.c.l.b16 %v1599
        %v1701 = vunpack.c.h.b16 %v1599
        %v1702 = vunpack.c.l.b16 %v1600
        %v1703 = vunpack.c.h.b16 %v1600
        %v1704 = vunpack.c.l.b16 %v1601
        %v1705 = vunpack.c.h.b16 %v1601
        %v1706 = vunpack.c.l.b16 %v1602
        %v1707 = vunpack.c.h.b16 %v1602
        %v1708 = vunpack.c.l.b16 %v1603
        %v1709 = vunpack.c.h.b16 %v1603
        %v1710 = vunpack.c.l.b16 %v1604
        %v1711 = vunpack.c.h.b16 %v1604
        %v1712 = vunpack.c.l.b16 %v1605
        %v1713 = vunpack.c.h.b16 %v1605
        %v1714 = vunpack.c.l.b16 %v1606
        %v1715 = vunpack.c.h.b16 %v1606
        %v1716 = vunpack.c.l.b16 %v1607
        %v1717 = vunpack.c.h.b16 %v1607
        %v1718 = vunpack.c.l.b16 %v1608
        %v1719 = vunpack.c.h.b16 %v1608
        %v1720 = vunpack.c.l.b16 %v1609
        %v1721 = vunpack.c.h.b16 %v1609
        %v1722 = vunpack.c.l.b16 %v1610
        %v1723 = vunpack.c.h.b16 %v1610
        %v1724 = vunpack.c.l.b16 %v1611
        %v1725 = vunpack.c.h.b16 %v1611
        %v1726 = vunpack.c.l.b16 %v1612
        %v1727 = vunpack.c.h.b16 %v1612
        %v1728 = vunpack.c.l.b16 %v1613
        %v1729 = vunpack.c.h.b16 %v1613
        %v1730 = vunpack.c.l.b16 %v1614
        %v1731 = vunpack.c.h.b16 %v1614
        %v1732 = vunpack.c.l.b16 %v1615
        %v1733 = vunpack.c.h.b16 %v1615
        %v1734 = vunpack.c.l.b16 %v1616
        %v1735 = vunpack.c.h.b16 %v1616
        %v1736 = vpack.c.b16 %v1676, %v1672
        %v1737 = vpack.c.b16 %v1677, %v1673
        %v1738 = vpack.c.b16 %v1678, %v1674
        %v1739 = vpack.c.b16 %v1679, %v1675
        %v1740 = vpack.c.b16 %v1684, %v1680
        %v1741 = vpack.c.b16 %v1685, %v1681
        %v1742 = vpack.c.b16 %v1686, %v1682
        %v1743 = vpack.c.b16 %v1687, %v1683
        %v1744 = vpack.c.b16 %v1692, %v1688
        %v1745 = vpack.c.b16 %v1693, %v1689
        %v1746 = vpack.c.b16 %v1694, %v1690
        %v1747 = vpack.c.b16 %v1695, %v1691
        %v1748 = vpack.c.b16 %v1700, %v1696
        %v1749 = vpack.c.b16 %v1701, %v1697
        %v1750 = vpack.c.b16 %v1702, %v1698
        %v1751 = vpack.c.b16 %v1703, %v1699
        %v1752 = vpack.c.b16 %v1708, %v1704
        %v1753 = vpack.c.b16 %v1709, %v1705
        %v1754 = vpack.c.b16 %v1710, %v1706
        %v1755 = vpack.c.b16 %v1711, %v1707
        %v1756 = vpack.c.b16 %v1716, %v1712
        %v1757 = vpack.c.b16 %v1717, %v1713
        %v1758 = vpack.c.b16 %v1718, %v1714
        %v1759 = vpack.c.b16 %v1719, %v1715
        %v1760 = vpack.c.b16 %v1724, %v1720
        %v1761 = vpack.c.b16 %v1725, %v1721
        %v1762 = vpack.c.b16 %v1726, %v1722
        %v1763 = vpack.c.b16 %v1727, %v1723
        %v1764 = vpack.c.b16 %v1732, %v1728
        %v1765 = vpack.c.b16 %v1733, %v1729
        %v1766 = vpack.c.b16 %v1734, %v1730
        %v1767 = vpack.c.b16 %v1735, %v1731
        %1800 = vmatprep.subr.bf16.mxu0 %v1737
        %1801 = vmatpush1.bf16.msra.mxu0 %v1736
        %1802 = vmatprep.subr.bf16.mxu0 %v1741
        %1803 = vmatpush1.bf16.msra.mxu0 %v1740
        %1804 = vmatprep.subr.bf16.mxu0 %v1745
        %1805 = vmatpush1.bf16.msra.mxu0 %v1744
        %1806 = vmatprep.subr.bf16.mxu0 %v1749
        %1807 = vmatpush1.bf16.msra.mxu0 %v1748
        %1808 = vmatprep.subr.bf16.mxu0 %v1753
        %1809 = vmatpush1.bf16.msra.mxu0 %v1752
        %1810 = vmatprep.subr.bf16.mxu0 %v1757
        %1811 = vmatpush1.bf16.msra.mxu0 %v1756
        %1812 = vmatprep.subr.bf16.mxu0 %v1761
        %1813 = vmatpush1.bf16.msra.mxu0 %v1760
        %1814 = vmatprep.subr.bf16.mxu0 %v1765
        %1815 = vmatpush1.bf16.msra.mxu0 %v1764
        %1816 = vmatprep.subr.bf16.mxu0 0
        %1817 = vmatpush1.bf16.msra.mxu0 0
        %1818 = vmatprep.subr.bf16.mxu0 0
        %1819 = vmatpush1.bf16.msra.mxu0 0
        %1820 = vmatprep.subr.bf16.mxu0 0
        %1821 = vmatpush1.bf16.msra.mxu0 0
        %1822 = vmatprep.subr.bf16.mxu0 0
        %1823 = vmatpush1.bf16.msra.mxu0 0
        %1824 = vmatprep.subr.bf16.mxu0 0
        %1825 = vmatpush1.bf16.msra.mxu0 0
        %1826 = vmatprep.subr.bf16.mxu0 0
        %1827 = vmatpush1.bf16.msra.mxu0 0
        %1828 = vmatprep.subr.bf16.mxu0 0
        %1829 = vmatpush1.bf16.msra.mxu0 0
        %1830 = vmatprep.subr.bf16.mxu0 0
        %1831 = vmatpush1.bf16.msra.mxu0 0
        %1832 = vmatprep.mubr.bf16.mxu0 0
        %1833 = vmatmul.mubr.bf16.gmra.mrb[0].mxu0 %v1617
        %v1834 = vpop.f32.mrb[0].mxu0
        %v1835 = vadd.f32 %v1623, %v1834
        %v1836 = vpop.f32.mrb[0].mxu0
        %v1837 = vadd.f32 %v1627, %v1836
        %v1838 = vpop.f32.mrb[0].mxu0
        %v1839 = vpop.f32.mrb[0].mxu0
        %1840 = vdwg.mxu0
        %1841 = vmatprep.subr.bf16.mxu0 %v1739
        %1842 = vmatpush1.bf16.msra.mxu0 %v1738
        %1843 = vmatprep.subr.bf16.mxu0 %v1743
        %1844 = vmatpush1.bf16.msra.mxu0 %v1742
        %1845 = vmatprep.subr.bf16.mxu0 %v1747
        %1846 = vmatpush1.bf16.msra.mxu0 %v1746
        %1847 = vmatprep.subr.bf16.mxu0 %v1751
        %1848 = vmatpush1.bf16.msra.mxu0 %v1750
        %1849 = vmatprep.subr.bf16.mxu0 %v1755
        %1850 = vmatpush1.bf16.msra.mxu0 %v1754
        %1851 = vmatprep.subr.bf16.mxu0 %v1759
        %1852 = vmatpush1.bf16.msra.mxu0 %v1758
        %1853 = vmatprep.subr.bf16.mxu0 %v1763
        %1854 = vmatpush1.bf16.msra.mxu0 %v1762
        %1855 = vmatprep.subr.bf16.mxu0 %v1767
        %1856 = vmatpush1.bf16.msra.mxu0 %v1766
        %1857 = vmatprep.subr.bf16.mxu0 0
        %1858 = vmatpush1.bf16.msra.mxu0 0
        %1859 = vmatprep.subr.bf16.mxu0 0
        %1860 = vmatpush1.bf16.msra.mxu0 0
        %1861 = vmatprep.subr.bf16.mxu0 0
        %1862 = vmatpush1.bf16.msra.mxu0 0
        %1863 = vmatprep.subr.bf16.mxu0 0
        %1864 = vmatpush1.bf16.msra.mxu0 0
        %1865 = vmatprep.subr.bf16.mxu0 0
        %1866 = vmatpush1.bf16.msra.mxu0 0
        %1867 = vmatprep.subr.bf16.mxu0 0
        %1868 = vmatpush1.bf16.msra.mxu0 0
        %1869 = vmatprep.subr.bf16.mxu0 0
        %1870 = vmatpush1.bf16.msra.mxu0 0
        %1871 = vmatprep.subr.bf16.mxu0 0
        %1872 = vmatpush1.bf16.msra.mxu0 0
        %1873 = vmatprep.mubr.bf16.mxu0 0
        %1874 = vmatmul.mubr.bf16.gmra.mrb[0].mxu0 %v1617
        %v1875 = vpop.f32.mrb[0].mxu0
        %v1876 = vadd.f32 %v1631, %v1875
        %v1877 = vpop.f32.mrb[0].mxu0
        %v1878 = vadd.f32 %v1635, %v1877
        %v1879 = vpop.f32.mrb[0].mxu0
        %v1880 = vpop.f32.mrb[0].mxu0
        %1881 = vdwg.mxu0
        %v1882 = vmul.f32 %v1835, %v1835
        %v1883 = vmul.f32 %v1837, %v1837
        %v1884 = vmul.f32 %v1876, %v1876
        %v1885 = vmul.f32 %v1878, %v1878
        %v1886 = vmul.f32 %v1835, %v1882
        %v1887 = vmul.f32 %v1837, %v1883
        %v1888 = vmul.f32 %v1876, %v1884
        %v1889 = vmul.f32 %v1878, %v1885
        %v1890 = vmul.f32 %v1886, 0.044715
        %v1891 = vmul.f32 %v1887, 0.044715
        %v1892 = vmul.f32 %v1888, 0.044715
        %v1893 = vmul.f32 %v1889, 0.044715
        %v1894 = vadd.f32 %v1835, %v1890
        %v1895 = vadd.f32 %v1837, %v1891
        %v1896 = vadd.f32 %v1876, %v1892
        %v1897 = vadd.f32 %v1878, %v1893
        %v1898 = vmul.f32 %v1894, 0.7978846
        %v1899 = vmul.f32 %v1895, 0.7978846
        %v1900 = vmul.f32 %v1896, 0.7978846
        %v1901 = vmul.f32 %v1897, 0.7978846
        %v1902 = vtanh.pop %v1898
        %v1903 = vtanh.pop %v1899
        %v1904 = vtanh.pop %v1900
        %v1905 = vtanh.pop %v1901
        %v1906 = vadd.f32 %v1902, 1.0
        %v1907 = vadd.f32 %v1903, 1.0
        %v1908 = vadd.f32 %v1904, 1.0
        %v1909 = vadd.f32 %v1905, 1.0
        %v1910 = vmul.f32 %v1906, 0.5
        %v1911 = vmul.f32 %v1907, 0.5
        %v1912 = vmul.f32 %v1908, 0.5
        %v1913 = vmul.f32 %v1909, 0.5
        %v1914 = vmul.f32 %v1835, %v1910
        %v1915 = vmul.f32 %v1837, %v1911
        %v1916 = vmul.f32 %v1876, %v1912
        %v1917 = vmul.f32 %v1878, %v1913
        %v1918 = vld [vmem:[#allocation6] sm:$0xf]
        %v1919 = vld [vmem:[#allocation6 + $0x4] sm:$0xf]
        %v1920 = vld [vmem:[#allocation6 + $0x8] sm:$0xf]
        %v1921 = vld [vmem:[#allocation6 + $0xc] sm:$0xf]
        %v1922 = vld [vmem:[#allocation6 + $0x10] sm:$0xf]
        %v1923 = vld [vmem:[#allocation6 + $0x14] sm:$0xf]
        %v1924 = vld [vmem:[#allocation6 + $0x18] sm:$0xf]
        %v1925 = vld [vmem:[#allocation6 + $0x1c] sm:$0xf]
        %v1926 = vld [vmem:[#allocation6 + $0x20] sm:$0xf]
        %v1927 = vld [vmem:[#allocation6 + $0x24] sm:$0xf]
        %v1928 = vld [vmem:[#allocation6 + $0x28] sm:$0xf]
        %v1929 = vld [vmem:[#allocation6 + $0x2c] sm:$0xf]
        %v1930 = vld [vmem:[#allocation6 + $0x30] sm:$0xf]
        %v1931 = vld [vmem:[#allocation6 + $0x34] sm:$0xf]
        %v1932 = vld [vmem:[#allocation6 + $0x38] sm:$0xf]
        %v1933 = vld [vmem:[#allocation6 + $0x3c] sm:$0xf]
        %v1934 = vld [vmem:[#allocation6 + $0x40] sm:$0xf]
        %v1935 = vld [vmem:[#allocation6 + $0x44] sm:$0xf]
        %v1936 = vld [vmem:[#allocation6 + $0x48] sm:$0xf]
        %v1937 = vld [vmem:[#allocation6 + $0x4c] sm:$0xf]
        %v1938 = vld [vmem:[#allocation6 + $0x50] sm:$0xf]
        %v1939 = vld [vmem:[#allocation6 + $0x54] sm:$0xf]
        %v1940 = vld [vmem:[#allocation6 + $0x58] sm:$0xf]
        %v1941 = vld [vmem:[#allocation6 + $0x5c] sm:$0xf]
        %v1942 = vld [vmem:[#allocation6 + $0x60] sm:$0xf]
        %v1943 = vld [vmem:[#allocation6 + $0x64] sm:$0xf]
        %v1944 = vld [vmem:[#allocation6 + $0x68] sm:$0xf]
        %v1945 = vld [vmem:[#allocation6 + $0x6c] sm:$0xf]
        %v1946 = vld [vmem:[#allocation6 + $0x70] sm:$0xf]
        %v1947 = vld [vmem:[#allocation6 + $0x74] sm:$0xf]
        %v1948 = vld [vmem:[#allocation6 + $0x78] sm:$0xf]
        %v1949 = vld [vmem:[#allocation6 + $0x7c] sm:$0xf]
        %v1950 = vld [vmem:[#allocation6 + $0x80] sm:$0xf]
        %v1951 = vld [vmem:[#allocation6 + $0x84] sm:$0xf]
        %v1952 = vld [vmem:[#allocation6 + $0x88] sm:$0xf]
        %v1953 = vld [vmem:[#allocation6 + $0x8c] sm:$0xf]
        %v1954 = vld [vmem:[#allocation6 + $0x90] sm:$0xf]
        %v1955 = vld [vmem:[#allocation6 + $0x94] sm:$0xf]
        %v1956 = vld [vmem:[#allocation6 + $0x98] sm:$0xf]
        %v1957 = vld [vmem:[#allocation6 + $0x9c] sm:$0xf]
        %v1958 = vld [vmem:[#allocation6 + $0xa0] sm:$0xf]
        %v1959 = vld [vmem:[#allocation6 + $0xa4] sm:$0xf]
        %v1960 = vld [vmem:[#allocation6 + $0xa8] sm:$0xf]
        %v1961 = vld [vmem:[#allocation6 + $0xac] sm:$0xf]
        %v1962 = vld [vmem:[#allocation6 + $0xb0] sm:$0xf]
        %v1963 = vld [vmem:[#allocation6 + $0xb4] sm:$0xf]
        %v1964 = vld [vmem:[#allocation6 + $0xb8] sm:$0xf]
        %v1965 = vld [vmem:[#allocation6 + $0xbc] sm:$0xf]
        %v1966 = vld [vmem:[#allocation6 + $0xc0] sm:$0xf]
        %v1967 = vld [vmem:[#allocation6 + $0xc4] sm:$0xf]
        %v1968 = vld [vmem:[#allocation6 + $0xc8] sm:$0xf]
        %v1969 = vld [vmem:[#allocation6 + $0xcc] sm:$0xf]
        %v1970 = vld [vmem:[#allocation6 + $0xd0] sm:$0xf]
        %v1971 = vld [vmem:[#allocation6 + $0xd4] sm:$0xf]
        %v1972 = vld [vmem:[#allocation6 + $0xd8] sm:$0xf]
        %v1973 = vld [vmem:[#allocation6 + $0xdc] sm:$0xf]
        %v1974 = vld [vmem:[#allocation6 + $0xe0] sm:$0xf]
        %v1975 = vld [vmem:[#allocation6 + $0xe4] sm:$0xf]
        %v1976 = vld [vmem:[#allocation6 + $0xe8] sm:$0xf]
        %v1977 = vld [vmem:[#allocation6 + $0xec] sm:$0xf]
        %v1978 = vld [vmem:[#allocation6 + $0xf0] sm:$0xf]
        %v1979 = vld [vmem:[#allocation6 + $0xf4] sm:$0xf]
        %v1980 = vld [vmem:[#allocation6 + $0xf8] sm:$0xf]
        %v1981 = vld [vmem:[#allocation6 + $0xfc] sm:$0xf]
        %v1982 = vpack.c.bf16 %v1914, %v1914
        %v1983 = vpack.c.bf16 %v1915, %v1915
        %v1984 = vpack.c.bf16 %v1916, %v1916
        %v1985 = vpack.c.bf16 %v1917, %v1917
        %v1986 = vld [vmem:[%s13] sm:$0x1]
        %v1988 = vlaneseq
        %v1989 = vshrl.u32 %v1988, 7
        %v1990 = vsub.s32 0, %v1989
        %v1991 = vrot.slane %v1986, %v1990
        %v2057 = vunpack.c.l.b16 %v1918
        %v2058 = vunpack.c.l.b16 %v1919
        %v2059 = vunpack.c.l.b16 %v1920
        %v2060 = vunpack.c.l.b16 %v1921
        %v2061 = vunpack.c.l.b16 %v1922
        %v2062 = vunpack.c.l.b16 %v1923
        %v2063 = vunpack.c.l.b16 %v1924
        %v2064 = vunpack.c.l.b16 %v1925
        %v2065 = vunpack.c.l.b16 %v1926
        %v2066 = vunpack.c.l.b16 %v1927
        %v2067 = vunpack.c.l.b16 %v1928
        %v2068 = vunpack.c.l.b16 %v1929
        %v2069 = vunpack.c.l.b16 %v1930
        %v2070 = vunpack.c.l.b16 %v1931
        %v2071 = vunpack.c.l.b16 %v1932
        %v2072 = vunpack.c.l.b16 %v1933
        %v2073 = vunpack.c.l.b16 %v1934
        %v2074 = vunpack.c.l.b16 %v1935
        %v2075 = vunpack.c.l.b16 %v1936
        %v2076 = vunpack.c.l.b16 %v1937
        %v2077 = vunpack.c.l.b16 %v1938
        %v2078 = vunpack.c.l.b16 %v1939
        %v2079 = vunpack.c.l.b16 %v1940
        %v2080 = vunpack.c.l.b16 %v1941
        %v2081 = vunpack.c.l.b16 %v1942
        %v2082 = vunpack.c.l.b16 %v1943
        %v2083 = vunpack.c.l.b16 %v1944
        %v2084 = vunpack.c.l.b16 %v1945
        %v2085 = vunpack.c.l.b16 %v1946
        %v2086 = vunpack.c.l.b16 %v1947
        %v2087 = vunpack.c.l.b16 %v1948
        %v2088 = vunpack.c.l.b16 %v1949
        %v2089 = vunpack.c.l.b16 %v1950
        %v2090 = vunpack.c.l.b16 %v1951
        %v2091 = vunpack.c.l.b16 %v1952
        %v2092 = vunpack.c.l.b16 %v1953
        %v2093 = vunpack.c.l.b16 %v1954
        %v2094 = vunpack.c.l.b16 %v1955
        %v2095 = vunpack.c.l.b16 %v1956
        %v2096 = vunpack.c.l.b16 %v1957
        %v2097 = vunpack.c.l.b16 %v1958
        %v2098 = vunpack.c.l.b16 %v1959
        %v2099 = vunpack.c.l.b16 %v1960
        %v2100 = vunpack.c.l.b16 %v1961
        %v2101 = vunpack.c.l.b16 %v1962
        %v2102 = vunpack.c.l.b16 %v1963
        %v2103 = vunpack.c.l.b16 %v1964
        %v2104 = vunpack.c.l.b16 %v1965
        %v2105 = vunpack.c.l.b16 %v1966
        %v2106 = vunpack.c.l.b16 %v1967
        %v2107 = vunpack.c.l.b16 %v1968
        %v2108 = vunpack.c.l.b16 %v1969
        %v2109 = vunpack.c.l.b16 %v1970
        %v2110 = vunpack.c.l.b16 %v1971
        %v2111 = vunpack.c.l.b16 %v1972
        %v2112 = vunpack.c.l.b16 %v1973
        %v2113 = vunpack.c.l.b16 %v1974
        %v2114 = vunpack.c.l.b16 %v1975
        %v2115 = vunpack.c.l.b16 %v1976
        %v2116 = vunpack.c.l.b16 %v1977
        %v2117 = vunpack.c.l.b16 %v1978
        %v2118 = vunpack.c.l.b16 %v1979
        %v2119 = vunpack.c.l.b16 %v1980
        %v2120 = vunpack.c.l.b16 %v1981
        %v2121 = vpack.c.b16 %v2058, %v2057
        %v2122 = vpack.c.b16 %v2060, %v2059
        %v2123 = vpack.c.b16 %v2062, %v2061
        %v2124 = vpack.c.b16 %v2064, %v2063
        %v2125 = vpack.c.b16 %v2066, %v2065
        %v2126 = vpack.c.b16 %v2068, %v2067
        %v2127 = vpack.c.b16 %v2070, %v2069
        %v2128 = vpack.c.b16 %v2072, %v2071
        %v2129 = vpack.c.b16 %v2074, %v2073
        %v2130 = vpack.c.b16 %v2076, %v2075
        %v2131 = vpack.c.b16 %v2078, %v2077
        %v2132 = vpack.c.b16 %v2080, %v2079
        %v2133 = vpack.c.b16 %v2082, %v2081
        %v2134 = vpack.c.b16 %v2084, %v2083
        %v2135 = vpack.c.b16 %v2086, %v2085
        %v2136 = vpack.c.b16 %v2088, %v2087
        %v2137 = vpack.c.b16 %v2090, %v2089
        %v2138 = vpack.c.b16 %v2092, %v2091
        %v2139 = vpack.c.b16 %v2094, %v2093
        %v2140 = vpack.c.b16 %v2096, %v2095
        %v2141 = vpack.c.b16 %v2098, %v2097
        %v2142 = vpack.c.b16 %v2100, %v2099
        %v2143 = vpack.c.b16 %v2102, %v2101
        %v2144 = vpack.c.b16 %v2104, %v2103
        %v2145 = vpack.c.b16 %v2106, %v2105
        %v2146 = vpack.c.b16 %v2108, %v2107
        %v2147 = vpack.c.b16 %v2110, %v2109
        %v2148 = vpack.c.b16 %v2112, %v2111
        %v2149 = vpack.c.b16 %v2114, %v2113
        %v2150 = vpack.c.b16 %v2116, %v2115
        %v2151 = vpack.c.b16 %v2118, %v2117
        %v2152 = vpack.c.b16 %v2120, %v2119
        %2185 = vmatprep.subr.bf16.mxu0 0
        %2186 = vmatpush1.bf16.msra.mxu0 %v2121
        %2187 = vmatprep.subr.bf16.mxu0 0
        %2188 = vmatpush1.bf16.msra.mxu0 %v2122
        %2189 = vmatprep.subr.bf16.mxu0 0
        %2190 = vmatpush1.bf16.msra.mxu0 %v2123
        %2191 = vmatprep.subr.bf16.mxu0 0
        %2192 = vmatpush1.bf16.msra.mxu0 %v2124
        %2193 = vmatprep.subr.bf16.mxu0 0
        %2194 = vmatpush1.bf16.msra.mxu0 %v2125
        %2195 = vmatprep.subr.bf16.mxu0 0
        %2196 = vmatpush1.bf16.msra.mxu0 %v2126
        %2197 = vmatprep.subr.bf16.mxu0 0
        %2198 = vmatpush1.bf16.msra.mxu0 %v2127
        %2199 = vmatprep.subr.bf16.mxu0 0
        %2200 = vmatpush1.bf16.msra.mxu0 %v2128
        %2201 = vmatprep.subr.bf16.mxu0 0
        %2202 = vmatpush1.bf16.msra.mxu0 %v2129
        %2203 = vmatprep.subr.bf16.mxu0 0
        %2204 = vmatpush1.bf16.msra.mxu0 %v2130
        %2205 = vmatprep.subr.bf16.mxu0 0
        %2206 = vmatpush1.bf16.msra.mxu0 %v2131
        %2207 = vmatprep.subr.bf16.mxu0 0
        %2208 = vmatpush1.bf16.msra.mxu0 %v2132
        %2209 = vmatprep.subr.bf16.mxu0 0
        %2210 = vmatpush1.bf16.msra.mxu0 %v2133
        %2211 = vmatprep.subr.bf16.mxu0 0
        %2212 = vmatpush1.bf16.msra.mxu0 %v2134
        %2213 = vmatprep.subr.bf16.mxu0 0
        %2214 = vmatpush1.bf16.msra.mxu0 %v2135
        %2215 = vmatprep.subr.bf16.mxu0 0
        %2216 = vmatpush1.bf16.msra.mxu0 %v2136
        %2217 = vmatprep.mubr.bf16.mxu0 %v1983
        %2218 = vmatmul.mubr.bf16.gmra.mrb[0].mxu0 %v1982
        %v2219 = vpop.f32.mrb[0].mxu0
        %v2220 = vadd.f32 %v1991, %v2219
        %v2221 = vpop.f32.mrb[0].mxu0
        %v2222 = vpop.f32.mrb[0].mxu0
        %v2223 = vpop.f32.mrb[0].mxu0
        %2224 = vdwg.mxu0
        %2225 = vmatprep.subr.bf16.mxu0 0
        %2226 = vmatpush1.bf16.msra.mxu0 %v2137
        %2227 = vmatprep.subr.bf16.mxu0 0
        %2228 = vmatpush1.bf16.msra.mxu0 %v2138
        %2229 = vmatprep.subr.bf16.mxu0 0
        %2230 = vmatpush1.bf16.msra.mxu0 %v2139
        %2231 = vmatprep.subr.bf16.mxu0 0
        %2232 = vmatpush1.bf16.msra.mxu0 %v2140
        %2233 = vmatprep.subr.bf16.mxu0 0
        %2234 = vmatpush1.bf16.msra.mxu0 %v2141
        %2235 = vmatprep.subr.bf16.mxu0 0
        %2236 = vmatpush1.bf16.msra.mxu0 %v2142
        %2237 = vmatprep.subr.bf16.mxu0 0
        %2238 = vmatpush1.bf16.msra.mxu0 %v2143
        %2239 = vmatprep.subr.bf16.mxu0 0
        %2240 = vmatpush1.bf16.msra.mxu0 %v2144
        %2241 = vmatprep.subr.bf16.mxu0 0
        %2242 = vmatpush1.bf16.msra.mxu0 %v2145
        %2243 = vmatprep.subr.bf16.mxu0 0
        %2244 = vmatpush1.bf16.msra.mxu0 %v2146
        %2245 = vmatprep.subr.bf16.mxu0 0
        %2246 = vmatpush1.bf16.msra.mxu0 %v2147
        %2247 = vmatprep.subr.bf16.mxu0 0
        %2248 = vmatpush1.bf16.msra.mxu0 %v2148
        %2249 = vmatprep.subr.bf16.mxu0 0
        %2250 = vmatpush1.bf16.msra.mxu0 %v2149
        %2251 = vmatprep.subr.bf16.mxu0 0
        %2252 = vmatpush1.bf16.msra.mxu0 %v2150
        %2253 = vmatprep.subr.bf16.mxu0 0
        %2254 = vmatpush1.bf16.msra.mxu0 %v2151
        %2255 = vmatprep.subr.bf16.mxu0 0
        %2256 = vmatpush1.bf16.msra.mxu0 %v2152
        %2257 = vmatprep.mubr.bf16.mxu0 %v1985
        %2258 = vmatmul.mubr.bf16.gmra.mrb[0].mxu0 %v1984
        %v2259 = vpop.f32.mrb[0].mxu0
        %v2260 = vadd.f32 %v2220, %v2259
        %v2261 = vpop.f32.mrb[0].mxu0
        %v2262 = vpop.f32.mrb[0].mxu0
        %v2263 = vpop.f32.mrb[0].mxu0
        %2264 = vdwg.mxu0
        %v2265 = vadd.f32 %v2260, %v1584
        %v2266 = vld [vmem:[%s14] sm:$0x1]
        %v2267 = vld [vmem:[%s15] sm:$0x1]
        %2268 = vadd.xlane.f32.xlu0 %v2265
        %v2269 = vpop.xlane.xlu0 %2268
        %v2270 = vmul.f32 %v2269, %v687
        %v2271 = vsub.f32 %v2265, %v2270
        %v2272 = vmul.f32 %v2271, %v2271
        %2273 = vadd.xlane.f32.xlu0 %v2272
        %v2274 = vpop.xlane.xlu0 %2273
        %v2275 = vmul.f32 %v2274, %v687
        %v2276 = vadd.f32 %v2275, 1e-12
        %v2277 = vrsqrt.pop %v2276
        %v2278 = vmul.f32 %v2271, %v2277
        %v2280 = vlaneseq
        %v2281 = vshrl.u32 %v2280, 7
        %v2282 = vsub.s32 0, %v2281
        %v2283 = vrot.slane %v2266, %v2282
        %v2285 = vmul.f32 %v2278, %v2283
        %v2287 = vlaneseq
        %v2288 = vshrl.u32 %v2287, 7
        %v2289 = vsub.s32 0, %v2288
        %v2290 = vrot.slane %v2267, %v2289
        %v2292 = vadd.f32 %v2285, %v2290
        %s2293 = scalar_lea.vmem [#allocation2], 192
        %v2294 = vld [vmem:[%s2293] sm:$0xff]
        %v2295 = vld [vmem:[%s2293 + $0x8] sm:$0xf]
        %v2296 = vld [vmem:[%s2293 + $0xc] sm:$0xff]
        %v2297 = vld [vmem:[%s2293 + $0x14] sm:$0xf]
        %v2298 = vld [vmem:[%s2293 + $0x18] sm:$0xff]
        %v2299 = vld [vmem:[%s2293 + $0x20] sm:$0xf]
        %v2300 = vld [vmem:[%s2293 + $0x24] sm:$0xff]
        %v2301 = vld [vmem:[%s2293 + $0x2c] sm:$0xf]
        %v2302 = vld [vmem:[%s2293 + $0x30] sm:$0xff]
        %v2303 = vld [vmem:[%s2293 + $0x38] sm:$0xf]
        %v2304 = vld [vmem:[%s2293 + $0x3c] sm:$0xff]
        %v2305 = vld [vmem:[%s2293 + $0x44] sm:$0xf]
        %v2306 = vld [vmem:[%s2293 + $0x48] sm:$0xff]
        %v2307 = vld [vmem:[%s2293 + $0x50] sm:$0xf]
        %v2308 = vld [vmem:[%s2293 + $0x54] sm:$0xff]
        %v2309 = vld [vmem:[%s2293 + $0x5c] sm:$0xf]
        %v2310 = vld [vmem:[%s2293 + $0x60] sm:$0xff]
        %v2311 = vld [vmem:[%s2293 + $0x68] sm:$0xf]
        %v2312 = vld [vmem:[%s2293 + $0x6c] sm:$0xff]
        %v2313 = vld [vmem:[%s2293 + $0x74] sm:$0xf]
        %v2314 = vld [vmem:[%s2293 + $0x78] sm:$0xff]
        %v2315 = vld [vmem:[%s2293 + $0x80] sm:$0xf]
        %v2316 = vld [vmem:[%s2293 + $0x84] sm:$0xff]
        %v2317 = vld [vmem:[%s2293 + $0x8c] sm:$0xf]
        %v2318 = vld [vmem:[%s2293 + $0x90] sm:$0xff]
        %v2319 = vld [vmem:[%s2293 + $0x98] sm:$0xf]
        %v2320 = vld [vmem:[%s2293 + $0x9c] sm:$0xff]
        %v2321 = vld [vmem:[%s2293 + $0xa4] sm:$0xf]
        %v2322 = vld [vmem:[%s2293 + $0xa8] sm:$0xff]
        %v2323 = vld [vmem:[%s2293 + $0xb0] sm:$0xf]
        %v2324 = vld [vmem:[%s2293 + $0xb4] sm:$0xff]
        %v2325 = vld [vmem:[%s2293 + $0xbc] sm:$0xf]
        %v2326 = vpack.c.bf16 %v2292, %v2292
        %s2327 = scalar_lea.vmem %s5, 3
        %v2328 = vld [vmem:[%s2327] sm:$0x7]
        %v2330 = vlaneseq
        %v2331 = vshrl.u32 %v2330, 7
        %v2332 = vsub.s32 0, %v2331
        %v2333 = vrot.slane %v2328, %v2332
        %v2334 = vlaneseq
        %v2335 = vshrl.u32 %v2334, 7
        %v2336 = vsub.s32 1, %v2335
        %v2337 = vrot.slane %v2328, %v2336
        %v2338 = vlaneseq
        %v2339 = vshrl.u32 %v2338, 7
        %v2340 = vsub.s32 2, %v2339
        %v2341 = vrot.slane %v2328, %v2340
        %v2377 = vunpack.c.l.b16 %v2294
        %v2378 = vunpack.c.h.b16 %v2294
        %v2379 = vunpack.c.l.b16 %v2295
        %v2380 = vunpack.c.l.b16 %v2296
        %v2381 = vunpack.c.h.b16 %v2296
        %v2382 = vunpack.c.l.b16 %v2297
        %v2383 = vunpack.c.l.b16 %v2298
        %v2384 = vunpack.c.h.b16 %v2298
        %v2385 = vunpack.c.l.b16 %v2299
        %v2386 = vunpack.c.l.b16 %v2300
        %v2387 = vunpack.c.h.b16 %v2300
        %v2388 = vunpack.c.l.b16 %v2301
        %v2389 = vunpack.c.l.b16 %v2302
        %v2390 = vunpack.c.h.b16 %v2302
        %v2391 = vunpack.c.l.b16 %v2303
        %v2392 = vunpack.c.l.b16 %v2304
        %v2393 = vunpack.c.h.b16 %v2304
        %v2394 = vunpack.c.l.b16 %v2305
        %v2395 = vunpack.c.l.b16 %v2306
        %v2396 = vunpack.c.h.b16 %v2306
        %v2397 = vunpack.c.l.b16 %v2307
        %v2398 = vunpack.c.l.b16 %v2308
        %v2399 = vunpack.c.h.b16 %v2308
        %v2400 = vunpack.c.l.b16 %v2309
        %v2401 = vunpack.c.l.b16 %v2310
        %v2402 = vunpack.c.h.b16 %v2310
        %v2403 = vunpack.c.l.b16 %v2311
        %v2404 = vunpack.c.l.b16 %v2312
        %v2405 = vunpack.c.h.b16 %v2312
        %v2406 = vunpack.c.l.b16 %v2313
        %v2407 = vunpack.c.l.b16 %v2314
        %v2408 = vunpack.c.h.b16 %v2314
        %v2409 = vunpack.c.l.b16 %v2315
        %v2410 = vunpack.c.l.b16 %v2316
        %v2411 = vunpack.c.h.b16 %v2316
        %v2412 = vunpack.c.l.b16 %v2317
        %v2413 = vunpack.c.l.b16 %v2318
        %v2414 = vunpack.c.h.b16 %v2318
        %v2415 = vunpack.c.l.b16 %v2319
        %v2416 = vunpack.c.l.b16 %v2320
        %v2417 = vunpack.c.h.b16 %v2320
        %v2418 = vunpack.c.l.b16 %v2321
        %v2419 = vunpack.c.l.b16 %v2322
        %v2420 = vunpack.c.h.b16 %v2322
        %v2421 = vunpack.c.l.b16 %v2323
        %v2422 = vunpack.c.l.b16 %v2324
        %v2423 = vunpack.c.h.b16 %v2324
        %v2424 = vunpack.c.l.b16 %v2325
        %v2425 = vpack.c.b16 %v2380, %v2377
        %v2426 = vpack.c.b16 %v2381, %v2378
        %v2427 = vpack.c.b16 %v2382, %v2379
        %v2428 = vpack.c.b16 %v2386, %v2383
        %v2429 = vpack.c.b16 %v2387, %v2384
        %v2430 = vpack.c.b16 %v2388, %v2385
        %v2431 = vpack.c.b16 %v2392, %v2389
        %v2432 = vpack.c.b16 %v2393, %v2390
        %v2433 = vpack.c.b16 %v2394, %v2391
        %v2434 = vpack.c.b16 %v2398, %v2395
        %v2435 = vpack.c.b16 %v2399, %v2396
        %v2436 = vpack.c.b16 %v2400, %v2397
        %v2437 = vpack.c.b16 %v2404, %v2401
        %v2438 = vpack.c.b16 %v2405, %v2402
        %v2439 = vpack.c.b16 %v2406, %v2403
        %v2440 = vpack.c.b16 %v2410, %v2407
        %v2441 = vpack.c.b16 %v2411, %v2408
        %v2442 = vpack.c.b16 %v2412, %v2409
        %v2443 = vpack.c.b16 %v2416, %v2413
        %v2444 = vpack.c.b16 %v2417, %v2414
        %v2445 = vpack.c.b16 %v2418, %v2415
        %v2446 = vpack.c.b16 %v2422, %v2419
        %v2447 = vpack.c.b16 %v2423, %v2420
        %v2448 = vpack.c.b16 %v2424, %v2421
        %2473 = vmatprep.subr.bf16.mxu0 %v2426
        %2474 = vmatpush1.bf16.msra.mxu0 %v2425
        %2475 = vmatprep.subr.bf16.mxu0 %v2429
        %2476 = vmatpush1.bf16.msra.mxu0 %v2428
        %2477 = vmatprep.subr.bf16.mxu0 %v2432
        %2478 = vmatpush1.bf16.msra.mxu0 %v2431
        %2479 = vmatprep.subr.bf16.mxu0 %v2435
        %2480 = vmatpush1.bf16.msra.mxu0 %v2434
        %2481 = vmatprep.subr.bf16.mxu0 %v2438
        %2482 = vmatpush1.bf16.msra.mxu0 %v2437
        %2483 = vmatprep.subr.bf16.mxu0 %v2441
        %2484 = vmatpush1.bf16.msra.mxu0 %v2440
        %2485 = vmatprep.subr.bf16.mxu0 %v2444
        %2486 = vmatpush1.bf16.msra.mxu0 %v2443
        %2487 = vmatprep.subr.bf16.mxu0 %v2447
        %2488 = vmatpush1.bf16.msra.mxu0 %v2446
        %2489 = vmatprep.subr.bf16.mxu0 0
        %2490 = vmatpush1.bf16.msra.mxu0 0
        %2491 = vmatprep.subr.bf16.mxu0 0
        %2492 = vmatpush1.bf16.msra.mxu0 0
        %2493 = vmatprep.subr.bf16.mxu0 0
        %2494 = vmatpush1.bf16.msra.mxu0 0
        %2495 = vmatprep.subr.bf16.mxu0 0
        %2496 = vmatpush1.bf16.msra.mxu0 0
        %2497 = vmatprep.subr.bf16.mxu0 0
        %2498 = vmatpush1.bf16.msra.mxu0 0
        %2499 = vmatprep.subr.bf16.mxu0 0
        %2500 = vmatpush1.bf16.msra.mxu0 0
        %2501 = vmatprep.subr.bf16.mxu0 0
        %2502 = vmatpush1.bf16.msra.mxu0 0
        %2503 = vmatprep.subr.bf16.mxu0 0
        %2504 = vmatpush1.bf16.msra.mxu0 0
        %2505 = vmatprep.mubr.bf16.mxu0 0
        %2506 = vmatmul.mubr.bf16.gmra.mrb[0].mxu0 %v2326
        %v2507 = vpop.f32.mrb[0].mxu0
        %v2508 = vadd.f32 %v2333, %v2507
        %v2509 = vpop.f32.mrb[0].mxu0
        %v2510 = vadd.f32 %v2337, %v2509
        %v2511 = vpop.f32.mrb[0].mxu0
        %v2512 = vpop.f32.mrb[0].mxu0
        %2513 = vdwg.mxu0
        %2514 = vmatprep.subr.bf16.mxu0 0
        %2515 = vmatpush1.bf16.msra.mxu0 %v2427
        %2516 = vmatprep.subr.bf16.mxu0 0
        %2517 = vmatpush1.bf16.msra.mxu0 %v2430
        %2518 = vmatprep.subr.bf16.mxu0 0
        %2519 = vmatpush1.bf16.msra.mxu0 %v2433
        %2520 = vmatprep.subr.bf16.mxu0 0
        %2521 = vmatpush1.bf16.msra.mxu0 %v2436
        %2522 = vmatprep.subr.bf16.mxu0 0
        %2523 = vmatpush1.bf16.msra.mxu0 %v2439
        %2524 = vmatprep.subr.bf16.mxu0 0
        %2525 = vmatpush1.bf16.msra.mxu0 %v2442
        %2526 = vmatprep.subr.bf16.mxu0 0
        %2527 = vmatpush1.bf16.msra.mxu0 %v2445
        %2528 = vmatprep.subr.bf16.mxu0 0
        %2529 = vmatpush1.bf16.msra.mxu0 %v2448
        %2530 = vmatprep.subr.bf16.mxu0 0
        %2531 = vmatpush1.bf16.msra.mxu0 0
        %2532 = vmatprep.subr.bf16.mxu0 0
        %2533 = vmatpush1.bf16.msra.mxu0 0
        %2534 = vmatprep.subr.bf16.mxu0 0
        %2535 = vmatpush1.bf16.msra.mxu0 0
        %2536 = vmatprep.subr.bf16.mxu0 0
        %2537 = vmatpush1.bf16.msra.mxu0 0
        %2538 = vmatprep.subr.bf16.mxu0 0
        %2539 = vmatpush1.bf16.msra.mxu0 0
        %2540 = vmatprep.subr.bf16.mxu0 0
        %2541 = vmatpush1.bf16.msra.mxu0 0
        %2542 = vmatprep.subr.bf16.mxu0 0
        %2543 = vmatpush1.bf16.msra.mxu0 0
        %2544 = vmatprep.subr.bf16.mxu0 0
        %2545 = vmatpush1.bf16.msra.mxu0 0
        %2546 = vmatprep.mubr.bf16.mxu0 0
        %2547 = vmatmul.mubr.bf16.gmra.mrb[0].mxu0 %v2326
        %v2548 = vpop.f32.mrb[0].mxu0
        %v2549 = vadd.f32 %v2341, %v2548
        %v2550 = vpop.f32.mrb[0].mxu0
        %v2551 = vpop.f32.mrb[0].mxu0
        %v2552 = vpop.f32.mrb[0].mxu0
        %2553 = vdwg.mxu0
        %v2554 = vpack.c.bf16 %v2508, %v2508
        %v2555 = vpack.c.bf16 %v2510, %v2510
        %v2556 = vpack.c.bf16 %v2549, %v2549
        %v2558 = vsel %vm974, %v2554, 0
        %v2561 = vsel %vm974, %v2555, 0
        %2563 = vmatprep.subr.bf16.mxu0 0
        %2564 = vmatpush1.bf16.xpose.msra.mxu0 %v2561
        %2565 = vmatprep.subr.bf16.mxu0 0
        %2566 = vmatpush1.bf16.xpose.msra.mxu0 0
        %2567 = vmatprep.subr.bf16.mxu0 0
        %2568 = vmatpush1.bf16.xpose.msra.mxu0 0
        %2569 = vmatprep.subr.bf16.mxu0 0
        %2570 = vmatpush1.bf16.xpose.msra.mxu0 0
        %2571 = vmatprep.subr.bf16.mxu0 0
        %2572 = vmatpush1.bf16.xpose.msra.mxu0 0
        %2573 = vmatprep.subr.bf16.mxu0 0
        %2574 = vmatpush1.bf16.xpose.msra.mxu0 0
        %2575 = vmatprep.subr.bf16.mxu0 0
        %2576 = vmatpush1.bf16.xpose.msra.mxu0 0
        %2577 = vmatprep.subr.bf16.mxu0 0
        %2578 = vmatpush1.bf16.xpose.msra.mxu0 0
        %2579 = vmatprep.subr.bf16.mxu0 0
        %2580 = vmatpush1.bf16.xpose.msra.mxu0 0
        %2581 = vmatprep.subr.bf16.mxu0 0
        %2582 = vmatpush1.bf16.xpose.msra.mxu0 0
        %2583 = vmatprep.subr.bf16.mxu0 0
        %2584 = vmatpush1.bf16.xpose.msra.mxu0 0
        %2585 = vmatprep.subr.bf16.mxu0 0
        %2586 = vmatpush1.bf16.xpose.msra.mxu0 0
        %2587 = vmatprep.subr.bf16.mxu0 0
        %2588 = vmatpush1.bf16.xpose.msra.mxu0 0
        %2589 = vmatprep.subr.bf16.mxu0 0
        %2590 = vmatpush1.bf16.xpose.msra.mxu0 0
        %2591 = vmatprep.subr.bf16.mxu0 0
        %2592 = vmatpush1.bf16.xpose.msra.mxu0 0
        %2593 = vmatprep.subr.bf16.mxu0 0
        %2594 = vmatpush1.bf16.xpose.msra.mxu0 0
        %2595 = vmatprep.mubr.bf16.mxu0 0
        %2596 = vmatmul.mubr.bf16.gmra.mrb[0].mxu0 %v2558
        %v2597 = vpop.f32.mrb[0].mxu0
        %v2598 = vadd.f32 0.0, %v2597
        %v2599 = vpop.f32.mrb[0].mxu0
        %v2600 = vpop.f32.mrb[0].mxu0
        %v2601 = vpop.f32.mrb[0].mxu0
        %2602 = vdwg.mxu0
        %v2603 = vmul.f32 %v2598, 0.17677669
        %v2604 = vadd.f32 %v2603, %v1026
        %v2605 = vsel %vm1029, %v2604, -inf
        %2606 = vmax.xlane.f32.xlu0 %v2605
        %v2607 = vpop.xlane.xlu0 %2606
        %v2608 = vsub.f32 %v2604, %v2607
        %v2609 = vmul.f32 %v2608, 1.442695
        %v2610 = vpow.pop %v2609
        %v2611 = vsel %vm1029, %v2610, 0.0
        %2612 = vadd.xlane.f32.xlu0 %v2611
        %v2613 = vpop.xlane.xlu0 %2612
        %v2614 = vrcp.pop %v2613
        %v2615 = vmul.f32 %v2610, %v2614
        %v2616 = vpack.c.bf16 %v2615, %v2615
        %v2618 = vsel %vm1029, %v2616, 0
        %v2621 = vsel %vm1045, %v2556, 0
        %2623 = vmatprep.subr.bf16.mxu0 0
        %2624 = vmatpush1.bf16.msra.mxu0 %v2621
        %2625 = vmatprep.subr.bf16.mxu0 0
        %2626 = vmatpush1.bf16.msra.mxu0 0
        %2627 = vmatprep.subr.bf16.mxu0 0
        %2628 = vmatpush1.bf16.msra.mxu0 0
        %2629 = vmatprep.subr.bf16.mxu0 0
        %2630 = vmatpush1.bf16.msra.mxu0 0
        %2631 = vmatprep.subr.bf16.mxu0 0
        %2632 = vmatpush1.bf16.msra.mxu0 0
        %2633 = vmatprep.subr.bf16.mxu0 0
        %2634 = vmatpush1.bf16.msra.mxu0 0
        %2635 = vmatprep.subr.bf16.mxu0 0
        %2636 = vmatpush1.bf16.msra.mxu0 0
        %2637 = vmatprep.subr.bf16.mxu0 0
        %2638 = vmatpush1.bf16.msra.mxu0 0
        %2639 = vmatprep.subr.bf16.mxu0 0
        %2640 = vmatpush1.bf16.msra.mxu0 0
        %2641 = vmatprep.subr.bf16.mxu0 0
        %2642 = vmatpush1.bf16.msra.mxu0 0
        %2643 = vmatprep.subr.bf16.mxu0 0
        %2644 = vmatpush1.bf16.msra.mxu0 0
        %2645 = vmatprep.subr.bf16.mxu0 0
        %2646 = vmatpush1.bf16.msra.mxu0 0
        %2647 = vmatprep.subr.bf16.mxu0 0
        %2648 = vmatpush1.bf16.msra.mxu0 0
        %2649 = vmatprep.subr.bf16.mxu0 0
        %2650 = vmatpush1.bf16.msra.mxu0 0
        %2651 = vmatprep.subr.bf16.mxu0 0
        %2652 = vmatpush1.bf16.msra.mxu0 0
        %2653 = vmatprep.subr.bf16.mxu0 0
        %2654 = vmatpush1.bf16.msra.mxu0 0
        %2655 = vmatprep.mubr.bf16.mxu0 0
        %2656 = vmatmul.mubr.bf16.gmra.mrb[0].mxu0 %v2618
        %v2657 = vpop.f32.mrb[0].mxu0
        %v2658 = vadd.f32 0.0, %v2657
        %v2659 = vpop.f32.mrb[0].mxu0
        %v2660 = vpop.f32.mrb[0].mxu0
        %v2661 = vpop.f32.mrb[0].mxu0
        %2662 = vdwg.mxu0
        %2664 = vrot.lane.b32.xlu0 %v2554, 96
        %v2665 = vpop.permute.xlu0 %2664
        %2667 = vrot.lane.b32.xlu0 %v2555, 96
        %v2668 = vpop.permute.xlu0 %2667
        %v2670 = vsel %vm974, %v2665, 0
        %v2673 = vsel %vm974, %v2668, 0
        %2675 = vmatprep.subr.bf16.mxu0 0
        %2676 = vmatpush1.bf16.xpose.msra.mxu0 %v2673
        %2677 = vmatprep.subr.bf16.mxu0 0
        %2678 = vmatpush1.bf16.xpose.msra.mxu0 0
        %2679 = vmatprep.subr.bf16.mxu0 0
        %2680 = vmatpush1.bf16.xpose.msra.mxu0 0
        %2681 = vmatprep.subr.bf16.mxu0 0
        %2682 = vmatpush1.bf16.xpose.msra.mxu0 0
        %2683 = vmatprep.subr.bf16.mxu0 0
        %2684 = vmatpush1.bf16.xpose.msra.mxu0 0
        %2685 = vmatprep.subr.bf16.mxu0 0
        %2686 = vmatpush1.bf16.xpose.msra.mxu0 0
        %2687 = vmatprep.subr.bf16.mxu0 0
        %2688 = vmatpush1.bf16.xpose.msra.mxu0 0
        %2689 = vmatprep.subr.bf16.mxu0 0
        %2690 = vmatpush1.bf16.xpose.msra.mxu0 0
        %2691 = vmatprep.subr.bf16.mxu0 0
        %2692 = vmatpush1.bf16.xpose.msra.mxu0 0
        %2693 = vmatprep.subr.bf16.mxu0 0
        %2694 = vmatpush1.bf16.xpose.msra.mxu0 0
        %2695 = vmatprep.subr.bf16.mxu0 0
        %2696 = vmatpush1.bf16.xpose.msra.mxu0 0
        %2697 = vmatprep.subr.bf16.mxu0 0
        %2698 = vmatpush1.bf16.xpose.msra.mxu0 0
        %2699 = vmatprep.subr.bf16.mxu0 0
        %2700 = vmatpush1.bf16.xpose.msra.mxu0 0
        %2701 = vmatprep.subr.bf16.mxu0 0
        %2702 = vmatpush1.bf16.xpose.msra.mxu0 0
        %2703 = vmatprep.subr.bf16.mxu0 0
        %2704 = vmatpush1.bf16.xpose.msra.mxu0 0
        %2705 = vmatprep.subr.bf16.mxu0 0
        %2706 = vmatpush1.bf16.xpose.msra.mxu0 0
        %2707 = vmatprep.mubr.bf16.mxu0 0
        %2708 = vmatmul.mubr.bf16.gmra.mrb[0].mxu0 %v2670
        %v2709 = vpop.f32.mrb[0].mxu0
        %v2710 = vadd.f32 0.0, %v2709
        %v2711 = vpop.f32.mrb[0].mxu0
        %v2712 = vpop.f32.mrb[0].mxu0
        %v2713 = vpop.f32.mrb[0].mxu0
        %2714 = vdwg.mxu0
        %v2715 = vmul.f32 %v2710, 0.17677669
        %v2716 = vadd.f32 %v2715, %v1026
        %v2717 = vsel %vm1029, %v2716, -inf
        %2718 = vmax.xlane.f32.xlu0 %v2717
        %v2719 = vpop.xlane.xlu0 %2718
        %v2720 = vsub.f32 %v2716, %v2719
        %v2721 = vmul.f32 %v2720, 1.442695
        %v2722 = vpow.pop %v2721
        %v2723 = vsel %vm1029, %v2722, 0.0
        %2724 = vadd.xlane.f32.xlu0 %v2723
        %v2725 = vpop.xlane.xlu0 %2724
        %v2726 = vrcp.pop %v2725
        %v2727 = vmul.f32 %v2722, %v2726
        %v2728 = vpack.c.bf16 %v2727, %v2727
        %2730 = vrot.lane.b32.xlu0 %v2556, 96
        %v2731 = vpop.permute.xlu0 %2730
        %v2733 = vsel %vm1029, %v2728, 0
        %v2736 = vsel %vm1045, %v2731, 0
        %2738 = vmatprep.subr.bf16.mxu0 0
        %2739 = vmatpush1.bf16.msra.mxu0 %v2736
        %2740 = vmatprep.subr.bf16.mxu0 0
        %2741 = vmatpush1.bf16.msra.mxu0 0
        %2742 = vmatprep.subr.bf16.mxu0 0
        %2743 = vmatpush1.bf16.msra.mxu0 0
        %2744 = vmatprep.subr.bf16.mxu0 0
        %2745 = vmatpush1.bf16.msra.mxu0 0
        %2746 = vmatprep.subr.bf16.mxu0 0
        %2747 = vmatpush1.bf16.msra.mxu0 0
        %2748 = vmatprep.subr.bf16.mxu0 0
        %2749 = vmatpush1.bf16.msra.mxu0 0
        %2750 = vmatprep.subr.bf16.mxu0 0
        %2751 = vmatpush1.bf16.msra.mxu0 0
        %2752 = vmatprep.subr.bf16.mxu0 0
        %2753 = vmatpush1.bf16.msra.mxu0 0
        %2754 = vmatprep.subr.bf16.mxu0 0
        %2755 = vmatpush1.bf16.msra.mxu0 0
        %2756 = vmatprep.subr.bf16.mxu0 0
        %2757 = vmatpush1.bf16.msra.mxu0 0
        %2758 = vmatprep.subr.bf16.mxu0 0
        %2759 = vmatpush1.bf16.msra.mxu0 0
        %2760 = vmatprep.subr.bf16.mxu0 0
        %2761 = vmatpush1.bf16.msra.mxu0 0
        %2762 = vmatprep.subr.bf16.mxu0 0
        %2763 = vmatpush1.bf16.msra.mxu0 0
        %2764 = vmatprep.subr.bf16.mxu0 0
        %2765 = vmatpush1.bf16.msra.mxu0 0
        %2766 = vmatprep.subr.bf16.mxu0 0
        %2767 = vmatpush1.bf16.msra.mxu0 0
        %2768 = vmatprep.subr.bf16.mxu0 0
        %2769 = vmatpush1.bf16.msra.mxu0 0
        %2770 = vmatprep.mubr.bf16.mxu0 0
        %2771 = vmatmul.mubr.bf16.gmra.mrb[0].mxu0 %v2733
        %v2772 = vpop.f32.mrb[0].mxu0
        %v2773 = vadd.f32 0.0, %v2772
        %v2774 = vpop.f32.mrb[0].mxu0
        %v2775 = vpop.f32.mrb[0].mxu0
        %v2776 = vpop.f32.mrb[0].mxu0
        %2777 = vdwg.mxu0
        %2778 = vrot.lane.b32.xlu0 %v2554, 64
        %v2779 = vpop.permute.xlu0 %2778
        %2780 = vrot.lane.b32.xlu0 %v2555, 64
        %v2781 = vpop.permute.xlu0 %2780
        %v2783 = vsel %vm974, %v2779, 0
        %v2786 = vsel %vm974, %v2781, 0
        %2788 = vmatprep.subr.bf16.mxu0 0
        %2789 = vmatpush1.bf16.xpose.msra.mxu0 %v2786
        %2790 = vmatprep.subr.bf16.mxu0 0
        %2791 = vmatpush1.bf16.xpose.msra.mxu0 0
        %2792 = vmatprep.subr.bf16.mxu0 0
        %2793 = vmatpush1.bf16.xpose.msra.mxu0 0
        %2794 = vmatprep.subr.bf16.mxu0 0
        %2795 = vmatpush1.bf16.xpose.msra.mxu0 0
        %2796 = vmatprep.subr.bf16.mxu0 0
        %2797 = vmatpush1.bf16.xpose.msra.mxu0 0
        %2798 = vmatprep.subr.bf16.mxu0 0
        %2799 = vmatpush1.bf16.xpose.msra.mxu0 0
        %2800 = vmatprep.subr.bf16.mxu0 0
        %2801 = vmatpush1.bf16.xpose.msra.mxu0 0
        %2802 = vmatprep.subr.bf16.mxu0 0
        %2803 = vmatpush1.bf16.xpose.msra.mxu0 0
        %2804 = vmatprep.subr.bf16.mxu0 0
        %2805 = vmatpush1.bf16.xpose.msra.mxu0 0
        %2806 = vmatprep.subr.bf16.mxu0 0
        %2807 = vmatpush1.bf16.xpose.msra.mxu0 0
        %2808 = vmatprep.subr.bf16.mxu0 0
        %2809 = vmatpush1.bf16.xpose.msra.mxu0 0
        %2810 = vmatprep.subr.bf16.mxu0 0
        %2811 = vmatpush1.bf16.xpose.msra.mxu0 0
        %2812 = vmatprep.subr.bf16.mxu0 0
        %2813 = vmatpush1.bf16.xpose.msra.mxu0 0
        %2814 = vmatprep.subr.bf16.mxu0 0
        %2815 = vmatpush1.bf16.xpose.msra.mxu0 0
        %2816 = vmatprep.subr.bf16.mxu0 0
        %2817 = vmatpush1.bf16.xpose.msra.mxu0 0
        %2818 = vmatprep.subr.bf16.mxu0 0
        %2819 = vmatpush1.bf16.xpose.msra.mxu0 0
        %2820 = vmatprep.mubr.bf16.mxu0 0
        %2821 = vmatmul.mubr.bf16.gmra.mrb[0].mxu0 %v2783
        %v2822 = vpop.f32.mrb[0].mxu0
        %v2823 = vadd.f32 0.0, %v2822
        %v2824 = vpop.f32.mrb[0].mxu0
        %v2825 = vpop.f32.mrb[0].mxu0
        %v2826 = vpop.f32.mrb[0].mxu0
        %2827 = vdwg.mxu0
        %v2828 = vmul.f32 %v2823, 0.17677669
        %v2829 = vadd.f32 %v2828, %v1026
        %v2830 = vsel %vm1029, %v2829, -inf
        %2831 = vmax.xlane.f32.xlu0 %v2830
        %v2832 = vpop.xlane.xlu0 %2831
        %v2833 = vsub.f32 %v2829, %v2832
        %v2834 = vmul.f32 %v2833, 1.442695
        %v2835 = vpow.pop %v2834
        %v2836 = vsel %vm1029, %v2835, 0.0
        %2837 = vadd.xlane.f32.xlu0 %v2836
        %v2838 = vpop.xlane.xlu0 %2837
        %v2839 = vrcp.pop %v2838
        %v2840 = vmul.f32 %v2835, %v2839
        %v2841 = vpack.c.bf16 %v2840, %v2840
        %2842 = vrot.lane.b32.xlu0 %v2556, 64
        %v2843 = vpop.permute.xlu0 %2842
        %v2845 = vsel %vm1029, %v2841, 0
        %v2848 = vsel %vm1045, %v2843, 0
        %2850 = vmatprep.subr.bf16.mxu0 0
        %2851 = vmatpush1.bf16.msra.mxu0 %v2848
        %2852 = vmatprep.subr.bf16.mxu0 0
        %2853 = vmatpush1.bf16.msra.mxu0 0
        %2854 = vmatprep.subr.bf16.mxu0 0
        %2855 = vmatpush1.bf16.msra.mxu0 0
        %2856 = vmatprep.subr.bf16.mxu0 0
        %2857 = vmatpush1.bf16.msra.mxu0 0
        %2858 = vmatprep.subr.bf16.mxu0 0
        %2859 = vmatpush1.bf16.msra.mxu0 0
        %2860 = vmatprep.subr.bf16.mxu0 0
        %2861 = vmatpush1.bf16.msra.mxu0 0
        %2862 = vmatprep.subr.bf16.mxu0 0
        %2863 = vmatpush1.bf16.msra.mxu0 0
        %2864 = vmatprep.subr.bf16.mxu0 0
        %2865 = vmatpush1.bf16.msra.mxu0 0
        %2866 = vmatprep.subr.bf16.mxu0 0
        %2867 = vmatpush1.bf16.msra.mxu0 0
        %2868 = vmatprep.subr.bf16.mxu0 0
        %2869 = vmatpush1.bf16.msra.mxu0 0
        %2870 = vmatprep.subr.bf16.mxu0 0
        %2871 = vmatpush1.bf16.msra.mxu0 0
        %2872 = vmatprep.subr.bf16.mxu0 0
        %2873 = vmatpush1.bf16.msra.mxu0 0
        %2874 = vmatprep.subr.bf16.mxu0 0
        %2875 = vmatpush1.bf16.msra.mxu0 0
        %2876 = vmatprep.subr.bf16.mxu0 0
        %2877 = vmatpush1.bf16.msra.mxu0 0
        %2878 = vmatprep.subr.bf16.mxu0 0
        %2879 = vmatpush1.bf16.msra.mxu0 0
        %2880 = vmatprep.subr.bf16.mxu0 0
        %2881 = vmatpush1.bf16.msra.mxu0 0
        %2882 = vmatprep.mubr.bf16.mxu0 0
        %2883 = vmatmul.mubr.bf16.gmra.mrb[0].mxu0 %v2845
        %v2884 = vpop.f32.mrb[0].mxu0
        %v2885 = vadd.f32 0.0, %v2884
        %v2886 = vpop.f32.mrb[0].mxu0
        %v2887 = vpop.f32.mrb[0].mxu0
        %v2888 = vpop.f32.mrb[0].mxu0
        %2889 = vdwg.mxu0
        %2890 = vrot.lane.b32.xlu0 %v2554, 32
        %v2891 = vpop.permute.xlu0 %2890
        %2892 = vrot.lane.b32.xlu0 %v2555, 32
        %v2893 = vpop.permute.xlu0 %2892
        %v2895 = vsel %vm974, %v2891, 0
        %v2898 = vsel %vm974, %v2893, 0
        %2900 = vmatprep.subr.bf16.mxu0 0
        %2901 = vmatpush1.bf16.xpose.msra.mxu0 %v2898
        %2902 = vmatprep.subr.bf16.mxu0 0
        %2903 = vmatpush1.bf16.xpose.msra.mxu0 0
        %2904 = vmatprep.subr.bf16.mxu0 0
        %2905 = vmatpush1.bf16.xpose.msra.mxu0 0
        %2906 = vmatprep.subr.bf16.mxu0 0
        %2907 = vmatpush1.bf16.xpose.msra.mxu0 0
        %2908 = vmatprep.subr.bf16.mxu0 0
        %2909 = vmatpush1.bf16.xpose.msra.mxu0 0
        %2910 = vmatprep.subr.bf16.mxu0 0
        %2911 = vmatpush1.bf16.xpose.msra.mxu0 0
        %2912 = vmatprep.subr.bf16.mxu0 0
        %2913 = vmatpush1.bf16.xpose.msra.mxu0 0
        %2914 = vmatprep.subr.bf16.mxu0 0
        %2915 = vmatpush1.bf16.xpose.msra.mxu0 0
        %2916 = vmatprep.subr.bf16.mxu0 0
        %2917 = vmatpush1.bf16.xpose.msra.mxu0 0
        %2918 = vmatprep.subr.bf16.mxu0 0
        %2919 = vmatpush1.bf16.xpose.msra.mxu0 0
        %2920 = vmatprep.subr.bf16.mxu0 0
        %2921 = vmatpush1.bf16.xpose.msra.mxu0 0
        %2922 = vmatprep.subr.bf16.mxu0 0
        %2923 = vmatpush1.bf16.xpose.msra.mxu0 0
        %2924 = vmatprep.subr.bf16.mxu0 0
        %2925 = vmatpush1.bf16.xpose.msra.mxu0 0
        %2926 = vmatprep.subr.bf16.mxu0 0
        %2927 = vmatpush1.bf16.xpose.msra.mxu0 0
        %2928 = vmatprep.subr.bf16.mxu0 0
        %2929 = vmatpush1.bf16.xpose.msra.mxu0 0
        %2930 = vmatprep.subr.bf16.mxu0 0
        %2931 = vmatpush1.bf16.xpose.msra.mxu0 0
        %2932 = vmatprep.mubr.bf16.mxu0 0
        %2933 = vmatmul.mubr.bf16.gmra.mrb[0].mxu0 %v2895
        %v2934 = vpop.f32.mrb[0].mxu0
        %v2935 = vadd.f32 0.0, %v2934
        %v2936 = vpop.f32.mrb[0].mxu0
        %v2937 = vpop.f32.mrb[0].mxu0
        %v2938 = vpop.f32.mrb[0].mxu0
        %2939 = vdwg.mxu0
        %v2940 = vmul.f32 %v2935, 0.17677669
        %v2941 = vadd.f32 %v2940, %v1026
        %v2942 = vsel %vm1029, %v2941, -inf
        %2943 = vmax.xlane.f32.xlu0 %v2942
        %v2944 = vpop.xlane.xlu0 %2943
        %v2945 = vsub.f32 %v2941, %v2944
        %v2946 = vmul.f32 %v2945, 1.442695
        %v2947 = vpow.pop %v2946
        %v2948 = vsel %vm1029, %v2947, 0.0
        %2949 = vadd.xlane.f32.xlu0 %v2948
        %v2950 = vpop.xlane.xlu0 %2949
        %v2951 = vrcp.pop %v2950
        %v2952 = vmul.f32 %v2947, %v2951
        %v2953 = vpack.c.bf16 %v2952, %v2952
        %2954 = vrot.lane.b32.xlu0 %v2556, 32
        %v2955 = vpop.permute.xlu0 %2954
        %v2957 = vsel %vm1029, %v2953, 0
        %v2960 = vsel %vm1045, %v2955, 0
        %2962 = vmatprep.subr.bf16.mxu0 0
        %2963 = vmatpush1.bf16.msra.mxu0 %v2960
        %2964 = vmatprep.subr.bf16.mxu0 0
        %2965 = vmatpush1.bf16.msra.mxu0 0
        %2966 = vmatprep.subr.bf16.mxu0 0
        %2967 = vmatpush1.bf16.msra.mxu0 0
        %2968 = vmatprep.subr.bf16.mxu0 0
        %2969 = vmatpush1.bf16.msra.mxu0 0
        %2970 = vmatprep.subr.bf16.mxu0 0
        %2971 = vmatpush1.bf16.msra.mxu0 0
        %2972 = vmatprep.subr.bf16.mxu0 0
        %2973 = vmatpush1.bf16.msra.mxu0 0
        %2974 = vmatprep.subr.bf16.mxu0 0
        %2975 = vmatpush1.bf16.msra.mxu0 0
        %2976 = vmatprep.subr.bf16.mxu0 0
        %2977 = vmatpush1.bf16.msra.mxu0 0
        %2978 = vmatprep.subr.bf16.mxu0 0
        %2979 = vmatpush1.bf16.msra.mxu0 0
        %2980 = vmatprep.subr.bf16.mxu0 0
        %2981 = vmatpush1.bf16.msra.mxu0 0
        %2982 = vmatprep.subr.bf16.mxu0 0
        %2983 = vmatpush1.bf16.msra.mxu0 0
        %2984 = vmatprep.subr.bf16.mxu0 0
        %2985 = vmatpush1.bf16.msra.mxu0 0
        %2986 = vmatprep.subr.bf16.mxu0 0
        %2987 = vmatpush1.bf16.msra.mxu0 0
        %2988 = vmatprep.subr.bf16.mxu0 0
        %2989 = vmatpush1.bf16.msra.mxu0 0
        %2990 = vmatprep.subr.bf16.mxu0 0
        %2991 = vmatpush1.bf16.msra.mxu0 0
        %2992 = vmatprep.subr.bf16.mxu0 0
        %2993 = vmatpush1.bf16.msra.mxu0 0
        %2994 = vmatprep.mubr.bf16.mxu0 0
        %2995 = vmatmul.mubr.bf16.gmra.mrb[0].mxu0 %v2957
        %v2996 = vpop.f32.mrb[0].mxu0
        %v2997 = vadd.f32 0.0, %v2996
        %v2998 = vpop.f32.mrb[0].mxu0
        %v2999 = vpop.f32.mrb[0].mxu0
        %v3000 = vpop.f32.mrb[0].mxu0
        %3001 = vdwg.mxu0
        %3003 = vrot.lane.b32.xlu0 %v2773, 32
        %v3004 = vpop.permute.xlu0 %3003
        %3007 = vrot.lane.b32.xlu0 %v2885, 64
        %v3008 = vpop.permute.xlu0 %3007
        %3011 = vrot.lane.b32.xlu0 %v2997, 96
        %v3012 = vpop.permute.xlu0 %3011
        %v3014 = vsel %vm974, %v2658, %v3004
        %v3015 = vsel %vm1441, %v3014, %v3008
        %v3016 = vsel %vm1443, %v3015, %v3012
        %s3017 = scalar_lea.vmem %s6, 64
        %v3018 = vld [vmem:[%s3017] sm:$0xf]
        %v3019 = vld [vmem:[%s3017 + $0x4] sm:$0xf]
        %v3020 = vld [vmem:[%s3017 + $0x8] sm:$0xf]
        %v3021 = vld [vmem:[%s3017 + $0xc] sm:$0xf]
        %v3022 = vld [vmem:[%s3017 + $0x10] sm:$0xf]
        %v3023 = vld [vmem:[%s3017 + $0x14] sm:$0xf]
        %v3024 = vld [vmem:[%s3017 + $0x18] sm:$0xf]
        %v3025 = vld [vmem:[%s3017 + $0x1c] sm:$0xf]
        %v3026 = vld [vmem:[%s3017 + $0x20] sm:$0xf]
        %v3027 = vld [vmem:[%s3017 + $0x24] sm:$0xf]
        %v3028 = vld [vmem:[%s3017 + $0x28] sm:$0xf]
        %v3029 = vld [vmem:[%s3017 + $0x2c] sm:$0xf]
        %v3030 = vld [vmem:[%s3017 + $0x30] sm:$0xf]
        %v3031 = vld [vmem:[%s3017 + $0x34] sm:$0xf]
        %v3032 = vld [vmem:[%s3017 + $0x38] sm:$0xf]
        %v3033 = vld [vmem:[%s3017 + $0x3c] sm:$0xf]
        %v3034 = vpack.c.bf16 %v3016, %v3016
        %s3035 = scalar_lea.vmem %s7, 1
        %v3036 = vld [vmem:[%s3035] sm:$0x1]
        %v3038 = vlaneseq
        %v3039 = vshrl.u32 %v3038, 7
        %v3040 = vsub.s32 0, %v3039
        %v3041 = vrot.slane %v3036, %v3040
        %v3059 = vunpack.c.l.b16 %v3018
        %v3060 = vunpack.c.l.b16 %v3019
        %v3061 = vunpack.c.l.b16 %v3020
        %v3062 = vunpack.c.l.b16 %v3021
        %v3063 = vunpack.c.l.b16 %v3022
        %v3064 = vunpack.c.l.b16 %v3023
        %v3065 = vunpack.c.l.b16 %v3024
        %v3066 = vunpack.c.l.b16 %v3025
        %v3067 = vunpack.c.l.b16 %v3026
        %v3068 = vunpack.c.l.b16 %v3027
        %v3069 = vunpack.c.l.b16 %v3028
        %v3070 = vunpack.c.l.b16 %v3029
        %v3071 = vunpack.c.l.b16 %v3030
        %v3072 = vunpack.c.l.b16 %v3031
        %v3073 = vunpack.c.l.b16 %v3032
        %v3074 = vunpack.c.l.b16 %v3033
        %v3075 = vpack.c.b16 %v3060, %v3059
        %v3076 = vpack.c.b16 %v3062, %v3061
        %v3077 = vpack.c.b16 %v3064, %v3063
        %v3078 = vpack.c.b16 %v3066, %v3065
        %v3079 = vpack.c.b16 %v3068, %v3067
        %v3080 = vpack.c.b16 %v3070, %v3069
        %v3081 = vpack.c.b16 %v3072, %v3071
        %v3082 = vpack.c.b16 %v3074, %v3073
        %3091 = vmatprep.subr.bf16.mxu0 0
        %3092 = vmatpush1.bf16.msra.mxu0 %v3075
        %3093 = vmatprep.subr.bf16.mxu0 0
        %3094 = vmatpush1.bf16.msra.mxu0 %v3076
        %3095 = vmatprep.subr.bf16.mxu0 0
        %3096 = vmatpush1.bf16.msra.mxu0 %v3077
        %3097 = vmatprep.subr.bf16.mxu0 0
        %3098 = vmatpush1.bf16.msra.mxu0 %v3078
        %3099 = vmatprep.subr.bf16.mxu0 0
        %3100 = vmatpush1.bf16.msra.mxu0 %v3079
        %3101 = vmatprep.subr.bf16.mxu0 0
        %3102 = vmatpush1.bf16.msra.mxu0 %v3080
        %3103 = vmatprep.subr.bf16.mxu0 0
        %3104 = vmatpush1.bf16.msra.mxu0 %v3081
        %3105 = vmatprep.subr.bf16.mxu0 0
        %3106 = vmatpush1.bf16.msra.mxu0 %v3082
        %3107 = vmatprep.subr.bf16.mxu0 0
        %3108 = vmatpush1.bf16.msra.mxu0 0
        %3109 = vmatprep.subr.bf16.mxu0 0
        %3110 = vmatpush1.bf16.msra.mxu0 0
        %3111 = vmatprep.subr.bf16.mxu0 0
        %3112 = vmatpush1.bf16.msra.mxu0 0
        %3113 = vmatprep.subr.bf16.mxu0 0
        %3114 = vmatpush1.bf16.msra.mxu0 0
        %3115 = vmatprep.subr.bf16.mxu0 0
        %3116 = vmatpush1.bf16.msra.mxu0 0
        %3117 = vmatprep.subr.bf16.mxu0 0
        %3118 = vmatpush1.bf16.msra.mxu0 0
        %3119 = vmatprep.subr.bf16.mxu0 0
        %3120 = vmatpush1.bf16.msra.mxu0 0
        %3121 = vmatprep.subr.bf16.mxu0 0
        %3122 = vmatpush1.bf16.msra.mxu0 0
        %3123 = vmatprep.mubr.bf16.mxu0 0
        %3124 = vmatmul.mubr.bf16.gmra.mrb[0].mxu0 %v3034
        %v3125 = vpop.f32.mrb[0].mxu0
        %v3126 = vadd.f32 %v3041, %v3125
        %v3127 = vpop.f32.mrb[0].mxu0
        %v3128 = vpop.f32.mrb[0].mxu0
        %v3129 = vpop.f32.mrb[0].mxu0
        %3130 = vdwg.mxu0
        %v3131 = vadd.f32 %v3126, %v2292
        %s3132 = scalar_lea.vmem %s8, 1
        %v3133 = vld [vmem:[%s3132] sm:$0x1]
        %s3134 = scalar_lea.vmem %s9, 1
        %v3135 = vld [vmem:[%s3134] sm:$0x1]
        %3136 = vadd.xlane.f32.xlu0 %v3131
        %v3137 = vpop.xlane.xlu0 %3136
        %v3138 = vmul.f32 %v3137, %v687
        %v3139 = vsub.f32 %v3131, %v3138
        %v3140 = vmul.f32 %v3139, %v3139
        %3141 = vadd.xlane.f32.xlu0 %v3140
        %v3142 = vpop.xlane.xlu0 %3141
        %v3143 = vmul.f32 %v3142, %v687
        %v3144 = vadd.f32 %v3143, 1e-12
        %v3145 = vrsqrt.pop %v3144
        %v3146 = vmul.f32 %v3139, %v3145
        %v3148 = vlaneseq
        %v3149 = vshrl.u32 %v3148, 7
        %v3150 = vsub.s32 0, %v3149
        %v3151 = vrot.slane %v3133, %v3150
        %v3153 = vmul.f32 %v3146, %v3151
        %v3155 = vlaneseq
        %v3156 = vshrl.u32 %v3155, 7
        %v3157 = vsub.s32 0, %v3156
        %v3158 = vrot.slane %v3135, %v3157
        %v3160 = vadd.f32 %v3153, %v3158
        %s3161 = scalar_lea.vmem [#allocation4], 256
        %v3162 = vld [vmem:[%s3161] sm:$0xff]
        %v3163 = vld [vmem:[%s3161 + $0x8] sm:$0xff]
        %v3164 = vld [vmem:[%s3161 + $0x10] sm:$0xff]
        %v3165 = vld [vmem:[%s3161 + $0x18] sm:$0xff]
        %v3166 = vld [vmem:[%s3161 + $0x20] sm:$0xff]
        %v3167 = vld [vmem:[%s3161 + $0x28] sm:$0xff]
        %v3168 = vld [vmem:[%s3161 + $0x30] sm:$0xff]
        %v3169 = vld [vmem:[%s3161 + $0x38] sm:$0xff]
        %v3170 = vld [vmem:[%s3161 + $0x40] sm:$0xff]
        %v3171 = vld [vmem:[%s3161 + $0x48] sm:$0xff]
        %v3172 = vld [vmem:[%s3161 + $0x50] sm:$0xff]
        %v3173 = vld [vmem:[%s3161 + $0x58] sm:$0xff]
        %v3174 = vld [vmem:[%s3161 + $0x60] sm:$0xff]
        %v3175 = vld [vmem:[%s3161 + $0x68] sm:$0xff]
        %v3176 = vld [vmem:[%s3161 + $0x70] sm:$0xff]
        %v3177 = vld [vmem:[%s3161 + $0x78] sm:$0xff]
        %v3178 = vld [vmem:[%s3161 + $0x80] sm:$0xff]
        %v3179 = vld [vmem:[%s3161 + $0x88] sm:$0xff]
        %v3180 = vld [vmem:[%s3161 + $0x90] sm:$0xff]
        %v3181 = vld [vmem:[%s3161 + $0x98] sm:$0xff]
        %v3182 = vld [vmem:[%s3161 + $0xa0] sm:$0xff]
        %v3183 = vld [vmem:[%s3161 + $0xa8] sm:$0xff]
        %v3184 = vld [vmem:[%s3161 + $0xb0] sm:$0xff]
        %v3185 = vld [vmem:[%s3161 + $0xb8] sm:$0xff]
        %v3186 = vld [vmem:[%s3161 + $0xc0] sm:$0xff]
        %v3187 = vld [vmem:[%s3161 + $0xc8] sm:$0xff]
        %v3188 = vld [vmem:[%s3161 + $0xd0] sm:$0xff]
        %v3189 = vld [vmem:[%s3161 + $0xd8] sm:$0xff]
        %v3190 = vld [vmem:[%s3161 + $0xe0] sm:$0xff]
        %v3191 = vld [vmem:[%s3161 + $0xe8] sm:$0xff]
        %v3192 = vld [vmem:[%s3161 + $0xf0] sm:$0xff]
        %v3193 = vld [vmem:[%s3161 + $0xf8] sm:$0xff]
        %v3194 = vpack.c.bf16 %v3160, %v3160
        %s3195 = scalar_lea.vmem %s11, 4
        %v3196 = vld [vmem:[%s3195] sm:$0xf]
        %v3198 = vlaneseq
        %v3199 = vshrl.u32 %v3198, 7
        %v3200 = vsub.s32 0, %v3199
        %v3201 = vrot.slane %v3196, %v3200
        %v3202 = vlaneseq
        %v3203 = vshrl.u32 %v3202, 7
        %v3204 = vsub.s32 1, %v3203
        %v3205 = vrot.slane %v3196, %v3204
        %v3206 = vlaneseq
        %v3207 = vshrl.u32 %v3206, 7
        %v3208 = vsub.s32 2, %v3207
        %v3209 = vrot.slane %v3196, %v3208
        %v3210 = vlaneseq
        %v3211 = vshrl.u32 %v3210, 7
        %v3212 = vsub.s32 3, %v3211
        %v3213 = vrot.slane %v3196, %v3212
        %v3250 = vunpack.c.l.b16 %v3162
        %v3251 = vunpack.c.h.b16 %v3162
        %v3252 = vunpack.c.l.b16 %v3163
        %v3253 = vunpack.c.h.b16 %v3163
        %v3254 = vunpack.c.l.b16 %v3164
        %v3255 = vunpack.c.h.b16 %v3164
        %v3256 = vunpack.c.l.b16 %v3165
        %v3257 = vunpack.c.h.b16 %v3165
        %v3258 = vunpack.c.l.b16 %v3166
        %v3259 = vunpack.c.h.b16 %v3166
        %v3260 = vunpack.c.l.b16 %v3167
        %v3261 = vunpack.c.h.b16 %v3167
        %v3262 = vunpack.c.l.b16 %v3168
        %v3263 = vunpack.c.h.b16 %v3168
        %v3264 = vunpack.c.l.b16 %v3169
        %v3265 = vunpack.c.h.b16 %v3169
        %v3266 = vunpack.c.l.b16 %v3170
        %v3267 = vunpack.c.h.b16 %v3170
        %v3268 = vunpack.c.l.b16 %v3171
        %v3269 = vunpack.c.h.b16 %v3171
        %v3270 = vunpack.c.l.b16 %v3172
        %v3271 = vunpack.c.h.b16 %v3172
        %v3272 = vunpack.c.l.b16 %v3173
        %v3273 = vunpack.c.h.b16 %v3173
        %v3274 = vunpack.c.l.b16 %v3174
        %v3275 = vunpack.c.h.b16 %v3174
        %v3276 = vunpack.c.l.b16 %v3175
        %v3277 = vunpack.c.h.b16 %v3175
        %v3278 = vunpack.c.l.b16 %v3176
        %v3279 = vunpack.c.h.b16 %v3176
        %v3280 = vunpack.c.l.b16 %v3177
        %v3281 = vunpack.c.h.b16 %v3177
        %v3282 = vunpack.c.l.b16 %v3178
        %v3283 = vunpack.c.h.b16 %v3178
        %v3284 = vunpack.c.l.b16 %v3179
        %v3285 = vunpack.c.h.b16 %v3179
        %v3286 = vunpack.c.l.b16 %v3180
        %v3287 = vunpack.c.h.b16 %v3180
        %v3288 = vunpack.c.l.b16 %v3181
        %v3289 = vunpack.c.h.b16 %v3181
        %v3290 = vunpack.c.l.b16 %v3182
        %v3291 = vunpack.c.h.b16 %v3182
        %v3292 = vunpack.c.l.b16 %v3183
        %v3293 = vunpack.c.h.b16 %v3183
        %v3294 = vunpack.c.l.b16 %v3184
        %v3295 = vunpack.c.h.b16 %v3184
        %v3296 = vunpack.c.l.b16 %v3185
        %v3297 = vunpack.c.h.b16 %v3185
        %v3298 = vunpack.c.l.b16 %v3186
        %v3299 = vunpack.c.h.b16 %v3186
        %v3300 = vunpack.c.l.b16 %v3187
        %v3301 = vunpack.c.h.b16 %v3187
        %v3302 = vunpack.c.l.b16 %v3188
        %v3303 = vunpack.c.h.b16 %v3188
        %v3304 = vunpack.c.l.b16 %v3189
        %v3305 = vunpack.c.h.b16 %v3189
        %v3306 = vunpack.c.l.b16 %v3190
        %v3307 = vunpack.c.h.b16 %v3190
        %v3308 = vunpack.c.l.b16 %v3191
        %v3309 = vunpack.c.h.b16 %v3191
        %v3310 = vunpack.c.l.b16 %v3192
        %v3311 = vunpack.c.h.b16 %v3192
        %v3312 = vunpack.c.l.b16 %v3193
        %v3313 = vunpack.c.h.b16 %v3193
        %v3314 = vpack.c.b16 %v3254, %v3250
        %v3315 = vpack.c.b16 %v3255, %v3251
        %v3316 = vpack.c.b16 %v3256, %v3252
        %v3317 = vpack.c.b16 %v3257, %v3253
        %v3318 = vpack.c.b16 %v3262, %v3258
        %v3319 = vpack.c.b16 %v3263, %v3259
        %v3320 = vpack.c.b16 %v3264, %v3260
        %v3321 = vpack.c.b16 %v3265, %v3261
        %v3322 = vpack.c.b16 %v3270, %v3266
        %v3323 = vpack.c.b16 %v3271, %v3267
        %v3324 = vpack.c.b16 %v3272, %v3268
        %v3325 = vpack.c.b16 %v3273, %v3269
        %v3326 = vpack.c.b16 %v3278, %v3274
        %v3327 = vpack.c.b16 %v3279, %v3275
        %v3328 = vpack.c.b16 %v3280, %v3276
        %v3329 = vpack.c.b16 %v3281, %v3277
        %v3330 = vpack.c.b16 %v3286, %v3282
        %v3331 = vpack.c.b16 %v3287, %v3283
        %v3332 = vpack.c.b16 %v3288, %v3284
        %v3333 = vpack.c.b16 %v3289, %v3285
        %v3334 = vpack.c.b16 %v3294, %v3290
        %v3335 = vpack.c.b16 %v3295, %v3291
        %v3336 = vpack.c.b16 %v3296, %v3292
        %v3337 = vpack.c.b16 %v3297, %v3293
        %v3338 = vpack.c.b16 %v3302, %v3298
        %v3339 = vpack.c.b16 %v3303, %v3299
        %v3340 = vpack.c.b16 %v3304, %v3300
        %v3341 = vpack.c.b16 %v3305, %v3301
        %v3342 = vpack.c.b16 %v3310, %v3306
        %v3343 = vpack.c.b16 %v3311, %v3307
        %v3344 = vpack.c.b16 %v3312, %v3308
        %v3345 = vpack.c.b16 %v3313, %v3309
        %3378 = vmatprep.subr.bf16.mxu0 %v3315
        %3379 = vmatpush1.bf16.msra.mxu0 %v3314
        %3380 = vmatprep.subr.bf16.mxu0 %v3319
        %3381 = vmatpush1.bf16.msra.mxu0 %v3318
        %3382 = vmatprep.subr.bf16.mxu0 %v3323
        %3383 = vmatpush1.bf16.msra.mxu0 %v3322
        %3384 = vmatprep.subr.bf16.mxu0 %v3327
        %3385 = vmatpush1.bf16.msra.mxu0 %v3326
        %3386 = vmatprep.subr.bf16.mxu0 %v3331
        %3387 = vmatpush1.bf16.msra.mxu0 %v3330
        %3388 = vmatprep.subr.bf16.mxu0 %v3335
        %3389 = vmatpush1.bf16.msra.mxu0 %v3334
        %3390 = vmatprep.subr.bf16.mxu0 %v3339
        %3391 = vmatpush1.bf16.msra.mxu0 %v3338
        %3392 = vmatprep.subr.bf16.mxu0 %v3343
        %3393 = vmatpush1.bf16.msra.mxu0 %v3342
        %3394 = vmatprep.subr.bf16.mxu0 0
        %3395 = vmatpush1.bf16.msra.mxu0 0
        %3396 = vmatprep.subr.bf16.mxu0 0
        %3397 = vmatpush1.bf16.msra.mxu0 0
        %3398 = vmatprep.subr.bf16.mxu0 0
        %3399 = vmatpush1.bf16.msra.mxu0 0
        %3400 = vmatprep.subr.bf16.mxu0 0
        %3401 = vmatpush1.bf16.msra.mxu0 0
        %3402 = vmatprep.subr.bf16.mxu0 0
        %3403 = vmatpush1.bf16.msra.mxu0 0
        %3404 = vmatprep.subr.bf16.mxu0 0
        %3405 = vmatpush1.bf16.msra.mxu0 0
        %3406 = vmatprep.subr.bf16.mxu0 0
        %3407 = vmatpush1.bf16.msra.mxu0 0
        %3408 = vmatprep.subr.bf16.mxu0 0
        %3409 = vmatpush1.bf16.msra.mxu0 0
        %3410 = vmatprep.mubr.bf16.mxu0 0
        %3411 = vmatmul.mubr.bf16.gmra.mrb[0].mxu0 %v3194
        %v3412 = vpop.f32.mrb[0].mxu0
        %v3413 = vadd.f32 %v3201, %v3412
        %v3414 = vpop.f32.mrb[0].mxu0
        %v3415 = vadd.f32 %v3205, %v3414
        %v3416 = vpop.f32.mrb[0].mxu0
        %v3417 = vpop.f32.mrb[0].mxu0
        %3418 = vdwg.mxu0
        %3419 = vmatprep.subr.bf16.mxu0 %v3317
        %3420 = vmatpush1.bf16.msra.mxu0 %v3316
        %3421 = vmatprep.subr.bf16.mxu0 %v3321
        %3422 = vmatpush1.bf16.msra.mxu0 %v3320
        %3423 = vmatprep.subr.bf16.mxu0 %v3325
        %3424 = vmatpush1.bf16.msra.mxu0 %v3324
        %3425 = vmatprep.subr.bf16.mxu0 %v3329
        %3426 = vmatpush1.bf16.msra.mxu0 %v3328
        %3427 = vmatprep.subr.bf16.mxu0 %v3333
        %3428 = vmatpush1.bf16.msra.mxu0 %v3332
        %3429 = vmatprep.subr.bf16.mxu0 %v3337
        %3430 = vmatpush1.bf16.msra.mxu0 %v3336
        %3431 = vmatprep.subr.bf16.mxu0 %v3341
        %3432 = vmatpush1.bf16.msra.mxu0 %v3340
        %3433 = vmatprep.subr.bf16.mxu0 %v3345
        %3434 = vmatpush1.bf16.msra.mxu0 %v3344
        %3435 = vmatprep.subr.bf16.mxu0 0
        %3436 = vmatpush1.bf16.msra.mxu0 0
        %3437 = vmatprep.subr.bf16.mxu0 0
        %3438 = vmatpush1.bf16.msra.mxu0 0
        %3439 = vmatprep.subr.bf16.mxu0 0
        %3440 = vmatpush1.bf16.msra.mxu0 0
        %3441 = vmatprep.subr.bf16.mxu0 0
        %3442 = vmatpush1.bf16.msra.mxu0 0
        %3443 = vmatprep.subr.bf16.mxu0 0
        %3444 = vmatpush1.bf16.msra.mxu0 0
        %3445 = vmatprep.subr.bf16.mxu0 0
        %3446 = vmatpush1.bf16.msra.mxu0 0
        %3447 = vmatprep.subr.bf16.mxu0 0
        %3448 = vmatpush1.bf16.msra.mxu0 0
        %3449 = vmatprep.subr.bf16.mxu0 0
        %3450 = vmatpush1.bf16.msra.mxu0 0
        %3451 = vmatprep.mubr.bf16.mxu0 0
        %3452 = vmatmul.mubr.bf16.gmra.mrb[0].mxu0 %v3194
        %v3453 = vpop.f32.mrb[0].mxu0
        %v3454 = vadd.f32 %v3209, %v3453
        %v3455 = vpop.f32.mrb[0].mxu0
        %v3456 = vadd.f32 %v3213, %v3455
        %v3457 = vpop.f32.mrb[0].mxu0
        %v3458 = vpop.f32.mrb[0].mxu0
        %3459 = vdwg.mxu0
        %v3460 = vmul.f32 %v3413, %v3413
        %v3461 = vmul.f32 %v3415, %v3415
        %v3462 = vmul.f32 %v3454, %v3454
        %v3463 = vmul.f32 %v3456, %v3456
        %v3464 = vmul.f32 %v3413, %v3460
        %v3465 = vmul.f32 %v3415, %v3461
        %v3466 = vmul.f32 %v3454, %v3462
        %v3467 = vmul.f32 %v3456, %v3463
        %v3468 = vmul.f32 %v3464, 0.044715
        %v3469 = vmul.f32 %v3465, 0.044715
        %v3470 = vmul.f32 %v3466, 0.044715
        %v3471 = vmul.f32 %v3467, 0.044715
        %v3472 = vadd.f32 %v3413, %v3468
        %v3473 = vadd.f32 %v3415, %v3469
        %v3474 = vadd.f32 %v3454, %v3470
        %v3475 = vadd.f32 %v3456, %v3471
        %v3476 = vmul.f32 %v3472, 0.7978846
        %v3477 = vmul.f32 %v3473, 0.7978846
        %v3478 = vmul.f32 %v3474, 0.7978846
        %v3479 = vmul.f32 %v3475, 0.7978846
        %v3480 = vtanh.pop %v3476
        %v3481 = vtanh.pop %v3477
        %v3482 = vtanh.pop %v3478
        %v3483 = vtanh.pop %v3479
        %v3484 = vadd.f32 %v3480, 1.0
        %v3485 = vadd.f32 %v3481, 1.0
        %v3486 = vadd.f32 %v3482, 1.0
        %v3487 = vadd.f32 %v3483, 1.0
        %v3488 = vmul.f32 %v3484, 0.5
        %v3489 = vmul.f32 %v3485, 0.5
        %v3490 = vmul.f32 %v3486, 0.5
        %v3491 = vmul.f32 %v3487, 0.5
        %v3492 = vmul.f32 %v3413, %v3488
        %v3493 = vmul.f32 %v3415, %v3489
        %v3494 = vmul.f32 %v3454, %v3490
        %v3495 = vmul.f32 %v3456, %v3491
        %s3496 = scalar_lea.vmem [#allocation6], 256
        %v3497 = vld [vmem:[%s3496] sm:$0xf]
        %v3498 = vld [vmem:[%s3496 + $0x4] sm:$0xf]
        %v3499 = vld [vmem:[%s3496 + $0x8] sm:$0xf]
        %v3500 = vld [vmem:[%s3496 + $0xc] sm:$0xf]
        %v3501 = vld [vmem:[%s3496 + $0x10] sm:$0xf]
        %v3502 = vld [vmem:[%s3496 + $0x14] sm:$0xf]
        %v3503 = vld [vmem:[%s3496 + $0x18] sm:$0xf]
        %v3504 = vld [vmem:[%s3496 + $0x1c] sm:$0xf]
        %v3505 = vld [vmem:[%s3496 + $0x20] sm:$0xf]
        %v3506 = vld [vmem:[%s3496 + $0x24] sm:$0xf]
        %v3507 = vld [vmem:[%s3496 + $0x28] sm:$0xf]
        %v3508 = vld [vmem:[%s3496 + $0x2c] sm:$0xf]
        %v3509 = vld [vmem:[%s3496 + $0x30] sm:$0xf]
        %v3510 = vld [vmem:[%s3496 + $0x34] sm:$0xf]
        %v3511 = vld [vmem:[%s3496 + $0x38] sm:$0xf]
        %v3512 = vld [vmem:[%s3496 + $0x3c] sm:$0xf]
        %v3513 = vld [vmem:[%s3496 + $0x40] sm:$0xf]
        %v3514 = vld [vmem:[%s3496 + $0x44] sm:$0xf]
        %v3515 = vld [vmem:[%s3496 + $0x48] sm:$0xf]
        %v3516 = vld [vmem:[%s3496 + $0x4c] sm:$0xf]
        %v3517 = vld [vmem:[%s3496 + $0x50] sm:$0xf]
        %v3518 = vld [vmem:[%s3496 + $0x54] sm:$0xf]
        %v3519 = vld [vmem:[%s3496 + $0x58] sm:$0xf]
        %v3520 = vld [vmem:[%s3496 + $0x5c] sm:$0xf]
        %v3521 = vld [vmem:[%s3496 + $0x60] sm:$0xf]
        %v3522 = vld [vmem:[%s3496 + $0x64] sm:$0xf]
        %v3523 = vld [vmem:[%s3496 + $0x68] sm:$0xf]
        %v3524 = vld [vmem:[%s3496 + $0x6c] sm:$0xf]
        %v3525 = vld [vmem:[%s3496 + $0x70] sm:$0xf]
        %v3526 = vld [vmem:[%s3496 + $0x74] sm:$0xf]
        %v3527 = vld [vmem:[%s3496 + $0x78] sm:$0xf]
        %v3528 = vld [vmem:[%s3496 + $0x7c] sm:$0xf]
        %v3529 = vld [vmem:[%s3496 + $0x80] sm:$0xf]
        %v3530 = vld [vmem:[%s3496 + $0x84] sm:$0xf]
        %v3531 = vld [vmem:[%s3496 + $0x88] sm:$0xf]
        %v3532 = vld [vmem:[%s3496 + $0x8c] sm:$0xf]
        %v3533 = vld [vmem:[%s3496 + $0x90] sm:$0xf]
        %v3534 = vld [vmem:[%s3496 + $0x94] sm:$0xf]
        %v3535 = vld [vmem:[%s3496 + $0x98] sm:$0xf]
        %v3536 = vld [vmem:[%s3496 + $0x9c] sm:$0xf]
        %v3537 = vld [vmem:[%s3496 + $0xa0] sm:$0xf]
        %v3538 = vld [vmem:[%s3496 + $0xa4] sm:$0xf]
        %v3539 = vld [vmem:[%s3496 + $0xa8] sm:$0xf]
        %v3540 = vld [vmem:[%s3496 + $0xac] sm:$0xf]
        %v3541 = vld [vmem:[%s3496 + $0xb0] sm:$0xf]
        %v3542 = vld [vmem:[%s3496 + $0xb4] sm:$0xf]
        %v3543 = vld [vmem:[%s3496 + $0xb8] sm:$0xf]
        %v3544 = vld [vmem:[%s3496 + $0xbc] sm:$0xf]
        %v3545 = vld [vmem:[%s3496 + $0xc0] sm:$0xf]
        %v3546 = vld [vmem:[%s3496 + $0xc4] sm:$0xf]
        %v3547 = vld [vmem:[%s3496 + $0xc8] sm:$0xf]
        %v3548 = vld [vmem:[%s3496 + $0xcc] sm:$0xf]
        %v3549 = vld [vmem:[%s3496 + $0xd0] sm:$0xf]
        %v3550 = vld [vmem:[%s3496 + $0xd4] sm:$0xf]
        %v3551 = vld [vmem:[%s3496 + $0xd8] sm:$0xf]
        %v3552 = vld [vmem:[%s3496 + $0xdc] sm:$0xf]
        %v3553 = vld [vmem:[%s3496 + $0xe0] sm:$0xf]
        %v3554 = vld [vmem:[%s3496 + $0xe4] sm:$0xf]
        %v3555 = vld [vmem:[%s3496 + $0xe8] sm:$0xf]
        %v3556 = vld [vmem:[%s3496 + $0xec] sm:$0xf]
        %v3557 = vld [vmem:[%s3496 + $0xf0] sm:$0xf]
        %v3558 = vld [vmem:[%s3496 + $0xf4] sm:$0xf]
        %v3559 = vld [vmem:[%s3496 + $0xf8] sm:$0xf]
        %v3560 = vld [vmem:[%s3496 + $0xfc] sm:$0xf]
        %v3561 = vpack.c.bf16 %v3492, %v3492
        %v3562 = vpack.c.bf16 %v3493, %v3493
        %v3563 = vpack.c.bf16 %v3494, %v3494
        %v3564 = vpack.c.bf16 %v3495, %v3495
        %s3565 = scalar_lea.vmem %s13, 1
        %v3566 = vld [vmem:[%s3565] sm:$0x1]
        %v3568 = vlaneseq
        %v3569 = vshrl.u32 %v3568, 7
        %v3570 = vsub.s32 0, %v3569
        %v3571 = vrot.slane %v3566, %v3570
        %v3637 = vunpack.c.l.b16 %v3497
        %v3638 = vunpack.c.l.b16 %v3498
        %v3639 = vunpack.c.l.b16 %v3499
        %v3640 = vunpack.c.l.b16 %v3500
        %v3641 = vunpack.c.l.b16 %v3501
        %v3642 = vunpack.c.l.b16 %v3502
        %v3643 = vunpack.c.l.b16 %v3503
        %v3644 = vunpack.c.l.b16 %v3504
        %v3645 = vunpack.c.l.b16 %v3505
        %v3646 = vunpack.c.l.b16 %v3506
        %v3647 = vunpack.c.l.b16 %v3507
        %v3648 = vunpack.c.l.b16 %v3508
        %v3649 = vunpack.c.l.b16 %v3509
        %v3650 = vunpack.c.l.b16 %v3510
        %v3651 = vunpack.c.l.b16 %v3511
        %v3652 = vunpack.c.l.b16 %v3512
        %v3653 = vunpack.c.l.b16 %v3513
        %v3654 = vunpack.c.l.b16 %v3514
        %v3655 = vunpack.c.l.b16 %v3515
        %v3656 = vunpack.c.l.b16 %v3516
        %v3657 = vunpack.c.l.b16 %v3517
        %v3658 = vunpack.c.l.b16 %v3518
        %v3659 = vunpack.c.l.b16 %v3519
        %v3660 = vunpack.c.l.b16 %v3520
        %v3661 = vunpack.c.l.b16 %v3521
        %v3662 = vunpack.c.l.b16 %v3522
        %v3663 = vunpack.c.l.b16 %v3523
        %v3664 = vunpack.c.l.b16 %v3524
        %v3665 = vunpack.c.l.b16 %v3525
        %v3666 = vunpack.c.l.b16 %v3526
        %v3667 = vunpack.c.l.b16 %v3527
        %v3668 = vunpack.c.l.b16 %v3528
        %v3669 = vunpack.c.l.b16 %v3529
        %v3670 = vunpack.c.l.b16 %v3530
        %v3671 = vunpack.c.l.b16 %v3531
        %v3672 = vunpack.c.l.b16 %v3532
        %v3673 = vunpack.c.l.b16 %v3533
        %v3674 = vunpack.c.l.b16 %v3534
        %v3675 = vunpack.c.l.b16 %v3535
        %v3676 = vunpack.c.l.b16 %v3536
        %v3677 = vunpack.c.l.b16 %v3537
        %v3678 = vunpack.c.l.b16 %v3538
        %v3679 = vunpack.c.l.b16 %v3539
        %v3680 = vunpack.c.l.b16 %v3540
        %v3681 = vunpack.c.l.b16 %v3541
        %v3682 = vunpack.c.l.b16 %v3542
        %v3683 = vunpack.c.l.b16 %v3543
        %v3684 = vunpack.c.l.b16 %v3544
        %v3685 = vunpack.c.l.b16 %v3545
        %v3686 = vunpack.c.l.b16 %v3546
        %v3687 = vunpack.c.l.b16 %v3547
        %v3688 = vunpack.c.l.b16 %v3548
        %v3689 = vunpack.c.l.b16 %v3549
        %v3690 = vunpack.c.l.b16 %v3550
        %v3691 = vunpack.c.l.b16 %v3551
        %v3692 = vunpack.c.l.b16 %v3552
        %v3693 = vunpack.c.l.b16 %v3553
        %v3694 = vunpack.c.l.b16 %v3554
        %v3695 = vunpack.c.l.b16 %v3555
        %v3696 = vunpack.c.l.b16 %v3556
        %v3697 = vunpack.c.l.b16 %v3557
        %v3698 = vunpack.c.l.b16 %v3558
        %v3699 = vunpack.c.l.b16 %v3559
        %v3700 = vunpack.c.l.b16 %v3560
        %v3701 = vpack.c.b16 %v3638, %v3637
        %v3702 = vpack.c.b16 %v3640, %v3639
        %v3703 = vpack.c.b16 %v3642, %v3641
        %v3704 = vpack.c.b16 %v3644, %v3643
        %v3705 = vpack.c.b16 %v3646, %v3645
        %v3706 = vpack.c.b16 %v3648, %v3647
        %v3707 = vpack.c.b16 %v3650, %v3649
        %v3708 = vpack.c.b16 %v3652, %v3651
        %v3709 = vpack.c.b16 %v3654, %v3653
        %v3710 = vpack.c.b16 %v3656, %v3655
        %v3711 = vpack.c.b16 %v3658, %v3657
        %v3712 = vpack.c.b16 %v3660, %v3659
        %v3713 = vpack.c.b16 %v3662, %v3661
        %v3714 = vpack.c.b16 %v3664, %v3663
        %v3715 = vpack.c.b16 %v3666, %v3665
        %v3716 = vpack.c.b16 %v3668, %v3667
        %v3717 = vpack.c.b16 %v3670, %v3669
        %v3718 = vpack.c.b16 %v3672, %v3671
        %v3719 = vpack.c.b16 %v3674, %v3673
        %v3720 = vpack.c.b16 %v3676, %v3675
        %v3721 = vpack.c.b16 %v3678, %v3677
        %v3722 = vpack.c.b16 %v3680, %v3679
        %v3723 = vpack.c.b16 %v3682, %v3681
        %v3724 = vpack.c.b16 %v3684, %v3683
        %v3725 = vpack.c.b16 %v3686, %v3685
        %v3726 = vpack.c.b16 %v3688, %v3687
        %v3727 = vpack.c.b16 %v3690, %v3689
        %v3728 = vpack.c.b16 %v3692, %v3691
        %v3729 = vpack.c.b16 %v3694, %v3693
        %v3730 = vpack.c.b16 %v3696, %v3695
        %v3731 = vpack.c.b16 %v3698, %v3697
        %v3732 = vpack.c.b16 %v3700, %v3699
        %3765 = vmatprep.subr.bf16.mxu0 0
        %3766 = vmatpush1.bf16.msra.mxu0 %v3701
        %3767 = vmatprep.subr.bf16.mxu0 0
        %3768 = vmatpush1.bf16.msra.mxu0 %v3702
        %3769 = vmatprep.subr.bf16.mxu0 0
        %3770 = vmatpush1.bf16.msra.mxu0 %v3703
        %3771 = vmatprep.subr.bf16.mxu0 0
        %3772 = vmatpush1.bf16.msra.mxu0 %v3704
        %3773 = vmatprep.subr.bf16.mxu0 0
        %3774 = vmatpush1.bf16.msra.mxu0 %v3705
        %3775 = vmatprep.subr.bf16.mxu0 0
        %3776 = vmatpush1.bf16.msra.mxu0 %v3706
        %3777 = vmatprep.subr.bf16.mxu0 0
        %3778 = vmatpush1.bf16.msra.mxu0 %v3707
        %3779 = vmatprep.subr.bf16.mxu0 0
        %3780 = vmatpush1.bf16.msra.mxu0 %v3708
        %3781 = vmatprep.subr.bf16.mxu0 0
        %3782 = vmatpush1.bf16.msra.mxu0 %v3709
        %3783 = vmatprep.subr.bf16.mxu0 0
        %3784 = vmatpush1.bf16.msra.mxu0 %v3710
        %3785 = vmatprep.subr.bf16.mxu0 0
        %3786 = vmatpush1.bf16.msra.mxu0 %v3711
        %3787 = vmatprep.subr.bf16.mxu0 0
        %3788 = vmatpush1.bf16.msra.mxu0 %v3712
        %3789 = vmatprep.subr.bf16.mxu0 0
        %3790 = vmatpush1.bf16.msra.mxu0 %v3713
        %3791 = vmatprep.subr.bf16.mxu0 0
        %3792 = vmatpush1.bf16.msra.mxu0 %v3714
        %3793 = vmatprep.subr.bf16.mxu0 0
        %3794 = vmatpush1.bf16.msra.mxu0 %v3715
        %3795 = vmatprep.subr.bf16.mxu0 0
        %3796 = vmatpush1.bf16.msra.mxu0 %v3716
        %3797 = vmatprep.mubr.bf16.mxu0 %v3562
        %3798 = vmatmul.mubr.bf16.gmra.mrb[0].mxu0 %v3561
        %v3799 = vpop.f32.mrb[0].mxu0
        %v3800 = vadd.f32 %v3571, %v3799
        %v3801 = vpop.f32.mrb[0].mxu0
        %v3802 = vpop.f32.mrb[0].mxu0
        %v3803 = vpop.f32.mrb[0].mxu0
        %3804 = vdwg.mxu0
        %3805 = vmatprep.subr.bf16.mxu0 0
        %3806 = vmatpush1.bf16.msra.mxu0 %v3717
        %3807 = vmatprep.subr.bf16.mxu0 0
        %3808 = vmatpush1.bf16.msra.mxu0 %v3718
        %3809 = vmatprep.subr.bf16.mxu0 0
        %3810 = vmatpush1.bf16.msra.mxu0 %v3719
        %3811 = vmatprep.subr.bf16.mxu0 0
        %3812 = vmatpush1.bf16.msra.mxu0 %v3720
        %3813 = vmatprep.subr.bf16.mxu0 0
        %3814 = vmatpush1.bf16.msra.mxu0 %v3721
        %3815 = vmatprep.subr.bf16.mxu0 0
        %3816 = vmatpush1.bf16.msra.mxu0 %v3722
        %3817 = vmatprep.subr.bf16.mxu0 0
        %3818 = vmatpush1.bf16.msra.mxu0 %v3723
        %3819 = vmatprep.subr.bf16.mxu0 0
        %3820 = vmatpush1.bf16.msra.mxu0 %v3724
        %3821 = vmatprep.subr.bf16.mxu0 0
        %3822 = vmatpush1.bf16.msra.mxu0 %v3725
        %3823 = vmatprep.subr.bf16.mxu0 0
        %3824 = vmatpush1.bf16.msra.mxu0 %v3726
        %3825 = vmatprep.subr.bf16.mxu0 0
        %3826 = vmatpush1.bf16.msra.mxu0 %v3727
        %3827 = vmatprep.subr.bf16.mxu0 0
        %3828 = vmatpush1.bf16.msra.mxu0 %v3728
        %3829 = vmatprep.subr.bf16.mxu0 0
        %3830 = vmatpush1.bf16.msra.mxu0 %v3729
        %3831 = vmatprep.subr.bf16.mxu0 0
        %3832 = vmatpush1.bf16.msra.mxu0 %v3730
        %3833 = vmatprep.subr.bf16.mxu0 0
        %3834 = vmatpush1.bf16.msra.mxu0 %v3731
        %3835 = vmatprep.subr.bf16.mxu0 0
        %3836 = vmatpush1.bf16.msra.mxu0 %v3732
        %3837 = vmatprep.mubr.bf16.mxu0 %v3564
        %3838 = vmatmul.mubr.bf16.gmra.mrb[0].mxu0 %v3563
        %v3839 = vpop.f32.mrb[0].mxu0
        %v3840 = vadd.f32 %v3800, %v3839
        %v3841 = vpop.f32.mrb[0].mxu0
        %v3842 = vpop.f32.mrb[0].mxu0
        %v3843 = vpop.f32.mrb[0].mxu0
        %3844 = vdwg.mxu0
        %v3845 = vadd.f32 %v3840, %v3160
        %s3846 = scalar_lea.vmem %s14, 1
        %v3847 = vld [vmem:[%s3846] sm:$0x1]
        %s3848 = scalar_lea.vmem %s15, 1
        %v3849 = vld [vmem:[%s3848] sm:$0x1]
        %3850 = vadd.xlane.f32.xlu0 %v3845
        %v3851 = vpop.xlane.xlu0 %3850
        %v3852 = vmul.f32 %v3851, %v687
        %v3853 = vsub.f32 %v3845, %v3852
        %v3854 = vmul.f32 %v3853, %v3853
        %3855 = vadd.xlane.f32.xlu0 %v3854
        %v3856 = vpop.xlane.xlu0 %3855
        %v3857 = vmul.f32 %v3856, %v687
        %v3858 = vadd.f32 %v3857, 1e-12
        %v3859 = vrsqrt.pop %v3858
        %v3860 = vmul.f32 %v3853, %v3859
        %v3862 = vlaneseq
        %v3863 = vshrl.u32 %v3862, 7
        %v3864 = vsub.s32 0, %v3863
        %v3865 = vrot.slane %v3847, %v3864
        %v3867 = vmul.f32 %v3860, %v3865
        %v3869 = vlaneseq
        %v3870 = vshrl.u32 %v3869, 7
        %v3871 = vsub.s32 0, %v3870
        %v3872 = vrot.slane %v3849, %v3871
        %v3874 = vadd.f32 %v3867, %v3872
        %v3875 = vld [vmem:[%s16] sm:$0xf]
        %v3876 = vld [vmem:[%s16 + $0x4] sm:$0xf]
        %v3877 = vld [vmem:[%s16 + $0x8] sm:$0xf]
        %v3878 = vld [vmem:[%s16 + $0xc] sm:$0xf]
        %v3879 = vld [vmem:[%s16 + $0x10] sm:$0xf]
        %v3880 = vld [vmem:[%s16 + $0x14] sm:$0xf]
        %v3881 = vld [vmem:[%s16 + $0x18] sm:$0xf]
        %v3882 = vld [vmem:[%s16 + $0x1c] sm:$0xf]
        %v3883 = vld [vmem:[%s16 + $0x20] sm:$0xf]
        %v3884 = vld [vmem:[%s16 + $0x24] sm:$0xf]
        %v3885 = vld [vmem:[%s16 + $0x28] sm:$0xf]
        %v3886 = vld [vmem:[%s16 + $0x2c] sm:$0xf]
        %v3887 = vld [vmem:[%s16 + $0x30] sm:$0xf]
        %v3888 = vld [vmem:[%s16 + $0x34] sm:$0xf]
        %v3889 = vld [vmem:[%s16 + $0x38] sm:$0xf]
        %v3890 = vld [vmem:[%s16 + $0x3c] sm:$0xf]
        %v3891 = vpack.c.bf16 %v3874, %v3874
        %v3892 = vld [vmem:[%s17] sm:$0x1]
        %v3909 = vunpack.c.l.b16 %v3875
        %v3910 = vunpack.c.l.b16 %v3876
        %v3911 = vunpack.c.l.b16 %v3877
        %v3912 = vunpack.c.l.b16 %v3878
        %v3913 = vunpack.c.l.b16 %v3879
        %v3914 = vunpack.c.l.b16 %v3880
        %v3915 = vunpack.c.l.b16 %v3881
        %v3916 = vunpack.c.l.b16 %v3882
        %v3917 = vunpack.c.l.b16 %v3883
        %v3918 = vunpack.c.l.b16 %v3884
        %v3919 = vunpack.c.l.b16 %v3885
        %v3920 = vunpack.c.l.b16 %v3886
        %v3921 = vunpack.c.l.b16 %v3887
        %v3922 = vunpack.c.l.b16 %v3888
        %v3923 = vunpack.c.l.b16 %v3889
        %v3924 = vunpack.c.l.b16 %v3890
        %v3925 = vpack.c.b16 %v3910, %v3909
        %v3926 = vpack.c.b16 %v3912, %v3911
        %v3927 = vpack.c.b16 %v3914, %v3913
        %v3928 = vpack.c.b16 %v3916, %v3915
        %v3929 = vpack.c.b16 %v3918, %v3917
        %v3930 = vpack.c.b16 %v3920, %v3919
        %v3931 = vpack.c.b16 %v3922, %v3921
        %v3932 = vpack.c.b16 %v3924, %v3923
        %3941 = vmatprep.subr.bf16.mxu0 0
        %3942 = vmatpush1.bf16.msra.mxu0 %v3925
        %3943 = vmatprep.subr.bf16.mxu0 0
        %3944 = vmatpush1.bf16.msra.mxu0 %v3926
        %3945 = vmatprep.subr.bf16.mxu0 0
        %3946 = vmatpush1.bf16.msra.mxu0 %v3927
        %3947 = vmatprep.subr.bf16.mxu0 0
        %3948 = vmatpush1.bf16.msra.mxu0 %v3928
        %3949 = vmatprep.subr.bf16.mxu0 0
        %3950 = vmatpush1.bf16.msra.mxu0 %v3929
        %3951 = vmatprep.subr.bf16.mxu0 0
        %3952 = vmatpush1.bf16.msra.mxu0 %v3930
        %3953 = vmatprep.subr.bf16.mxu0 0
        %3954 = vmatpush1.bf16.msra.mxu0 %v3931
        %3955 = vmatprep.subr.bf16.mxu0 0
        %3956 = vmatpush1.bf16.msra.mxu0 %v3932
        %3957 = vmatprep.subr.bf16.mxu0 0
        %3958 = vmatpush1.bf16.msra.mxu0 0
        %3959 = vmatprep.subr.bf16.mxu0 0
        %3960 = vmatpush1.bf16.msra.mxu0 0
        %3961 = vmatprep.subr.bf16.mxu0 0
        %3962 = vmatpush1.bf16.msra.mxu0 0
        %3963 = vmatprep.subr.bf16.mxu0 0
        %3964 = vmatpush1.bf16.msra.mxu0 0
        %3965 = vmatprep.subr.bf16.mxu0 0
        %3966 = vmatpush1.bf16.msra.mxu0 0
        %3967 = vmatprep.subr.bf16.mxu0 0
        %3968 = vmatpush1.bf16.msra.mxu0 0
        %3969 = vmatprep.subr.bf16.mxu0 0
        %3970 = vmatpush1.bf16.msra.mxu0 0
        %3971 = vmatprep.subr.bf16.mxu0 0
        %3972 = vmatpush1.bf16.msra.mxu0 0
        %3973 = vmatprep.mubr.bf16.mxu0 0
        %3974 = vmatmul.mubr.bf16.gmra.mrb[0].mxu0 %v3891
        %v3975 = vpop.f32.mrb[0].mxu0
        %v3976 = vadd.f32 %v3892, %v3975
        %v3977 = vpop.f32.mrb[0].mxu0
        %v3978 = vpop.f32.mrb[0].mxu0
        %v3979 = vpop.f32.mrb[0].mxu0
        %3980 = vdwg.mxu0
        %v3981 = vtanh.pop %v3976
        %v3982 = vld [vmem:[%s18] sm:$0xf]
        %v3983 = vld [vmem:[%s18 + $0x4] sm:$0xf]
        %v3984 = vld [vmem:[%s18 + $0x8] sm:$0xf]
        %v3985 = vld [vmem:[%s18 + $0xc] sm:$0xf]
        %v3986 = vld [vmem:[%s18 + $0x10] sm:$0xf]
        %v3987 = vld [vmem:[%s18 + $0x14] sm:$0xf]
        %v3988 = vld [vmem:[%s18 + $0x18] sm:$0xf]
        %v3989 = vld [vmem:[%s18 + $0x1c] sm:$0xf]
        %v3990 = vld [vmem:[%s18 + $0x20] sm:$0xf]
        %v3991 = vld [vmem:[%s18 + $0x24] sm:$0xf]
        %v3992 = vld [vmem:[%s18 + $0x28] sm:$0xf]
        %v3993 = vld [vmem:[%s18 + $0x2c] sm:$0xf]
        %v3994 = vld [vmem:[%s18 + $0x30] sm:$0xf]
        %v3995 = vld [vmem:[%s18 + $0x34] sm:$0xf]
        %v3996 = vld [vmem:[%s18 + $0x38] sm:$0xf]
        %v3997 = vld [vmem:[%s18 + $0x3c] sm:$0xf]
        %v3998 = vpack.c.bf16 %v3981, %v3981
        %v3999 = vld [vmem:[%s19] sm:$0x1]
        %v4016 = vunpack.c.l.b16 %v3982
        %v4017 = vunpack.c.l.b16 %v3983
        %v4018 = vunpack.c.l.b16 %v3984
        %v4019 = vunpack.c.l.b16 %v3985
        %v4020 = vunpack.c.l.b16 %v3986
        %v4021 = vunpack.c.l.b16 %v3987
        %v4022 = vunpack.c.l.b16 %v3988
        %v4023 = vunpack.c.l.b16 %v3989
        %v4024 = vunpack.c.l.b16 %v3990
        %v4025 = vunpack.c.l.b16 %v3991
        %v4026 = vunpack.c.l.b16 %v3992
        %v4027 = vunpack.c.l.b16 %v3993
        %v4028 = vunpack.c.l.b16 %v3994
        %v4029 = vunpack.c.l.b16 %v3995
        %v4030 = vunpack.c.l.b16 %v3996
        %v4031 = vunpack.c.l.b16 %v3997
        %v4032 = vpack.c.b16 %v4017, %v4016
        %v4033 = vpack.c.b16 %v4019, %v4018
        %v4034 = vpack.c.b16 %v4021, %v4020
        %v4035 = vpack.c.b16 %v4023, %v4022
        %v4036 = vpack.c.b16 %v4025, %v4024
        %v4037 = vpack.c.b16 %v4027, %v4026
        %v4038 = vpack.c.b16 %v4029, %v4028
        %v4039 = vpack.c.b16 %v4031, %v4030
        %4048 = vmatprep.subr.bf16.mxu0 0
        %4049 = vmatpush1.bf16.msra.mxu0 %v4032
        %4050 = vmatprep.subr.bf16.mxu0 0
        %4051 = vmatpush1.bf16.msra.mxu0 %v4033
        %4052 = vmatprep.subr.bf16.mxu0 0
        %4053 = vmatpush1.bf16.msra.mxu0 %v4034
        %4054 = vmatprep.subr.bf16.mxu0 0
        %4055 = vmatpush1.bf16.msra.mxu0 %v4035
        %4056 = vmatprep.subr.bf16.mxu0 0
        %4057 = vmatpush1.bf16.msra.mxu0 %v4036
        %4058 = vmatprep.subr.bf16.mxu0 0
        %4059 = vmatpush1.bf16.msra.mxu0 %v4037
        %4060 = vmatprep.subr.bf16.mxu0 0
        %4061 = vmatpush1.bf16.msra.mxu0 %v4038
        %4062 = vmatprep.subr.bf16.mxu0 0
        %4063 = vmatpush1.bf16.msra.mxu0 %v4039
        %4064 = vmatprep.subr.bf16.mxu0 0
        %4065 = vmatpush1.bf16.msra.mxu0 0
        %4066 = vmatprep.subr.bf16.mxu0 0
        %4067 = vmatpush1.bf16.msra.mxu0 0
        %4068 = vmatprep.subr.bf16.mxu0 0
        %4069 = vmatpush1.bf16.msra.mxu0 0
        %4070 = vmatprep.subr.bf16.mxu0 0
        %4071 = vmatpush1.bf16.msra.mxu0 0
        %4072 = vmatprep.subr.bf16.mxu0 0
        %4073 = vmatpush1.bf16.msra.mxu0 0
        %4074 = vmatprep.subr.bf16.mxu0 0
        %4075 = vmatpush1.bf16.msra.mxu0 0
        %4076 = vmatprep.subr.bf16.mxu0 0
        %4077 = vmatpush1.bf16.msra.mxu0 0
        %4078 = vmatprep.subr.bf16.mxu0 0
        %4079 = vmatpush1.bf16.msra.mxu0 0
        %4080 = vmatprep.mubr.bf16.mxu0 0
        %4081 = vmatmul.mubr.bf16.gmra.mrb[0].mxu0 %v3998
        %v4082 = vpop.f32.mrb[0].mxu0
        %v4083 = vadd.f32 %v3999, %v4082
        %v4084 = vpop.f32.mrb[0].mxu0
        %v4085 = vpop.f32.mrb[0].mxu0
        %v4086 = vpop.f32.mrb[0].mxu0
        %4087 = vdwg.mxu0
        %4088 = vst [vmem:[%s680] sm:$0x1] %v4083
        %p4089 = scmp.lt.s32.totalorder %s33, 1
        %s4090 = scalar_select %p4089, %s33, 1
        %s4091 = scalar_lea.vmem %s20, %s4090
        // Predicated region
        $region113: #{bert_base_uncased_forward.1} parent=99 // pred_check
          %p4092 = pneg %p481
        $region114: #{bert_base_uncased_forward.1} parent=99 // pred_check_branch
          %4094 = sbr.rel (%p4092) target = $region116
        $region115: #{bert_base_uncased_forward.1} parent=99 // pred_region
          _
        $region116: #{bert_base_uncased_forward.1} parent=99 // pred_fallthru
          _
      $region100: #{bert_base_uncased_forward.1} parent=5 // pred_fallthru
        _
      %p4095 = scmp.le.s32.totalorder 2, %s28
      // Predicated region
      $region117: #{bert_base_uncased_forward.1} parent=5 // pred_check
        %p4096 = pneg %p4095
      $region118: #{bert_base_uncased_forward.1} parent=5 // pred_check_branch
        %4098 = sbr.rel (%p4096) target = $region120
      $region119: #{bert_base_uncased_forward.1} parent=5 // pred_region
        %s4099 = ssub.s32 %s28, 2
        // Predicated region
        $region121: #{bert_base_uncased_forward.1} parent=119 // pred_check
          %p4100 = pneg %p487
        $region122: #{bert_base_uncased_forward.1} parent=119 // pred_check_branch
          %4102 = sbr.rel (%p4100) target = $region124
        $region123: #{bert_base_uncased_forward.1} parent=119 // pred_region
          %p4103 = scmp.lt.s32.totalorder %s34, 1
          %s4104 = scalar_select %p4103, %s34, 1
          %s4105 = scalar_lea.vmem %s20, %s4104
        $region124: #{bert_base_uncased_forward.1} parent=119 // pred_fallthru
          _
      $region120: #{bert_base_uncased_forward.1} parent=5 // pred_fallthru
        _
    $region6: #{bert_base_uncased_forward.1} parent=1 // loop_footer
      %s32 = sadd.s32 1, %s28
    $region7: #{bert_base_uncased_forward.1} parent=1 // loop_footer_branch
      %27 = sbr.rel target = $region3
    $region8: #{bert_base_uncased_forward.1} parent=1 // loop_exit
      _
    %4106 = vsyncpa [#allocation3], 1
    %s4107 = scalar_lea.sflag [#allocation3], 1
    %4108 = vsyncpa %s4107, 1
    %4109 = vsyncpa [#allocation5], 1

</llo_original>
